<compile_context>
chip_gen: v7x
topology: tpu7x:2x2x1
jax: 0.10.0
libtpu: 0.0.40
codegen_flags: <defaults>
</compile_context>

<pallas_src>
import jax
import jax.numpy as jnp
from jax.experimental import pallas as pl
from jax.experimental.pallas import tpu as pltpu


# ------------------------------- forward ---------------------------------

def fcm_forward(x_nchw, y_nchw, prep):
    B, C, H, W = x_nchw.shape
    HW = H * W
    PL = W + 1                       # halo width each side of the pixel axis
    PADW = HW + 2 * PL

    # free row-major relabels (no HBM relayout passes)
    x = x_nchw.reshape(B, C, HW).astype(jnp.float32)
    y = y_nchw.reshape(B, C, HW).astype(jnp.float32)

    def kernel(x_ref, y_ref, linw_ref, linb_ref, eye_ref, wcat_ref, bcat_ref,
               w1_ref, b1_ref, w2_ref, b2_ref, w3_ref, b3_ref,
               out_ref, pad_ref):
        xb = x_ref[0]                                              # (C, HW)
        yb = y_ref[0]

        # ---- global average pool + linear -> per-channel weights ----
        m = jnp.concatenate([jnp.mean(xb, axis=1, keepdims=True),
                             jnp.mean(yb, axis=1, keepdims=True)], axis=1)  # (C,2)
        wgt = jnp.dot(linw_ref[...], m,
                      preferred_element_type=jnp.float32) + linb_ref[...]   # (C,2)
        wx = wgt[:, 0:1]
        wy = wgt[:, 1:2]

        # ---- fold re-weighting into the 1x1-conv weight (tiny diag matmul) ----
        s = jnp.concatenate([wx, wy, wx * wy], axis=0)                      # (3C,1)
        wcat_s = jnp.dot(wcat_ref[...], eye_ref[...] * s,
                         preferred_element_type=jnp.float32)                # (2C,3C)

        # ---- fuse[0] + down as ONE K=3C matmul; 3C concat stays in VMEM ----
        xcat = jnp.concatenate([xb, yb, xb * yb], axis=0)                   # (3C,HW)
        z = jnp.dot(wcat_s, xcat,
                    preferred_element_type=jnp.float32) + bcat_ref[...]     # (2C,HW)
        z = jnp.maximum(z, 0.0)
        v = z[0:C, :]                                                       # fuse[0]
        d = z[C:2 * C, :]                                                   # down

        # ---- 3x depthwise-3x3 + ReLU, chained in VMEM (C,HW layout) ----
        # destination-pixel w coordinate, to mask reads that cross a row end
        widx = jax.lax.broadcasted_iota(jnp.int32, (1, HW), 1) % W
        mask_l = (widx >= 1).astype(jnp.float32)        # (w-1) neighbour valid
        mask_r = (widx <= W - 2).astype(jnp.float32)    # (w+1) neighbour valid

        # zero ONLY the halo border; interior is rewritten every stage
        pad_ref[:, :PL] = jnp.zeros((C, PL), jnp.float32)
        pad_ref[:, PL + HW:] = jnp.zeros((C, PL), jnp.float32)

        for w_ref, b_ref in ((w1_ref, b1_ref), (w2_ref, b2_ref), (w3_ref, b3_ref)):
            pad_ref[:, PL:PL + HW] = v
            w = w_ref[...]                                # (C, 9)
            accs = []
            for dj in (-1, 0, 1):                         # 3 independent chains
                acc = None
                for di in (-1, 0, 1):
                    k = (di + 1) * 3 + (dj + 1)
                    if di == 0 and dj == 0:
                        tap = v * w[:, k:k + 1]           # centre tap: no reload
                    else:
                        off = PL + di * W + dj
                        tap = pad_ref[:, off:off + HW] * w[:, k:k + 1]
                    acc = tap if acc is None else acc + tap
                accs.append(acc)
            v = jnp.maximum(accs[0] * mask_l + accs[1] + accs[2] * mask_r
                            + b_ref[...], 0.0)

        out_ref[0] = v + d                                # residual, lane-dense store

    out = pl.pallas_call(
        kernel,
        out_shape=jax.ShapeDtypeStruct((B, C, HW), jnp.float32),
        grid=(B,),
        in_specs=[
            pl.BlockSpec((1, C, HW), lambda b: (b, 0, 0)),      # x
            pl.BlockSpec((1, C, HW), lambda b: (b, 0, 0)),      # y
            pl.BlockSpec((C, C), lambda b: (0, 0)),             # lin_w
            pl.BlockSpec((C, 1), lambda b: (0, 0)),             # lin_b
            pl.BlockSpec((3 * C, 3 * C), lambda b: (0, 0)),     # eye3
            pl.BlockSpec((2 * C, 3 * C), lambda b: (0, 0)),     # wcat
            pl.BlockSpec((2 * C, 1), lambda b: (0, 0)),         # bcat
            pl.BlockSpec((C, 9), lambda b: (0, 0)),             # dw1_w
            pl.BlockSpec((C, 1), lambda b: (0, 0)),             # dw1_b
            pl.BlockSpec((C, 9), lambda b: (0, 0)),             # dw2_w
            pl.BlockSpec((C, 1), lambda b: (0, 0)),             # dw2_b
            pl.BlockSpec((C, 9), lambda b: (0, 0)),             # dw3_w
            pl.BlockSpec((C, 1), lambda b: (0, 0)),             # dw3_b
        ],
        out_specs=pl.BlockSpec((1, C, HW), lambda b: (b, 0, 0)),
        scratch_shapes=[pltpu.VMEM((C, PADW), jnp.float32)],
        compiler_params=pltpu.CompilerParams(dimension_semantics=("parallel",)),
    )(x, y, prep['lin_w'], prep['lin_b'], prep['eye3'], prep['wcat'], prep['bcat'],
      prep['dw1_w'], prep['dw1_b'], prep['dw2_w'], prep['dw2_b'],
      prep['dw3_w'], prep['dw3_b'])

    return out.reshape(B, C, H, W)                        # free relabel (NCHW)


# -------------------------- params & reference ---------------------------

def init_params(key, dim):
    ks = jax.random.split(key, 12)
    s = 0.1
    p = {
        'lin_w':  s * jax.random.normal(ks[0], (dim, dim), jnp.float32),      # Linear (out,in)
        'lin_b':  s * jax.random.normal(ks[1], (dim,), jnp.float32),
        'f0_w':   s * jax.random.normal(ks[2], (dim, 3 * dim), jnp.float32),  # Conv1x1 (out,in)
        'f0_b':   s * jax.random.normal(ks[3], (dim,), jnp.float32),
        'down_w': s * jax.random.normal(ks[4], (dim, 3 * dim), jnp.float32),
        'down_b': s * jax.random.normal(ks[5], (dim,), jnp.float32),
    }
    # depthwise Conv2d(dim,dim,3,groups=dim): PyTorch weight (dim,1,3,3) -> (9, dim)
    for i, kk in zip((1, 2, 3), (6, 8, 10)):
        p[f'f{i}_w'] = s * jax.random.normal(ks[kk], (9, dim), jnp.float32)
        p[f'f{i}_b'] = s * jax.random.normal(ks[kk + 1], (dim,), jnp.float32)
    return p


def prepare_params(p):
    """One-time weight-layout prep (hoisted out of the forward pass)."""
    C = p['lin_b'].shape[0]
    prep = {
        'lin_w': p['lin_w'],                                                  # (C,C)
        'lin_b': p['lin_b'][:, None],                                         # (C,1)
        'eye3':  jnp.eye(3 * C, dtype=jnp.float32),                           # (3C,3C)
        'wcat':  jnp.concatenate([p['f0_w'], p['down_w']], axis=0),           # (2C,3C)
        'bcat':  jnp.concatenate([p['f0_b'], p['down_b']])[:, None],          # (2C,1)
    }
    for i in (1, 2, 3):
        prep[f'dw{i}_w'] = p[f'f{i}_w'].T                                     # (C,9)
        prep[f'dw{i}_b'] = p[f'f{i}_b'][:, None]                              # (C,1)
    return prep


def ref_forward(x_nchw, y_nchw, p):
    B, C, H, W = x_nchw.shape
    x = jnp.transpose(x_nchw, (0, 2, 3, 1))
    y = jnp.transpose(y_nchw, (0, 2, 3, 1))
    xw = x.mean(axis=(1, 2)) @ p['lin_w'].T + p['lin_b']
    yw = y.mean(axis=(1, 2)) @ p['lin_w'].T + p['lin_b']
    xs = x * xw[:, None, None, :]
    ys = y * yw[:, None, None, :]
    fuse = jnp.concatenate([xs, ys, xs * ys], axis=-1)
    conv1 = lambda z, w, b: jax.nn.relu(jnp.einsum('bhwc,oc->bhwo', z, w) + b)

    def dw(z, w9c, b):
        zp = jnp.pad(z, ((0, 0), (1, 1), (1, 1), (0, 0)))
        acc = 0.0
        for k in range(9):
            di, dj = divmod(k, 3)
            acc = acc + zp[:, di:di + H, dj:dj + W, :] * w9c[k]
        return jax.nn.relu(acc + b)

    f = conv1(fuse, p['f0_w'], p['f0_b'])
    f = dw(f, p['f1_w'], p['f1_b'])
    f = dw(f, p['f2_w'], p['f2_b'])
    f = dw(f, p['f3_w'], p['f3_b']) + conv1(fuse, p['down_w'], p['down_b'])
    return jnp.transpose(f, (0, 3, 1, 2))


# --------------------------------- main -----------------------------------

if __name__ == "__main__":
    # full-f32 matmuls everywhere (kernel + reference) so parity is ~1e-6
    jax.config.update("jax_default_matmul_precision", "highest")

    key = jax.random.PRNGKey(0)
    k1, k2, k3 = jax.random.split(key, 3)
    B, dim, H, W = 2, 32, 16, 16
    x1 = jax.random.normal(k1, (B, dim, H, W), jnp.float32)
    y1 = jax.random.normal(k2, (B, dim, H, W), jnp.float32)
    params = init_params(k3, dim)
    prep = prepare_params(params)

    fwd = jax.jit(fcm_forward)
    out = jax.block_until_ready(fwd(x1, y1, prep))
    ref = jax.block_until_ready(ref_forward(x1, y1, params))

    assert out.shape == (B, dim, H, W), out.shape
    err = float(jnp.max(jnp.abs(out - ref)))
    # loose bound only guards against an MXU default-precision fallback path
    assert err < 5e-3, f"max abs err {err}"
    print("KERNEL_OK")
</pallas_src>

<mosaic_0001>
module attributes {stable_mosaic.version = 11 : i64} {
  func.func @kernel(%arg0: i32, %arg1: memref<1x32x256xf32, #tpu.memory_space<vmem>>, %arg2: memref<1x32x256xf32, #tpu.memory_space<vmem>>, %arg3: memref<32x32xf32, #tpu.memory_space<vmem>>, %arg4: memref<32x1xf32, #tpu.memory_space<vmem>>, %arg5: memref<96x96xf32, #tpu.memory_space<vmem>>, %arg6: memref<64x96xf32, #tpu.memory_space<vmem>>, %arg7: memref<64x1xf32, #tpu.memory_space<vmem>>, %arg8: memref<32x9xf32, #tpu.memory_space<vmem>>, %arg9: memref<32x1xf32, #tpu.memory_space<vmem>>, %arg10: memref<32x9xf32, #tpu.memory_space<vmem>>, %arg11: memref<32x1xf32, #tpu.memory_space<vmem>>, %arg12: memref<32x9xf32, #tpu.memory_space<vmem>>, %arg13: memref<32x1xf32, #tpu.memory_space<vmem>>, %arg14: memref<1x32x256xf32, #tpu.memory_space<vmem>>, %arg15: memref<32x290xf32, #tpu.memory_space<vmem>>) attributes {dimension_semantics = [#tpu.dimension_semantics<parallel>], iteration_bounds = array<i64: 2>, scalar_prefetch = 0 : i64, scratch_operands = 1 : i64, tpu.core_type = #tpu.core_type<tc>, window_params = [{transform_indices = @transform_0, window_bounds = array<i64: 1, 32, 256>}, {transform_indices = @transform_1, window_bounds = array<i64: 1, 32, 256>}, {pipeline_mode = #tpu.pipeline_mode<synchronous>, transform_indices = @transform_2, window_bounds = array<i64: 32, 32>}, {pipeline_mode = #tpu.pipeline_mode<synchronous>, transform_indices = @transform_3, window_bounds = array<i64: 32, 1>}, {pipeline_mode = #tpu.pipeline_mode<synchronous>, transform_indices = @transform_4, window_bounds = array<i64: 96, 96>}, {pipeline_mode = #tpu.pipeline_mode<synchronous>, transform_indices = @transform_5, window_bounds = array<i64: 64, 96>}, {pipeline_mode = #tpu.pipeline_mode<synchronous>, transform_indices = @transform_6, window_bounds = array<i64: 64, 1>}, {pipeline_mode = #tpu.pipeline_mode<synchronous>, transform_indices = @transform_7, window_bounds = array<i64: 32, 9>}, {pipeline_mode = #tpu.pipeline_mode<synchronous>, transform_indices = @transform_8, window_bounds = array<i64: 32, 1>}, {pipeline_mode = #tpu.pipeline_mode<synchronous>, transform_indices = @transform_9, window_bounds = array<i64: 32, 9>}, {pipeline_mode = #tpu.pipeline_mode<synchronous>, transform_indices = @transform_10, window_bounds = array<i64: 32, 1>}, {pipeline_mode = #tpu.pipeline_mode<synchronous>, transform_indices = @transform_11, window_bounds = array<i64: 32, 9>}, {pipeline_mode = #tpu.pipeline_mode<synchronous>, transform_indices = @transform_12, window_bounds = array<i64: 32, 1>}, {transform_indices = @transform_13, window_bounds = array<i64: 1, 32, 256>}]} {
    %c0 = arith.constant 0 : index
    %c0_0 = arith.constant 0 : index
    %c0_1 = arith.constant 0 : index
    %0 = vector.load %arg1[%c0, %c0_0, %c0_1] : memref<1x32x256xf32, #tpu.memory_space<vmem>>, vector<1x32x256xf32>
    %1 = vector.shape_cast %0 : vector<1x32x256xf32> to vector<32x256xf32>
    %c0_2 = arith.constant 0 : index
    %c0_3 = arith.constant 0 : index
    %c0_4 = arith.constant 0 : index
    %2 = vector.load %arg2[%c0_2, %c0_3, %c0_4] : memref<1x32x256xf32, #tpu.memory_space<vmem>>, vector<1x32x256xf32>
    %3 = vector.shape_cast %2 : vector<1x32x256xf32> to vector<32x256xf32>
    %cst = arith.constant dense<0.000000e+00> : vector<32xf32>
    %4 = vector.multi_reduction <add>, %1, %cst [1] : vector<32x256xf32> to vector<32xf32>
    %5 = vector.shape_cast %4 : vector<32xf32> to vector<32x1xf32>
    %cst_5 = arith.constant 2.560000e+02 : f32
    %6 = vector.broadcast %cst_5 : f32 to vector<32x1xf32>
    %7 = arith.divf %5, %6 : vector<32x1xf32>
    %cst_6 = arith.constant dense<0.000000e+00> : vector<32xf32>
    %8 = vector.multi_reduction <add>, %3, %cst_6 [1] : vector<32x256xf32> to vector<32xf32>
    %9 = vector.shape_cast %8 : vector<32xf32> to vector<32x1xf32>
    %cst_7 = arith.constant 2.560000e+02 : f32
    %10 = vector.broadcast %cst_7 : f32 to vector<32x1xf32>
    %11 = arith.divf %9, %10 : vector<32x1xf32>
    %12 = tpu.concatenate %7, %11 in 1 : vector<32x1xf32>, vector<32x1xf32> -> vector<32x2xf32>
    %c0_8 = arith.constant 0 : index
    %c0_9 = arith.constant 0 : index
    %13 = vector.load %arg3[%c0_8, %c0_9] : memref<32x32xf32, #tpu.memory_space<vmem>>, vector<32x32xf32>
    %cst_10 = arith.constant dense<0.000000e+00> : vector<32x2xf32>
    %14 = tpu.matmul %13, %12, %cst_10 {dimension_numbers = #tpu.dot_dimension_numbers<[1], [0], [0], [1], [0, 0, 1, 1], [], []>, precision = #tpu.contract_precision<fp32>} : vector<32x32xf32>, vector<32x2xf32>, vector<32x2xf32> -> vector<32x2xf32>
    %c0_11 = arith.constant 0 : index
    %c0_12 = arith.constant 0 : index
    %15 = vector.load %arg4[%c0_11, %c0_12] : memref<32x1xf32, #tpu.memory_space<vmem>>, vector<32x1xf32>
    %16 = vector.broadcast %15 : vector<32x1xf32> to vector<32x2xf32>
    %17 = arith.addf %14, %16 : vector<32x2xf32>
    %18 = vector.extract_strided_slice %17 {offsets = [0, 0], sizes = [32, 1], strides = [1, 1]} : vector<32x2xf32> to vector<32x1xf32>
    %19 = vector.extract_strided_slice %17 {offsets = [0, 1], sizes = [32, 1], strides = [1, 1]} : vector<32x2xf32> to vector<32x1xf32>
    %20 = arith.mulf %18, %19 : vector<32x1xf32>
    %21 = tpu.concatenate %18, %19, %20 in 0 : vector<32x1xf32>, vector<32x1xf32>, vector<32x1xf32> -> vector<96x1xf32>
    %c0_13 = arith.constant 0 : index
    %c0_14 = arith.constant 0 : index
    %22 = vector.load %arg6[%c0_13, %c0_14] : memref<64x96xf32, #tpu.memory_space<vmem>>, vector<64x96xf32>
    %c0_15 = arith.constant 0 : index
    %c0_16 = arith.constant 0 : index
    %23 = vector.load %arg5[%c0_15, %c0_16] : memref<96x96xf32, #tpu.memory_space<vmem>>, vector<96x96xf32>
    %24 = vector.broadcast %21 : vector<96x1xf32> to vector<96x96xf32>
    %25 = arith.mulf %23, %24 : vector<96x96xf32>
    %cst_17 = arith.constant dense<0.000000e+00> : vector<64x96xf32>
    %26 = tpu.matmul %22, %25, %cst_17 {dimension_numbers = #tpu.dot_dimension_numbers<[1], [0], [0], [1], [0, 0, 1, 1], [], []>, precision = #tpu.contract_precision<fp32>} : vector<64x96xf32>, vector<96x96xf32>, vector<64x96xf32> -> vector<64x96xf32>
    %27 = arith.mulf %1, %3 : vector<32x256xf32>
    %28 = tpu.concatenate %1, %3, %27 in 0 : vector<32x256xf32>, vector<32x256xf32>, vector<32x256xf32> -> vector<96x256xf32>
    %cst_18 = arith.constant dense<0.000000e+00> : vector<64x256xf32>
    %29 = tpu.matmul %26, %28, %cst_18 {dimension_numbers = #tpu.dot_dimension_numbers<[1], [0], [0], [1], [0, 0, 1, 1], [], []>, precision = #tpu.contract_precision<fp32>} : vector<64x96xf32>, vector<96x256xf32>, vector<64x256xf32> -> vector<64x256xf32>
    %c0_19 = arith.constant 0 : index
    %c0_20 = arith.constant 0 : index
    %30 = vector.load %arg7[%c0_19, %c0_20] : memref<64x1xf32, #tpu.memory_space<vmem>>, vector<64x1xf32>
    %31 = vector.broadcast %30 : vector<64x1xf32> to vector<64x256xf32>
    %32 = arith.addf %29, %31 : vector<64x256xf32>
    %cst_21 = arith.constant 0.000000e+00 : f32
    %33 = vector.broadcast %cst_21 : f32 to vector<64x256xf32>
    %34 = arith.maximumf %32, %33 : vector<64x256xf32>
    %35 = vector.extract_strided_slice %34 {offsets = [0, 0], sizes = [32, 256], strides = [1, 1]} : vector<64x256xf32> to vector<32x256xf32>
    %36 = vector.extract_strided_slice %34 {offsets = [32, 0], sizes = [32, 256], strides = [1, 1]} : vector<64x256xf32> to vector<32x256xf32>
    %37 = tpu.iota {dimensions = array<i32: 1>} : vector<1x256xi32>
    %c16_i32 = arith.constant 16 : i32
    %c0_i32 = arith.constant 0 : i32
    %38 = arith.cmpi eq, %c16_i32, %c0_i32 : i32
    %c1_i32 = arith.constant 1 : i32
    %39 = arith.select %38, %c1_i32, %c16_i32 : i32
    %40 = vector.broadcast %39 : i32 to vector<1x256xi32>
    %41 = arith.remsi %37, %40 : vector<1x256xi32>
    %c0_i32_22 = arith.constant 0 : i32
    %42 = vector.broadcast %c0_i32_22 : i32 to vector<1x256xi32>
    %43 = arith.cmpi ne, %41, %42 : vector<1x256xi32>
    %c0_i32_23 = arith.constant 0 : i32
    %44 = vector.broadcast %c0_i32_23 : i32 to vector<1x256xi32>
    %45 = arith.cmpi slt, %41, %44 : vector<1x256xi32>
    %c0_i32_24 = arith.constant 0 : i32
    %46 = arith.cmpi slt, %39, %c0_i32_24 : i32
    %47 = vector.broadcast %46 : i1 to vector<1x256xi1>
    %48 = vector.broadcast %47 : vector<1x256xi1> to vector<1x256xi1>
    %49 = arith.xori %45, %48 : vector<1x256xi1>
    %50 = arith.andi %49, %43 : vector<1x256xi1>
    %51 = vector.broadcast %39 : i32 to vector<1x256xi32>
    %52 = arith.addi %41, %51 : vector<1x256xi32>
    %53 = arith.select %50, %52, %41 : vector<1x256xi1>, vector<1x256xi32>
    %c1_i32_25 = arith.constant 1 : i32
    %54 = vector.broadcast %c1_i32_25 : i32 to vector<1x256xi32>
    %55 = arith.cmpi sge, %53, %54 : vector<1x256xi32>
    %56 = arith.extui %55 : vector<1x256xi1> to vector<1x256xi32>
    %57 = arith.sitofp %56 : vector<1x256xi32> to vector<1x256xf32>
    %c14_i32 = arith.constant 14 : i32
    %58 = vector.broadcast %c14_i32 : i32 to vector<1x256xi32>
    %59 = arith.cmpi sle, %53, %58 : vector<1x256xi32>
    %60 = arith.extui %59 : vector<1x256xi1> to vector<1x256xi32>
    %61 = arith.sitofp %60 : vector<1x256xi32> to vector<1x256xf32>
    %cst_26 = arith.constant 0.000000e+00 : f32
    %62 = vector.broadcast %cst_26 : f32 to vector<32x17xf32>
    %c0_27 = arith.constant 0 : index
    %c0_28 = arith.constant 0 : index
    %63 = vector.load %arg15[%c0_27, %c0_28] : memref<32x290xf32, #tpu.memory_space<vmem>>, vector<32x17xf32>
    tpu.vector_store %arg15[%c0_27, %c0_28], %62 {strides = array<i32>} : memref<32x290xf32, #tpu.memory_space<vmem>>, vector<32x17xf32>,
    %cst_29 = arith.constant 0.000000e+00 : f32
    %64 = vector.broadcast %cst_29 : f32 to vector<32x17xf32>
    %c0_30 = arith.constant 0 : index
    %c273 = arith.constant 273 : index
    %65 = vector.load %arg15[%c0_30, %c273] : memref<32x290xf32, #tpu.memory_space<vmem>>, vector<32x17xf32>
    tpu.vector_store %arg15[%c0_30, %c273], %64 {strides = array<i32>} : memref<32x290xf32, #tpu.memory_space<vmem>>, vector<32x17xf32>,
    %c0_31 = arith.constant 0 : index
    %c17 = arith.constant 17 : index
    %66 = vector.load %arg15[%c0_31, %c17] : memref<32x290xf32, #tpu.memory_space<vmem>>, vector<32x256xf32>
    tpu.vector_store %arg15[%c0_31, %c17], %35 {strides = array<i32>} : memref<32x290xf32, #tpu.memory_space<vmem>>, vector<32x256xf32>,
    %c0_32 = arith.constant 0 : index
    %c0_33 = arith.constant 0 : index
    %67 = vector.load %arg8[%c0_32, %c0_33] : memref<32x9xf32, #tpu.memory_space<vmem>>, vector<32x9xf32>
    %c0_34 = arith.constant 0 : index
    %c0_35 = arith.constant 0 : index
    %68 = vector.load %arg15[%c0_34, %c0_35] : memref<32x290xf32, #tpu.memory_space<vmem>>, vector<32x256xf32>
    %69 = vector.extract_strided_slice %67 {offsets = [0, 0], sizes = [32, 1], strides = [1, 1]} : vector<32x9xf32> to vector<32x1xf32>
    %70 = vector.broadcast %69 : vector<32x1xf32> to vector<32x256xf32>
    %71 = arith.mulf %68, %70 : vector<32x256xf32>
    %c0_36 = arith.constant 0 : index
    %c16 = arith.constant 16 : index
    %72 = vector.load %arg15[%c0_36, %c16] : memref<32x290xf32, #tpu.memory_space<vmem>>, vector<32x256xf32>
    %73 = vector.extract_strided_slice %67 {offsets = [0, 3], sizes = [32, 1], strides = [1, 1]} : vector<32x9xf32> to vector<32x1xf32>
    %74 = vector.broadcast %73 : vector<32x1xf32> to vector<32x256xf32>
    %75 = arith.mulf %72, %74 : vector<32x256xf32>
    %76 = arith.addf %71, %75 : vector<32x256xf32>
    %c0_37 = arith.constant 0 : index
    %c32 = arith.constant 32 : index
    %77 = vector.load %arg15[%c0_37, %c32] : memref<32x290xf32, #tpu.memory_space<vmem>>, vector<32x256xf32>
    %78 = vector.extract_strided_slice %67 {offsets = [0, 6], sizes = [32, 1], strides = [1, 1]} : vector<32x9xf32> to vector<32x1xf32>
    %79 = vector.broadcast %78 : vector<32x1xf32> to vector<32x256xf32>
    %80 = arith.mulf %77, %79 : vector<32x256xf32>
    %81 = arith.addf %76, %80 : vector<32x256xf32>
    %c0_38 = arith.constant 0 : index
    %c1 = arith.constant 1 : index
    %82 = vector.load %arg15[%c0_38, %c1] : memref<32x290xf32, #tpu.memory_space<vmem>>, vector<32x256xf32>
    %83 = vector.extract_strided_slice %67 {offsets = [0, 1], sizes = [32, 1], strides = [1, 1]} : vector<32x9xf32> to vector<32x1xf32>
    %84 = vector.broadcast %83 : vector<32x1xf32> to vector<32x256xf32>
    %85 = arith.mulf %82, %84 : vector<32x256xf32>
    %86 = vector.extract_strided_slice %67 {offsets = [0, 4], sizes = [32, 1], strides = [1, 1]} : vector<32x9xf32> to vector<32x1xf32>
    %87 = vector.broadcast %86 : vector<32x1xf32> to vector<32x256xf32>
    %88 = arith.mulf %35, %87 : vector<32x256xf32>
    %89 = arith.addf %85, %88 : vector<32x256xf32>
    %c0_39 = arith.constant 0 : index
    %c33 = arith.constant 33 : index
    %90 = vector.load %arg15[%c0_39, %c33] : memref<32x290xf32, #tpu.memory_space<vmem>>, vector<32x256xf32>
    %91 = vector.extract_strided_slice %67 {offsets = [0, 7], sizes = [32, 1], strides = [1, 1]} : vector<32x9xf32> to vector<32x1xf32>
    %92 = vector.broadcast %91 : vector<32x1xf32> to vector<32x256xf32>
    %93 = arith.mulf %90, %92 : vector<32x256xf32>
    %94 = arith.addf %89, %93 : vector<32x256xf32>
    %c0_40 = arith.constant 0 : index
    %c2 = arith.constant 2 : index
    %95 = vector.load %arg15[%c0_40, %c2] : memref<32x290xf32, #tpu.memory_space<vmem>>, vector<32x256xf32>
    %96 = vector.extract_strided_slice %67 {offsets = [0, 2], sizes = [32, 1], strides = [1, 1]} : vector<32x9xf32> to vector<32x1xf32>
    %97 = vector.broadcast %96 : vector<32x1xf32> to vector<32x256xf32>
    %98 = arith.mulf %95, %97 : vector<32x256xf32>
    %c0_41 = arith.constant 0 : index
    %c18 = arith.constant 18 : index
    %99 = vector.load %arg15[%c0_41, %c18] : memref<32x290xf32, #tpu.memory_space<vmem>>, vector<32x256xf32>
    %100 = vector.extract_strided_slice %67 {offsets = [0, 5], sizes = [32, 1], strides = [1, 1]} : vector<32x9xf32> to vector<32x1xf32>
    %101 = vector.broadcast %100 : vector<32x1xf32> to vector<32x256xf32>
    %102 = arith.mulf %99, %101 : vector<32x256xf32>
    %103 = arith.addf %98, %102 : vector<32x256xf32>
    %c0_42 = arith.constant 0 : index
    %c34 = arith.constant 34 : index
    %104 = vector.load %arg15[%c0_42, %c34] : memref<32x290xf32, #tpu.memory_space<vmem>>, vector<32x256xf32>
    %105 = vector.extract_strided_slice %67 {offsets = [0, 8], sizes = [32, 1], strides = [1, 1]} : vector<32x9xf32> to vector<32x1xf32>
    %106 = vector.broadcast %105 : vector<32x1xf32> to vector<32x256xf32>
    %107 = arith.mulf %104, %106 : vector<32x256xf32>
    %108 = arith.addf %103, %107 : vector<32x256xf32>
    %109 = vector.broadcast %57 : vector<1x256xf32> to vector<32x256xf32>
    %110 = arith.mulf %81, %109 : vector<32x256xf32>
    %111 = arith.addf %110, %94 : vector<32x256xf32>
    %112 = vector.broadcast %61 : vector<1x256xf32> to vector<32x256xf32>
    %113 = arith.mulf %108, %112 : vector<32x256xf32>
    %114 = arith.addf %111, %113 : vector<32x256xf32>
    %c0_43 = arith.constant 0 : index
    %c0_44 = arith.constant 0 : index
    %115 = vector.load %arg9[%c0_43, %c0_44] : memref<32x1xf32, #tpu.memory_space<vmem>>, vector<32x1xf32>
    %116 = vector.broadcast %115 : vector<32x1xf32> to vector<32x256xf32>
    %117 = arith.addf %114, %116 : vector<32x256xf32>
    %cst_45 = arith.constant 0.000000e+00 : f32
    %118 = vector.broadcast %cst_45 : f32 to vector<32x256xf32>
    %119 = arith.maximumf %117, %118 : vector<32x256xf32>
    %c0_46 = arith.constant 0 : index
    %c17_47 = arith.constant 17 : index
    %120 = vector.load %arg15[%c0_46, %c17_47] : memref<32x290xf32, #tpu.memory_space<vmem>>, vector<32x256xf32>
    tpu.vector_store %arg15[%c0_46, %c17_47], %119 {strides = array<i32>} : memref<32x290xf32, #tpu.memory_space<vmem>>, vector<32x256xf32>,
    %c0_48 = arith.constant 0 : index
    %c0_49 = arith.constant 0 : index
    %121 = vector.load %arg10[%c0_48, %c0_49] : memref<32x9xf32, #tpu.memory_space<vmem>>, vector<32x9xf32>
    %c0_50 = arith.constant 0 : index
    %c0_51 = arith.constant 0 : index
    %122 = vector.load %arg15[%c0_50, %c0_51] : memref<32x290xf32, #tpu.memory_space<vmem>>, vector<32x256xf32>
    %123 = vector.extract_strided_slice %121 {offsets = [0, 0], sizes = [32, 1], strides = [1, 1]} : vector<32x9xf32> to vector<32x1xf32>
    %124 = vector.broadcast %123 : vector<32x1xf32> to vector<32x256xf32>
    %125 = arith.mulf %122, %124 : vector<32x256xf32>
    %c0_52 = arith.constant 0 : index
    %c16_53 = arith.constant 16 : index
    %126 = vector.load %arg15[%c0_52, %c16_53] : memref<32x290xf32, #tpu.memory_space<vmem>>, vector<32x256xf32>
    %127 = vector.extract_strided_slice %121 {offsets = [0, 3], sizes = [32, 1], strides = [1, 1]} : vector<32x9xf32> to vector<32x1xf32>
    %128 = vector.broadcast %127 : vector<32x1xf32> to vector<32x256xf32>
    %129 = arith.mulf %126, %128 : vector<32x256xf32>
    %130 = arith.addf %125, %129 : vector<32x256xf32>
    %c0_54 = arith.constant 0 : index
    %c32_55 = arith.constant 32 : index
    %131 = vector.load %arg15[%c0_54, %c32_55] : memref<32x290xf32, #tpu.memory_space<vmem>>, vector<32x256xf32>
    %132 = vector.extract_strided_slice %121 {offsets = [0, 6], sizes = [32, 1], strides = [1, 1]} : vector<32x9xf32> to vector<32x1xf32>
    %133 = vector.broadcast %132 : vector<32x1xf32> to vector<32x256xf32>
    %134 = arith.mulf %131, %133 : vector<32x256xf32>
    %135 = arith.addf %130, %134 : vector<32x256xf32>
    %c0_56 = arith.constant 0 : index
    %c1_57 = arith.constant 1 : index
    %136 = vector.load %arg15[%c0_56, %c1_57] : memref<32x290xf32, #tpu.memory_space<vmem>>, vector<32x256xf32>
    %137 = vector.extract_strided_slice %121 {offsets = [0, 1], sizes = [32, 1], strides = [1, 1]} : vector<32x9xf32> to vector<32x1xf32>
    %138 = vector.broadcast %137 : vector<32x1xf32> to vector<32x256xf32>
    %139 = arith.mulf %136, %138 : vector<32x256xf32>
    %140 = vector.extract_strided_slice %121 {offsets = [0, 4], sizes = [32, 1], strides = [1, 1]} : vector<32x9xf32> to vector<32x1xf32>
    %141 = vector.broadcast %140 : vector<32x1xf32> to vector<32x256xf32>
    %142 = arith.mulf %119, %141 : vector<32x256xf32>
    %143 = arith.addf %139, %142 : vector<32x256xf32>
    %c0_58 = arith.constant 0 : index
    %c33_59 = arith.constant 33 : index
    %144 = vector.load %arg15[%c0_58, %c33_59] : memref<32x290xf32, #tpu.memory_space<vmem>>, vector<32x256xf32>
    %145 = vector.extract_strided_slice %121 {offsets = [0, 7], sizes = [32, 1], strides = [1, 1]} : vector<32x9xf32> to vector<32x1xf32>
    %146 = vector.broadcast %145 : vector<32x1xf32> to vector<32x256xf32>
    %147 = arith.mulf %144, %146 : vector<32x256xf32>
    %148 = arith.addf %143, %147 : vector<32x256xf32>
    %c0_60 = arith.constant 0 : index
    %c2_61 = arith.constant 2 : index
    %149 = vector.load %arg15[%c0_60, %c2_61] : memref<32x290xf32, #tpu.memory_space<vmem>>, vector<32x256xf32>
    %150 = vector.extract_strided_slice %121 {offsets = [0, 2], sizes = [32, 1], strides = [1, 1]} : vector<32x9xf32> to vector<32x1xf32>
    %151 = vector.broadcast %150 : vector<32x1xf32> to vector<32x256xf32>
    %152 = arith.mulf %149, %151 : vector<32x256xf32>
    %c0_62 = arith.constant 0 : index
    %c18_63 = arith.constant 18 : index
    %153 = vector.load %arg15[%c0_62, %c18_63] : memref<32x290xf32, #tpu.memory_space<vmem>>, vector<32x256xf32>
    %154 = vector.extract_strided_slice %121 {offsets = [0, 5], sizes = [32, 1], strides = [1, 1]} : vector<32x9xf32> to vector<32x1xf32>
    %155 = vector.broadcast %154 : vector<32x1xf32> to vector<32x256xf32>
    %156 = arith.mulf %153, %155 : vector<32x256xf32>
    %157 = arith.addf %152, %156 : vector<32x256xf32>
    %c0_64 = arith.constant 0 : index
    %c34_65 = arith.constant 34 : index
    %158 = vector.load %arg15[%c0_64, %c34_65] : memref<32x290xf32, #tpu.memory_space<vmem>>, vector<32x256xf32>
    %159 = vector.extract_strided_slice %121 {offsets = [0, 8], sizes = [32, 1], strides = [1, 1]} : vector<32x9xf32> to vector<32x1xf32>
    %160 = vector.broadcast %159 : vector<32x1xf32> to vector<32x256xf32>
    %161 = arith.mulf %158, %160 : vector<32x256xf32>
    %162 = arith.addf %157, %161 : vector<32x256xf32>
    %163 = vector.broadcast %57 : vector<1x256xf32> to vector<32x256xf32>
    %164 = arith.mulf %135, %163 : vector<32x256xf32>
    %165 = arith.addf %164, %148 : vector<32x256xf32>
    %166 = vector.broadcast %61 : vector<1x256xf32> to vector<32x256xf32>
    %167 = arith.mulf %162, %166 : vector<32x256xf32>
    %168 = arith.addf %165, %167 : vector<32x256xf32>
    %c0_66 = arith.constant 0 : index
    %c0_67 = arith.constant 0 : index
    %169 = vector.load %arg11[%c0_66, %c0_67] : memref<32x1xf32, #tpu.memory_space<vmem>>, vector<32x1xf32>
    %170 = vector.broadcast %169 : vector<32x1xf32> to vector<32x256xf32>
    %171 = arith.addf %168, %170 : vector<32x256xf32>
    %cst_68 = arith.constant 0.000000e+00 : f32
    %172 = vector.broadcast %cst_68 : f32 to vector<32x256xf32>
    %173 = arith.maximumf %171, %172 : vector<32x256xf32>
    %c0_69 = arith.constant 0 : index
    %c17_70 = arith.constant 17 : index
    %174 = vector.load %arg15[%c0_69, %c17_70] : memref<32x290xf32, #tpu.memory_space<vmem>>, vector<32x256xf32>
    tpu.vector_store %arg15[%c0_69, %c17_70], %173 {strides = array<i32>} : memref<32x290xf32, #tpu.memory_space<vmem>>, vector<32x256xf32>,
    %c0_71 = arith.constant 0 : index
    %c0_72 = arith.constant 0 : index
    %175 = vector.load %arg12[%c0_71, %c0_72] : memref<32x9xf32, #tpu.memory_space<vmem>>, vector<32x9xf32>
    %c0_73 = arith.constant 0 : index
    %c0_74 = arith.constant 0 : index
    %176 = vector.load %arg15[%c0_73, %c0_74] : memref<32x290xf32, #tpu.memory_space<vmem>>, vector<32x256xf32>
    %177 = vector.extract_strided_slice %175 {offsets = [0, 0], sizes = [32, 1], strides = [1, 1]} : vector<32x9xf32> to vector<32x1xf32>
    %178 = vector.broadcast %177 : vector<32x1xf32> to vector<32x256xf32>
    %179 = arith.mulf %176, %178 : vector<32x256xf32>
    %c0_75 = arith.constant 0 : index
    %c16_76 = arith.constant 16 : index
    %180 = vector.load %arg15[%c0_75, %c16_76] : memref<32x290xf32, #tpu.memory_space<vmem>>, vector<32x256xf32>
    %181 = vector.extract_strided_slice %175 {offsets = [0, 3], sizes = [32, 1], strides = [1, 1]} : vector<32x9xf32> to vector<32x1xf32>
    %182 = vector.broadcast %181 : vector<32x1xf32> to vector<32x256xf32>
    %183 = arith.mulf %180, %182 : vector<32x256xf32>
    %184 = arith.addf %179, %183 : vector<32x256xf32>
    %c0_77 = arith.constant 0 : index
    %c32_78 = arith.constant 32 : index
    %185 = vector.load %arg15[%c0_77, %c32_78] : memref<32x290xf32, #tpu.memory_space<vmem>>, vector<32x256xf32>
    %186 = vector.extract_strided_slice %175 {offsets = [0, 6], sizes = [32, 1], strides = [1, 1]} : vector<32x9xf32> to vector<32x1xf32>
    %187 = vector.broadcast %186 : vector<32x1xf32> to vector<32x256xf32>
    %188 = arith.mulf %185, %187 : vector<32x256xf32>
    %189 = arith.addf %184, %188 : vector<32x256xf32>
    %c0_79 = arith.constant 0 : index
    %c1_80 = arith.constant 1 : index
    %190 = vector.load %arg15[%c0_79, %c1_80] : memref<32x290xf32, #tpu.memory_space<vmem>>, vector<32x256xf32>
    %191 = vector.extract_strided_slice %175 {offsets = [0, 1], sizes = [32, 1], strides = [1, 1]} : vector<32x9xf32> to vector<32x1xf32>
    %192 = vector.broadcast %191 : vector<32x1xf32> to vector<32x256xf32>
    %193 = arith.mulf %190, %192 : vector<32x256xf32>
    %194 = vector.extract_strided_slice %175 {offsets = [0, 4], sizes = [32, 1], strides = [1, 1]} : vector<32x9xf32> to vector<32x1xf32>
    %195 = vector.broadcast %194 : vector<32x1xf32> to vector<32x256xf32>
    %196 = arith.mulf %173, %195 : vector<32x256xf32>
    %197 = arith.addf %193, %196 : vector<32x256xf32>
    %c0_81 = arith.constant 0 : index
    %c33_82 = arith.constant 33 : index
    %198 = vector.load %arg15[%c0_81, %c33_82] : memref<32x290xf32, #tpu.memory_space<vmem>>, vector<32x256xf32>
    %199 = vector.extract_strided_slice %175 {offsets = [0, 7], sizes = [32, 1], strides = [1, 1]} : vector<32x9xf32> to vector<32x1xf32>
    %200 = vector.broadcast %199 : vector<32x1xf32> to vector<32x256xf32>
    %201 = arith.mulf %198, %200 : vector<32x256xf32>
    %202 = arith.addf %197, %201 : vector<32x256xf32>
    %c0_83 = arith.constant 0 : index
    %c2_84 = arith.constant 2 : index
    %203 = vector.load %arg15[%c0_83, %c2_84] : memref<32x290xf32, #tpu.memory_space<vmem>>, vector<32x256xf32>
    %204 = vector.extract_strided_slice %175 {offsets = [0, 2], sizes = [32, 1], strides = [1, 1]} : vector<32x9xf32> to vector<32x1xf32>
    %205 = vector.broadcast %204 : vector<32x1xf32> to vector<32x256xf32>
    %206 = arith.mulf %203, %205 : vector<32x256xf32>
    %c0_85 = arith.constant 0 : index
    %c18_86 = arith.constant 18 : index
    %207 = vector.load %arg15[%c0_85, %c18_86] : memref<32x290xf32, #tpu.memory_space<vmem>>, vector<32x256xf32>
    %208 = vector.extract_strided_slice %175 {offsets = [0, 5], sizes = [32, 1], strides = [1, 1]} : vector<32x9xf32> to vector<32x1xf32>
    %209 = vector.broadcast %208 : vector<32x1xf32> to vector<32x256xf32>
    %210 = arith.mulf %207, %209 : vector<32x256xf32>
    %211 = arith.addf %206, %210 : vector<32x256xf32>
    %c0_87 = arith.constant 0 : index
    %c34_88 = arith.constant 34 : index
    %212 = vector.load %arg15[%c0_87, %c34_88] : memref<32x290xf32, #tpu.memory_space<vmem>>, vector<32x256xf32>
    %213 = vector.extract_strided_slice %175 {offsets = [0, 8], sizes = [32, 1], strides = [1, 1]} : vector<32x9xf32> to vector<32x1xf32>
    %214 = vector.broadcast %213 : vector<32x1xf32> to vector<32x256xf32>
    %215 = arith.mulf %212, %214 : vector<32x256xf32>
    %216 = arith.addf %211, %215 : vector<32x256xf32>
    %217 = vector.broadcast %57 : vector<1x256xf32> to vector<32x256xf32>
    %218 = arith.mulf %189, %217 : vector<32x256xf32>
    %219 = arith.addf %218, %202 : vector<32x256xf32>
    %220 = vector.broadcast %61 : vector<1x256xf32> to vector<32x256xf32>
    %221 = arith.mulf %216, %220 : vector<32x256xf32>
    %222 = arith.addf %219, %221 : vector<32x256xf32>
    %c0_89 = arith.constant 0 : index
    %c0_90 = arith.constant 0 : index
    %223 = vector.load %arg13[%c0_89, %c0_90] : memref<32x1xf32, #tpu.memory_space<vmem>>, vector<32x1xf32>
    %224 = vector.broadcast %223 : vector<32x1xf32> to vector<32x256xf32>
    %225 = arith.addf %222, %224 : vector<32x256xf32>
    %cst_91 = arith.constant 0.000000e+00 : f32
    %226 = vector.broadcast %cst_91 : f32 to vector<32x256xf32>
    %227 = arith.maximumf %225, %226 : vector<32x256xf32>
    %228 = arith.addf %227, %36 : vector<32x256xf32>
    %c0_92 = arith.constant 0 : index
    %c0_93 = arith.constant 0 : index
    %c0_94 = arith.constant 0 : index
    %229 = vector.load %arg14[%c0_92, %c0_93, %c0_94] : memref<1x32x256xf32, #tpu.memory_space<vmem>>, vector<1x32x256xf32>
    %230 = vector.shape_cast %229 : vector<1x32x256xf32> to vector<32x256xf32>
    %231 = vector.shape_cast %228 : vector<32x256xf32> to vector<1x32x256xf32>
    tpu.vector_store %arg14[%c0_92, %c0_93, %c0_94], %231 {strides = array<i32>} : memref<1x32x256xf32, #tpu.memory_space<vmem>>, vector<1x32x256xf32>,
    return
  }
  func.func @transform_0(%arg0: i32) -> (i32, i32, i32) {
    %c0_i32 = arith.constant 0 : i32
    %c0_i32_0 = arith.constant 0 : i32
    %c0_i32_1 = arith.constant 0 : i32
    return %arg0, %c0_i32, %c0_i32_0 : i32, i32, i32
  }
  func.func @transform_1(%arg0: i32) -> (i32, i32, i32) {
    %c0_i32 = arith.constant 0 : i32
    %c0_i32_0 = arith.constant 0 : i32
    %c0_i32_1 = arith.constant 0 : i32
    return %arg0, %c0_i32, %c0_i32_0 : i32, i32, i32
  }
  func.func @transform_2(%arg0: i32) -> (i32, i32) {
    %c0_i32 = arith.constant 0 : i32
    %c0_i32_0 = arith.constant 0 : i32
    %c0_i32_1 = arith.constant 0 : i32
    return %c0_i32, %c0_i32_0 : i32, i32
  }
  func.func @transform_3(%arg0: i32) -> (i32, i32) {
    %c0_i32 = arith.constant 0 : i32
    %c0_i32_0 = arith.constant 0 : i32
    %c0_i32_1 = arith.constant 0 : i32
    return %c0_i32, %c0_i32_0 : i32, i32
  }
  func.func @transform_4(%arg0: i32) -> (i32, i32) {
    %c0_i32 = arith.constant 0 : i32
    %c0_i32_0 = arith.constant 0 : i32
    %c0_i32_1 = arith.constant 0 : i32
    return %c0_i32, %c0_i32_0 : i32, i32
  }
  func.func @transform_5(%arg0: i32) -> (i32, i32) {
    %c0_i32 = arith.constant 0 : i32
    %c0_i32_0 = arith.constant 0 : i32
    %c0_i32_1 = arith.constant 0 : i32
    return %c0_i32, %c0_i32_0 : i32, i32
  }
  func.func @transform_6(%arg0: i32) -> (i32, i32) {
    %c0_i32 = arith.constant 0 : i32
    %c0_i32_0 = arith.constant 0 : i32
    %c0_i32_1 = arith.constant 0 : i32
    return %c0_i32, %c0_i32_0 : i32, i32
  }
  func.func @transform_7(%arg0: i32) -> (i32, i32) {
    %c0_i32 = arith.constant 0 : i32
    %c0_i32_0 = arith.constant 0 : i32
    %c0_i32_1 = arith.constant 0 : i32
    return %c0_i32, %c0_i32_0 : i32, i32
  }
  func.func @transform_8(%arg0: i32) -> (i32, i32) {
    %c0_i32 = arith.constant 0 : i32
    %c0_i32_0 = arith.constant 0 : i32
    %c0_i32_1 = arith.constant 0 : i32
    return %c0_i32, %c0_i32_0 : i32, i32
  }
  func.func @transform_9(%arg0: i32) -> (i32, i32) {
    %c0_i32 = arith.constant 0 : i32
    %c0_i32_0 = arith.constant 0 : i32
    %c0_i32_1 = arith.constant 0 : i32
    return %c0_i32, %c0_i32_0 : i32, i32
  }
  func.func @transform_10(%arg0: i32) -> (i32, i32) {
    %c0_i32 = arith.constant 0 : i32
    %c0_i32_0 = arith.constant 0 : i32
    %c0_i32_1 = arith.constant 0 : i32
    return %c0_i32, %c0_i32_0 : i32, i32
  }
  func.func @transform_11(%arg0: i32) -> (i32, i32) {
    %c0_i32 = arith.constant 0 : i32
    %c0_i32_0 = arith.constant 0 : i32
    %c0_i32_1 = arith.constant 0 : i32
    return %c0_i32, %c0_i32_0 : i32, i32
  }
  func.func @transform_12(%arg0: i32) -> (i32, i32) {
    %c0_i32 = arith.constant 0 : i32
    %c0_i32_0 = arith.constant 0 : i32
    %c0_i32_1 = arith.constant 0 : i32
    return %c0_i32, %c0_i32_0 : i32, i32
  }
  func.func @transform_13(%arg0: i32) -> (i32, i32, i32) {
    %c0_i32 = arith.constant 0 : i32
    %c0_i32_0 = arith.constant 0 : i32
    %c0_i32_1 = arith.constant 0 : i32
    return %arg0, %c0_i32, %c0_i32_0 : i32, i32, i32
  }
}

</mosaic_0001>

<llo_original>
// kernel: fcm_forward.1
$region0: #{fcm_forward.1}
  #allocation0 [shape = 'u32[]', space=smem, size = 0x4, offset = 0x4, fixed_abs, tag = 'smem constant byte address 0x4 - core index']
  #allocation1 [shape = 'u32[144,128]{1,0:T(1,128)}', space=vmem, size = 0x12000, scoped, tag = 'internal scratch']
  #allocation2 [shape = 'f32[32,290]{1,0:T(8,128)}', space=vmem, size = 0xc000, scoped, tag = 'scratch operand']
  %s0 = inlined_call_operand.vmem [shape: f32[2,32,256], index: 0, kind: input, shape index: {}]
  %s1 = inlined_call_operand.vmem [shape: f32[2,32,256], index: 1, kind: input, shape index: {}]
  %s2 = inlined_call_operand.vmem [shape: f32[32,32], index: 2, kind: input, shape index: {}]
  %s3 = inlined_call_operand.vmem [shape: f32[32,1], index: 3, kind: input, shape index: {}]
  %s4 = inlined_call_operand.vmem [shape: f32[96,96], index: 4, kind: input, shape index: {}]
  %s5 = inlined_call_operand.vmem [shape: f32[64,96], index: 5, kind: input, shape index: {}]
  %s6 = inlined_call_operand.vmem [shape: f32[64,1], index: 6, kind: input, shape index: {}]
  %s7 = inlined_call_operand.vmem [shape: f32[32,9], index: 7, kind: input, shape index: {}]
  %s8 = inlined_call_operand.vmem [shape: f32[32,1], index: 8, kind: input, shape index: {}]
  %s9 = inlined_call_operand.vmem [shape: f32[32,9], index: 9, kind: input, shape index: {}]
  %s10 = inlined_call_operand.vmem [shape: f32[32,1], index: 10, kind: input, shape index: {}]
  %s11 = inlined_call_operand.vmem [shape: f32[32,9], index: 11, kind: input, shape index: {}]
  %s12 = inlined_call_operand.vmem [shape: f32[32,1], index: 12, kind: input, shape index: {}]
  %s13 = inlined_call_operand.vmem [shape: f32[2,32,256], index: 13, kind: output, shape index: {}]
  %s14 = sld [smem:[#allocation0]]
  $region85: #{fcm_forward.1} parent=0
    _
  %s16 = ssub.s32 1, %s14
  %s17 = scalar_select 0, %s16, %s14
  loop: start=0, step=1, limit=4
  $region2: #{fcm_forward.1} parent=0 // loop_pre_header
    _
  $region3: #{fcm_forward.1} parent=0 // loop_header
    %s19 = sphi 0, %s23
    %p20 = scmp.ge.s32.totalorder %s19, 4
    %s29 = sphi 0, %s31
    %s32 = sphi 0, %s29
    %s33 = sphi 0, %s32
    %s49 = sphi 0, %s33
    %s55 = sphi 0, %s57
    %s58 = sphi 0, %s55
    %s59 = sphi 0, %s58
    %s75 = sphi 0, %s59
    %s79 = sphi 0, %s79
    %s81 = sphi 0, %s79
    %s82 = sphi 0, %s81
    %s96 = sphi 0, %s82
    %s100 = sphi 0, %s100
    %s102 = sphi 0, %s100
    %s103 = sphi 0, %s102
    %s117 = sphi 0, %s103
    %s121 = sphi 0, %s121
    %s123 = sphi 0, %s121
    %s124 = sphi 0, %s123
    %s138 = sphi 0, %s124
    %s142 = sphi 0, %s142
    %s144 = sphi 0, %s142
    %s145 = sphi 0, %s144
    %s159 = sphi 0, %s145
    %s163 = sphi 0, %s163
    %s165 = sphi 0, %s163
    %s166 = sphi 0, %s165
    %s180 = sphi 0, %s166
    %s184 = sphi 0, %s184
    %s186 = sphi 0, %s184
    %s187 = sphi 0, %s186
    %s201 = sphi 0, %s187
    %s205 = sphi 0, %s205
    %s207 = sphi 0, %s205
    %s208 = sphi 0, %s207
    %s222 = sphi 0, %s208
    %s226 = sphi 0, %s226
    %s228 = sphi 0, %s226
    %s229 = sphi 0, %s228
    %s243 = sphi 0, %s229
    %s247 = sphi 0, %s247
    %s249 = sphi 0, %s247
    %s250 = sphi 0, %s249
    %s264 = sphi 0, %s250
    %s268 = sphi 0, %s268
    %s270 = sphi 0, %s268
    %s271 = sphi 0, %s270
    %s285 = sphi 0, %s271
    %s289 = sphi 0, %s289
    %s291 = sphi 0, %s289
    %s292 = sphi 0, %s291
    %s306 = sphi 0, %s292
    %s312 = sphi 0, %s314
    %s315 = sphi 0, %s312
    %s316 = sphi 0, %s315
    %s332 = sphi 0, %s316
  $region4: #{fcm_forward.1} parent=0 // loop_header_branch
    %22 = sbr.rel (%p20) target = $region8
  $region5: #{fcm_forward.1} parent=0 // loop_body
    %s24 = ssub.s32 %s19, 1
    %s25 = ssub.s32 %s19, 2
    %s26 = sadd.s32 %s19, 1
    %s27 = ssub.s32 %s19, %s26
    %p28 = scmp.eq.s32.totalorder %s27, 0
    %s30 = sadd.s32 %s29, 1
    %s31 = scalar_select %p28, %s29, %s30
    %p34 = pneg %p28
    %p35 = scmp.eq.s32.totalorder %s19, 1
    %p36 = por %p34, %p35
    %p37 = scmp.ne.s32.totalorder %s29, %s32
    %p38 = scmp.eq.s32.totalorder %s19, 0
    %p39 = por %p37, %p38
    %p40 = scmp.ne.s32.totalorder %s29, %s32
    %p41 = scmp.eq.s32.totalorder %s24, 1
    %p42 = por %p40, %p41
    %p43 = scmp.ne.s32.totalorder %s32, %s33
    %p44 = scmp.eq.s32.totalorder %s24, 0
    %p45 = por %p43, %p44
    %p46 = scmp.ne.s32.totalorder %s32, %s33
    %p47 = scmp.eq.s32.totalorder %s25, 1
    %p48 = por %p46, %p47
    %p50 = scmp.ne.s32.totalorder %s33, %s49
    %p51 = scmp.eq.s32.totalorder %s25, 0
    %p52 = por %p50, %p51
    %s53 = ssub.s32 %s19, %s26
    %p54 = scmp.eq.s32.totalorder %s53, 0
    %s56 = sadd.s32 %s55, 1
    %s57 = scalar_select %p54, %s55, %s56
    %p60 = pneg %p54
    %p61 = scmp.eq.s32.totalorder %s19, 1
    %p62 = por %p60, %p61
    %p63 = scmp.ne.s32.totalorder %s55, %s58
    %p64 = scmp.eq.s32.totalorder %s19, 0
    %p65 = por %p63, %p64
    %p66 = scmp.ne.s32.totalorder %s55, %s58
    %p67 = scmp.eq.s32.totalorder %s24, 1
    %p68 = por %p66, %p67
    %p69 = scmp.ne.s32.totalorder %s58, %s59
    %p70 = scmp.eq.s32.totalorder %s24, 0
    %p71 = por %p69, %p70
    %p72 = scmp.ne.s32.totalorder %s58, %s59
    %p73 = scmp.eq.s32.totalorder %s25, 1
    %p74 = por %p72, %p73
    %p76 = scmp.ne.s32.totalorder %s59, %s75
    %p77 = scmp.eq.s32.totalorder %s25, 0
    %p78 = por %p76, %p77
    %s80 = sadd.s32 %s79, 1
    %p83 = scmp.eq.s32.totalorder %s19, 1
    %p84 = scmp.ne.s32.totalorder %s79, %s81
    %p85 = scmp.eq.s32.totalorder %s19, 0
    %p86 = por %p84, %p85
    %p87 = scmp.ne.s32.totalorder %s79, %s81
    %p88 = scmp.eq.s32.totalorder %s24, 1
    %p89 = por %p87, %p88
    %p90 = scmp.ne.s32.totalorder %s81, %s82
    %p91 = scmp.eq.s32.totalorder %s24, 0
    %p92 = por %p90, %p91
    %p93 = scmp.ne.s32.totalorder %s81, %s82
    %p94 = scmp.eq.s32.totalorder %s25, 1
    %p95 = por %p93, %p94
    %p97 = scmp.ne.s32.totalorder %s82, %s96
    %p98 = scmp.eq.s32.totalorder %s25, 0
    %p99 = por %p97, %p98
    %s101 = sadd.s32 %s100, 1
    %p104 = scmp.eq.s32.totalorder %s19, 1
    %p105 = scmp.ne.s32.totalorder %s100, %s102
    %p106 = scmp.eq.s32.totalorder %s19, 0
    %p107 = por %p105, %p106
    %p108 = scmp.ne.s32.totalorder %s100, %s102
    %p109 = scmp.eq.s32.totalorder %s24, 1
    %p110 = por %p108, %p109
    %p111 = scmp.ne.s32.totalorder %s102, %s103
    %p112 = scmp.eq.s32.totalorder %s24, 0
    %p113 = por %p111, %p112
    %p114 = scmp.ne.s32.totalorder %s102, %s103
    %p115 = scmp.eq.s32.totalorder %s25, 1
    %p116 = por %p114, %p115
    %p118 = scmp.ne.s32.totalorder %s103, %s117
    %p119 = scmp.eq.s32.totalorder %s25, 0
    %p120 = por %p118, %p119
    %s122 = sadd.s32 %s121, 1
    %p125 = scmp.eq.s32.totalorder %s19, 1
    %p126 = scmp.ne.s32.totalorder %s121, %s123
    %p127 = scmp.eq.s32.totalorder %s19, 0
    %p128 = por %p126, %p127
    %p129 = scmp.ne.s32.totalorder %s121, %s123
    %p130 = scmp.eq.s32.totalorder %s24, 1
    %p131 = por %p129, %p130
    %p132 = scmp.ne.s32.totalorder %s123, %s124
    %p133 = scmp.eq.s32.totalorder %s24, 0
    %p134 = por %p132, %p133
    %p135 = scmp.ne.s32.totalorder %s123, %s124
    %p136 = scmp.eq.s32.totalorder %s25, 1
    %p137 = por %p135, %p136
    %p139 = scmp.ne.s32.totalorder %s124, %s138
    %p140 = scmp.eq.s32.totalorder %s25, 0
    %p141 = por %p139, %p140
    %s143 = sadd.s32 %s142, 1
    %p146 = scmp.eq.s32.totalorder %s19, 1
    %p147 = scmp.ne.s32.totalorder %s142, %s144
    %p148 = scmp.eq.s32.totalorder %s19, 0
    %p149 = por %p147, %p148
    %p150 = scmp.ne.s32.totalorder %s142, %s144
    %p151 = scmp.eq.s32.totalorder %s24, 1
    %p152 = por %p150, %p151
    %p153 = scmp.ne.s32.totalorder %s144, %s145
    %p154 = scmp.eq.s32.totalorder %s24, 0
    %p155 = por %p153, %p154
    %p156 = scmp.ne.s32.totalorder %s144, %s145
    %p157 = scmp.eq.s32.totalorder %s25, 1
    %p158 = por %p156, %p157
    %p160 = scmp.ne.s32.totalorder %s145, %s159
    %p161 = scmp.eq.s32.totalorder %s25, 0
    %p162 = por %p160, %p161
    %s164 = sadd.s32 %s163, 1
    %p167 = scmp.eq.s32.totalorder %s19, 1
    %p168 = scmp.ne.s32.totalorder %s163, %s165
    %p169 = scmp.eq.s32.totalorder %s19, 0
    %p170 = por %p168, %p169
    %p171 = scmp.ne.s32.totalorder %s163, %s165
    %p172 = scmp.eq.s32.totalorder %s24, 1
    %p173 = por %p171, %p172
    %p174 = scmp.ne.s32.totalorder %s165, %s166
    %p175 = scmp.eq.s32.totalorder %s24, 0
    %p176 = por %p174, %p175
    %p177 = scmp.ne.s32.totalorder %s165, %s166
    %p178 = scmp.eq.s32.totalorder %s25, 1
    %p179 = por %p177, %p178
    %p181 = scmp.ne.s32.totalorder %s166, %s180
    %p182 = scmp.eq.s32.totalorder %s25, 0
    %p183 = por %p181, %p182
    %s185 = sadd.s32 %s184, 1
    %p188 = scmp.eq.s32.totalorder %s19, 1
    %p189 = scmp.ne.s32.totalorder %s184, %s186
    %p190 = scmp.eq.s32.totalorder %s19, 0
    %p191 = por %p189, %p190
    %p192 = scmp.ne.s32.totalorder %s184, %s186
    %p193 = scmp.eq.s32.totalorder %s24, 1
    %p194 = por %p192, %p193
    %p195 = scmp.ne.s32.totalorder %s186, %s187
    %p196 = scmp.eq.s32.totalorder %s24, 0
    %p197 = por %p195, %p196
    %p198 = scmp.ne.s32.totalorder %s186, %s187
    %p199 = scmp.eq.s32.totalorder %s25, 1
    %p200 = por %p198, %p199
    %p202 = scmp.ne.s32.totalorder %s187, %s201
    %p203 = scmp.eq.s32.totalorder %s25, 0
    %p204 = por %p202, %p203
    %s206 = sadd.s32 %s205, 1
    %p209 = scmp.eq.s32.totalorder %s19, 1
    %p210 = scmp.ne.s32.totalorder %s205, %s207
    %p211 = scmp.eq.s32.totalorder %s19, 0
    %p212 = por %p210, %p211
    %p213 = scmp.ne.s32.totalorder %s205, %s207
    %p214 = scmp.eq.s32.totalorder %s24, 1
    %p215 = por %p213, %p214
    %p216 = scmp.ne.s32.totalorder %s207, %s208
    %p217 = scmp.eq.s32.totalorder %s24, 0
    %p218 = por %p216, %p217
    %p219 = scmp.ne.s32.totalorder %s207, %s208
    %p220 = scmp.eq.s32.totalorder %s25, 1
    %p221 = por %p219, %p220
    %p223 = scmp.ne.s32.totalorder %s208, %s222
    %p224 = scmp.eq.s32.totalorder %s25, 0
    %p225 = por %p223, %p224
    %s227 = sadd.s32 %s226, 1
    %p230 = scmp.eq.s32.totalorder %s19, 1
    %p231 = scmp.ne.s32.totalorder %s226, %s228
    %p232 = scmp.eq.s32.totalorder %s19, 0
    %p233 = por %p231, %p232
    %p234 = scmp.ne.s32.totalorder %s226, %s228
    %p235 = scmp.eq.s32.totalorder %s24, 1
    %p236 = por %p234, %p235
    %p237 = scmp.ne.s32.totalorder %s228, %s229
    %p238 = scmp.eq.s32.totalorder %s24, 0
    %p239 = por %p237, %p238
    %p240 = scmp.ne.s32.totalorder %s228, %s229
    %p241 = scmp.eq.s32.totalorder %s25, 1
    %p242 = por %p240, %p241
    %p244 = scmp.ne.s32.totalorder %s229, %s243
    %p245 = scmp.eq.s32.totalorder %s25, 0
    %p246 = por %p244, %p245
    %s248 = sadd.s32 %s247, 1
    %p251 = scmp.eq.s32.totalorder %s19, 1
    %p252 = scmp.ne.s32.totalorder %s247, %s249
    %p253 = scmp.eq.s32.totalorder %s19, 0
    %p254 = por %p252, %p253
    %p255 = scmp.ne.s32.totalorder %s247, %s249
    %p256 = scmp.eq.s32.totalorder %s24, 1
    %p257 = por %p255, %p256
    %p258 = scmp.ne.s32.totalorder %s249, %s250
    %p259 = scmp.eq.s32.totalorder %s24, 0
    %p260 = por %p258, %p259
    %p261 = scmp.ne.s32.totalorder %s249, %s250
    %p262 = scmp.eq.s32.totalorder %s25, 1
    %p263 = por %p261, %p262
    %p265 = scmp.ne.s32.totalorder %s250, %s264
    %p266 = scmp.eq.s32.totalorder %s25, 0
    %p267 = por %p265, %p266
    %s269 = sadd.s32 %s268, 1
    %p272 = scmp.eq.s32.totalorder %s19, 1
    %p273 = scmp.ne.s32.totalorder %s268, %s270
    %p274 = scmp.eq.s32.totalorder %s19, 0
    %p275 = por %p273, %p274
    %p276 = scmp.ne.s32.totalorder %s268, %s270
    %p277 = scmp.eq.s32.totalorder %s24, 1
    %p278 = por %p276, %p277
    %p279 = scmp.ne.s32.totalorder %s270, %s271
    %p280 = scmp.eq.s32.totalorder %s24, 0
    %p281 = por %p279, %p280
    %p282 = scmp.ne.s32.totalorder %s270, %s271
    %p283 = scmp.eq.s32.totalorder %s25, 1
    %p284 = por %p282, %p283
    %p286 = scmp.ne.s32.totalorder %s271, %s285
    %p287 = scmp.eq.s32.totalorder %s25, 0
    %p288 = por %p286, %p287
    %s290 = sadd.s32 %s289, 1
    %p293 = scmp.eq.s32.totalorder %s19, 1
    %p294 = scmp.ne.s32.totalorder %s289, %s291
    %p295 = scmp.eq.s32.totalorder %s19, 0
    %p296 = por %p294, %p295
    %p297 = scmp.ne.s32.totalorder %s289, %s291
    %p298 = scmp.eq.s32.totalorder %s24, 1
    %p299 = por %p297, %p298
    %p300 = scmp.ne.s32.totalorder %s291, %s292
    %p301 = scmp.eq.s32.totalorder %s24, 0
    %p302 = por %p300, %p301
    %p303 = scmp.ne.s32.totalorder %s291, %s292
    %p304 = scmp.eq.s32.totalorder %s25, 1
    %p305 = por %p303, %p304
    %p307 = scmp.ne.s32.totalorder %s292, %s306
    %p308 = scmp.eq.s32.totalorder %s25, 0
    %p309 = por %p307, %p308
    %s310 = ssub.s32 %s19, %s26
    %p311 = scmp.eq.s32.totalorder %s310, 0
    %s313 = sadd.s32 %s312, 1
    %s314 = scalar_select %p311, %s312, %s313
    %p317 = pneg %p311
    %p318 = scmp.eq.s32.totalorder %s19, 1
    %p319 = por %p317, %p318
    %p320 = scmp.ne.s32.totalorder %s312, %s315
    %p321 = scmp.eq.s32.totalorder %s19, 0
    %p322 = por %p320, %p321
    %p323 = scmp.ne.s32.totalorder %s312, %s315
    %p324 = scmp.eq.s32.totalorder %s24, 1
    %p325 = por %p323, %p324
    %p326 = scmp.ne.s32.totalorder %s315, %s316
    %p327 = scmp.eq.s32.totalorder %s24, 0
    %p328 = por %p326, %p327
    %p329 = scmp.ne.s32.totalorder %s315, %s316
    %p330 = scmp.eq.s32.totalorder %s25, 1
    %p331 = por %p329, %p330
    %p333 = scmp.ne.s32.totalorder %s316, %s332
    %p334 = scmp.eq.s32.totalorder %s25, 0
    %p335 = por %p333, %p334
    %p336 = scmp.le.s32.totalorder 1, %s19
    %p337 = scmp.lt.s32.totalorder %s19, 3
    %p338 = pnand %p336, %p337
    %p339 = pneg %p338
    // Predicated region
    $region9: #{fcm_forward.1} parent=5 // pred_check
      _
    $region10: #{fcm_forward.1} parent=5 // pred_check_branch
      %341 = sbr.rel (%p338) target = $region12
    $region11: #{fcm_forward.1} parent=5 // pred_region
      %s342 = ssub.s32 %s19, 1
      // Predicated region
      $region13: #{fcm_forward.1} parent=11 // pred_check
        %p343 = pneg %p92
      $region14: #{fcm_forward.1} parent=11 // pred_check_branch
        %345 = sbr.rel (%p343) target = $region16
      $region15: #{fcm_forward.1} parent=11 // pred_region
        _
      $region16: #{fcm_forward.1} parent=11 // pred_fallthru
        _
      // Predicated region
      $region17: #{fcm_forward.1} parent=11 // pred_check
        %p346 = pneg %p113
      $region18: #{fcm_forward.1} parent=11 // pred_check_branch
        %348 = sbr.rel (%p346) target = $region20
      $region19: #{fcm_forward.1} parent=11 // pred_region
        _
      $region20: #{fcm_forward.1} parent=11 // pred_fallthru
        _
      // Predicated region
      $region21: #{fcm_forward.1} parent=11 // pred_check
        %p349 = pneg %p134
      $region22: #{fcm_forward.1} parent=11 // pred_check_branch
        %351 = sbr.rel (%p349) target = $region24
      $region23: #{fcm_forward.1} parent=11 // pred_region
        _
      $region24: #{fcm_forward.1} parent=11 // pred_fallthru
        _
      // Predicated region
      $region25: #{fcm_forward.1} parent=11 // pred_check
        %p352 = pneg %p155
      $region26: #{fcm_forward.1} parent=11 // pred_check_branch
        %354 = sbr.rel (%p352) target = $region28
      $region27: #{fcm_forward.1} parent=11 // pred_region
        _
      $region28: #{fcm_forward.1} parent=11 // pred_fallthru
        _
      // Predicated region
      $region29: #{fcm_forward.1} parent=11 // pred_check
        %p355 = pneg %p176
      $region30: #{fcm_forward.1} parent=11 // pred_check_branch
        %357 = sbr.rel (%p355) target = $region32
      $region31: #{fcm_forward.1} parent=11 // pred_region
        _
      $region32: #{fcm_forward.1} parent=11 // pred_fallthru
        _
      // Predicated region
      $region33: #{fcm_forward.1} parent=11 // pred_check
        %p358 = pneg %p197
      $region34: #{fcm_forward.1} parent=11 // pred_check_branch
        %360 = sbr.rel (%p358) target = $region36
      $region35: #{fcm_forward.1} parent=11 // pred_region
        _
      $region36: #{fcm_forward.1} parent=11 // pred_fallthru
        _
      // Predicated region
      $region37: #{fcm_forward.1} parent=11 // pred_check
        %p361 = pneg %p218
      $region38: #{fcm_forward.1} parent=11 // pred_check_branch
        %363 = sbr.rel (%p361) target = $region40
      $region39: #{fcm_forward.1} parent=11 // pred_region
        _
      $region40: #{fcm_forward.1} parent=11 // pred_fallthru
        _
      // Predicated region
      $region41: #{fcm_forward.1} parent=11 // pred_check
        %p364 = pneg %p239
      $region42: #{fcm_forward.1} parent=11 // pred_check_branch
        %366 = sbr.rel (%p364) target = $region44
      $region43: #{fcm_forward.1} parent=11 // pred_region
        _
      $region44: #{fcm_forward.1} parent=11 // pred_fallthru
        _
      // Predicated region
      $region45: #{fcm_forward.1} parent=11 // pred_check
        %p367 = pneg %p260
      $region46: #{fcm_forward.1} parent=11 // pred_check_branch
        %369 = sbr.rel (%p367) target = $region48
      $region47: #{fcm_forward.1} parent=11 // pred_region
        _
      $region48: #{fcm_forward.1} parent=11 // pred_fallthru
        _
      // Predicated region
      $region49: #{fcm_forward.1} parent=11 // pred_check
        %p370 = pneg %p281
      $region50: #{fcm_forward.1} parent=11 // pred_check_branch
        %372 = sbr.rel (%p370) target = $region52
      $region51: #{fcm_forward.1} parent=11 // pred_region
        _
      $region52: #{fcm_forward.1} parent=11 // pred_fallthru
        _
      // Predicated region
      $region53: #{fcm_forward.1} parent=11 // pred_check
        %p373 = pneg %p302
      $region54: #{fcm_forward.1} parent=11 // pred_check_branch
        %375 = sbr.rel (%p373) target = $region56
      $region55: #{fcm_forward.1} parent=11 // pred_region
        _
      $region56: #{fcm_forward.1} parent=11 // pred_fallthru
        _
    $region12: #{fcm_forward.1} parent=5 // pred_fallthru
      _
    %p376 = scmp.lt.s32.totalorder %s19, 2
    // Predicated region
    $region57: #{fcm_forward.1} parent=5 // pred_check
      %p377 = pneg %p376
    $region58: #{fcm_forward.1} parent=5 // pred_check_branch
      %379 = sbr.rel (%p377) target = $region60
    $region59: #{fcm_forward.1} parent=5 // pred_region
      // Predicated region
      $region61: #{fcm_forward.1} parent=59 // pred_check
        %p380 = pneg %p39
      $region62: #{fcm_forward.1} parent=59 // pred_check_branch
        %382 = sbr.rel (%p380) target = $region64
      $region63: #{fcm_forward.1} parent=59 // pred_region
        %p383 = scmp.lt.s32.totalorder %s19, 1
        %s384 = scalar_select %p383, %s19, 1
        %s385 = smul.addr %s384, 8
        %s386 = smul.addr %s385, 8
        %s387 = scalar_lea.vmem %s0, %s386
      $region64: #{fcm_forward.1} parent=59 // pred_fallthru
        _
      // Predicated region
      $region65: #{fcm_forward.1} parent=59 // pred_check
        %p388 = pneg %p65
      $region66: #{fcm_forward.1} parent=59 // pred_check_branch
        %390 = sbr.rel (%p388) target = $region68
      $region67: #{fcm_forward.1} parent=59 // pred_region
        %p391 = scmp.lt.s32.totalorder %s19, 1
        %s392 = scalar_select %p391, %s19, 1
        %s393 = smul.addr %s392, 8
        %s394 = smul.addr %s393, 8
        %s395 = scalar_lea.vmem %s1, %s394
      $region68: #{fcm_forward.1} parent=59 // pred_fallthru
        _
    $region60: #{fcm_forward.1} parent=5 // pred_fallthru
      _
    %p396 = scmp.le.s32.totalorder 1, %s19
    %p397 = scmp.lt.s32.totalorder %s19, 3
    %p398 = pnand %p396, %p397
    %p399 = pneg %p398
    // Predicated region
    $region69: #{fcm_forward.1} parent=5 // pred_check
      _
    $region70: #{fcm_forward.1} parent=5 // pred_check_branch
      %401 = sbr.rel (%p398) target = $region72
    $region71: #{fcm_forward.1} parent=5 // pred_region
      %s402 = ssub.s32 %s19, 1
      %p403 = scmp.lt.s32.totalorder %s24, 1
      %s404 = scalar_select %p403, %s24, 1
      %s405 = smul.addr %s404, 8
      %s406 = smul.addr %s405, 8
      %s407 = scalar_lea.vmem %s0, %s406
      %p408 = pneg %p45
      %p409 = pneg %p42
      %p410 = scmp.lt.s32.totalorder %s24, 1
      %s411 = scalar_select %p410, %s24, 1
      %s412 = smul.addr %s411, 8
      %s413 = smul.addr %s412, 8
      %s414 = scalar_lea.vmem %s1, %s413
      %p415 = pneg %p71
      %p416 = pneg %p68
      %p417 = pneg %p92
      %p418 = pneg %p89
      %p419 = pneg %p113
      %p420 = pneg %p110
      %p421 = pneg %p134
      %p422 = pneg %p131
      %p423 = pneg %p155
      %p424 = pneg %p152
      %p425 = pneg %p176
      %p426 = pneg %p173
      %p427 = pneg %p197
      %p428 = pneg %p194
      %p429 = pneg %p218
      %p430 = pneg %p215
      %p431 = pneg %p239
      %p432 = pneg %p236
      %p433 = pneg %p260
      %p434 = pneg %p257
      %p435 = pneg %p281
      %p436 = pneg %p278
      %p437 = pneg %p302
      %p438 = pneg %p299
      %p439 = pneg %p328
      %p440 = pneg %p325
      %p441 = scmp.lt.s32.totalorder %s24, 1
      %s442 = scalar_select %p441, %s24, 1
      %s443 = smul.addr %s442, 8
      %s444 = smul.addr %s443, 8
      %s445 = scalar_lea.vmem %s13, %s444
      %p446 = scmp.lt.s32.totalorder %s24, 1
      %s447 = scalar_select %p446, %s24, 1
      %s448 = smul.addr %s447, 8
      %s449 = smul.addr %s448, 8
      %s450 = scalar_lea.vmem %s0, %s449
      %p451 = scmp.lt.s32.totalorder %s24, 1
      %s452 = scalar_select %p451, %s24, 1
      %s453 = smul.addr %s452, 8
      %s454 = smul.addr %s453, 8
      %s455 = scalar_lea.vmem %s1, %s454
      %p456 = scmp.lt.s32.totalorder %s24, 1
      %s457 = scalar_select %p456, %s24, 1
      %s458 = smul.addr %s457, 8
      %s459 = smul.addr %s458, 8
      %s460 = scalar_lea.vmem %s13, %s459
      %v461 = vld [vmem:[%s450] sm:$0xff]
      %v462 = vld [vmem:[%s450 + $0x8] sm:$0xff]
      %v463 = vld [vmem:[%s450 + $0x10] sm:$0xff]
      %v464 = vld [vmem:[%s450 + $0x18] sm:$0xff]
      %v465 = vld [vmem:[%s450 + $0x20] sm:$0xff]
      %v466 = vld [vmem:[%s450 + $0x28] sm:$0xff]
      %v467 = vld [vmem:[%s450 + $0x30] sm:$0xff]
      %v468 = vld [vmem:[%s450 + $0x38] sm:$0xff]
      %v469 = vld [vmem:[%s455] sm:$0xff]
      %v470 = vld [vmem:[%s455 + $0x8] sm:$0xff]
      %v471 = vld [vmem:[%s455 + $0x10] sm:$0xff]
      %v472 = vld [vmem:[%s455 + $0x18] sm:$0xff]
      %v473 = vld [vmem:[%s455 + $0x20] sm:$0xff]
      %v474 = vld [vmem:[%s455 + $0x28] sm:$0xff]
      %v475 = vld [vmem:[%s455 + $0x30] sm:$0xff]
      %v476 = vld [vmem:[%s455 + $0x38] sm:$0xff]
      %v477 = vadd.f32 %v461, %v462
      %478 = vadd.xlane.f32.xlu0 %v477
      %v479 = vpop.xlane.xlu0 %478
      %v480 = vadd.f32 %v463, %v464
      %481 = vadd.xlane.f32.xlu0 %v480
      %v482 = vpop.xlane.xlu0 %481
      %v483 = vadd.f32 %v465, %v466
      %484 = vadd.xlane.f32.xlu0 %v483
      %v485 = vpop.xlane.xlu0 %484
      %v486 = vadd.f32 %v467, %v468
      %487 = vadd.xlane.f32.xlu0 %v486
      %v488 = vpop.xlane.xlu0 %487
      %v489 = vrcp.pop 256.0
      %v490 = vmul.f32 %v479, %v489
      %v491 = vmul.f32 %v482, %v489
      %v492 = vmul.f32 %v485, %v489
      %v493 = vmul.f32 %v488, %v489
      %v494 = vadd.f32 %v469, %v470
      %495 = vadd.xlane.f32.xlu0 %v494
      %v496 = vpop.xlane.xlu0 %495
      %v497 = vadd.f32 %v471, %v472
      %498 = vadd.xlane.f32.xlu0 %v497
      %v499 = vpop.xlane.xlu0 %498
      %v500 = vadd.f32 %v473, %v474
      %501 = vadd.xlane.f32.xlu0 %v500
      %v502 = vpop.xlane.xlu0 %501
      %v503 = vadd.f32 %v475, %v476
      %504 = vadd.xlane.f32.xlu0 %v503
      %v505 = vpop.xlane.xlu0 %504
      %v506 = vmul.f32 %v496, %v489
      %v507 = vmul.f32 %v499, %v489
      %v508 = vmul.f32 %v502, %v489
      %v509 = vmul.f32 %v505, %v489
      %vm510 = vcmask 7168
      %v511 = vsel %vm510, %v490, %v506
      %v512 = vsel %vm510, %v491, %v507
      %v513 = vsel %vm510, %v492, %v508
      %v514 = vsel %vm510, %v493, %v509
      %v515 = vld [vmem:[%s2] sm:$0xff]
      %v516 = vld [vmem:[%s2 + $0x8] sm:$0xff]
      %v517 = vld [vmem:[%s2 + $0x10] sm:$0xff]
      %v518 = vld [vmem:[%s2 + $0x18] sm:$0xff]
      %v519 = vld [vmem:[%s3] sm:$0xff]
      %v520 = vld [vmem:[%s3 + $0x8] sm:$0xff]
      %v521 = vld [vmem:[%s3 + $0x10] sm:$0xff]
      %v522 = vld [vmem:[%s3 + $0x18] sm:$0xff]
      %524 = vset.pattern.permute.xlu0 0
      %525 = vperm.xlu0 %524, %v519
      %v526 = vpop.permute.xlu0 %525
      %529 = vset.pattern.permute.xlu0 0
      %530 = vperm.xlu0 %529, %v520
      %v531 = vpop.permute.xlu0 %530
      %534 = vset.pattern.permute.xlu0 0
      %535 = vperm.xlu0 %534, %v521
      %v536 = vpop.permute.xlu0 %535
      %539 = vset.pattern.permute.xlu0 0
      %540 = vperm.xlu0 %539, %v522
      %v541 = vpop.permute.xlu0 %540
      %vm543 = vcmask 261120
      %v545 = vsel %vm543, %v515, 0
      %v548 = vsel %vm543, %v516, 0
      %v551 = vsel %vm543, %v517, 0
      %v554 = vsel %vm543, %v518, 0
      %556 = vmatprep.subr.mxu0 0.0
      %v557 = vand.u32 %v511, 4294901760
      %558 = vmatpush1.msra.mxu0 %v557
      %559 = vmatprep.subr.mxu0 0.0
      %v560 = vand.u32 %v512, 4294901760
      %561 = vmatpush1.msra.mxu0 %v560
      %562 = vmatprep.subr.mxu0 0.0
      %v563 = vand.u32 %v513, 4294901760
      %564 = vmatpush1.msra.mxu0 %v563
      %565 = vmatprep.subr.mxu0 0.0
      %v566 = vand.u32 %v514, 4294901760
      %567 = vmatpush1.msra.mxu0 %v566
      %568 = vmatprep.subr.mxu0 0.0
      %569 = vmatpush1.msra.mxu0 0.0
      %570 = vmatprep.subr.mxu0 0.0
      %571 = vmatpush1.msra.mxu0 0.0
      %572 = vmatprep.subr.mxu0 0.0
      %573 = vmatpush1.msra.mxu0 0.0
      %574 = vmatprep.subr.mxu0 0.0
      %575 = vmatpush1.msra.mxu0 0.0
      %576 = vmatprep.subr.mxu0 0.0
      %577 = vmatpush1.msra.mxu0 0.0
      %578 = vmatprep.subr.mxu0 0.0
      %579 = vmatpush1.msra.mxu0 0.0
      %580 = vmatprep.subr.mxu0 0.0
      %581 = vmatpush1.msra.mxu0 0.0
      %582 = vmatprep.subr.mxu0 0.0
      %583 = vmatpush1.msra.mxu0 0.0
      %584 = vmatprep.subr.mxu0 0.0
      %585 = vmatpush1.msra.mxu0 0.0
      %586 = vmatprep.subr.mxu0 0.0
      %587 = vmatpush1.msra.mxu0 0.0
      %588 = vmatprep.subr.mxu0 0.0
      %589 = vmatpush1.msra.mxu0 0.0
      %590 = vmatprep.subr.mxu0 0.0
      %591 = vmatpush1.msra.mxu0 0.0
      %592 = vmatprep.subr.mxu0 0.0
      %593 = vmatpush1.msra.mxu0 0.0
      %594 = vmatprep.subr.mxu0 0.0
      %595 = vmatpush1.msra.mxu0 0.0
      %596 = vmatprep.subr.mxu0 0.0
      %597 = vmatpush1.msra.mxu0 0.0
      %598 = vmatprep.subr.mxu0 0.0
      %599 = vmatpush1.msra.mxu0 0.0
      %600 = vmatprep.subr.mxu0 0.0
      %601 = vmatpush1.msra.mxu0 0.0
      %602 = vmatprep.subr.mxu0 0.0
      %603 = vmatpush1.msra.mxu0 0.0
      %604 = vmatprep.subr.mxu0 0.0
      %605 = vmatpush1.msra.mxu0 0.0
      %606 = vmatprep.subr.mxu0 0.0
      %607 = vmatpush1.msra.mxu0 0.0
      %608 = vmatprep.subr.mxu0 0.0
      %609 = vmatpush1.msra.mxu0 0.0
      %610 = vmatprep.subr.mxu0 0.0
      %611 = vmatpush1.msra.mxu0 0.0
      %612 = vmatprep.subr.mxu0 0.0
      %613 = vmatpush1.msra.mxu0 0.0
      %614 = vmatprep.subr.mxu0 0.0
      %615 = vmatpush1.msra.mxu0 0.0
      %616 = vmatprep.subr.mxu0 0.0
      %617 = vmatpush1.msra.mxu0 0.0
      %618 = vmatprep.subr.mxu0 0.0
      %619 = vmatpush1.msra.mxu0 0.0
      %620 = vmatprep.subr.mxu0 0.0
      %621 = vmatpush1.msra.mxu0 0.0
      %622 = vmatprep.subr.mxu0 0.0
      %623 = vmatpush1.msra.mxu0 0.0
      %624 = vmatprep.mubr.f32.mxu0 0.0
      %v625 = vand.u32 %v545, 4294901760
      %v626 = vsub.f32 %v545, %v625
      %v627 = vand.u32 %v626, 4294901760
      %v628 = vsub.f32 %v626, %v627
      %v629 = vand.u32 %v628, 4294901760
      %630 = vmatmul.mubr.f32.gmra.mrb[0].mxu0 %v629
      %v631 = vpop.f32.mrb[0].mxu0
      %v632 = vadd.f32 %v526, %v631
      %v633 = vpop.f32.mrb[0].mxu0
      %634 = vmatprep.mubr.f32.mxu0 0.0
      %v635 = vand.u32 %v548, 4294901760
      %v636 = vsub.f32 %v548, %v635
      %v637 = vand.u32 %v636, 4294901760
      %v638 = vsub.f32 %v636, %v637
      %v639 = vand.u32 %v638, 4294901760
      %640 = vmatmul.mubr.f32.gmra.mrb[0].mxu0 %v639
      %v641 = vpop.f32.mrb[0].mxu0
      %v642 = vadd.f32 %v531, %v641
      %v643 = vpop.f32.mrb[0].mxu0
      %644 = vmatprep.mubr.f32.mxu0 0.0
      %v645 = vand.u32 %v551, 4294901760
      %v646 = vsub.f32 %v551, %v645
      %v647 = vand.u32 %v646, 4294901760
      %v648 = vsub.f32 %v646, %v647
      %v649 = vand.u32 %v648, 4294901760
      %650 = vmatmul.mubr.f32.gmra.mrb[0].mxu0 %v649
      %v651 = vpop.f32.mrb[0].mxu0
      %v652 = vadd.f32 %v536, %v651
      %v653 = vpop.f32.mrb[0].mxu0
      %654 = vmatprep.mubr.f32.mxu0 0.0
      %v655 = vand.u32 %v554, 4294901760
      %v656 = vsub.f32 %v554, %v655
      %v657 = vand.u32 %v656, 4294901760
      %v658 = vsub.f32 %v656, %v657
      %v659 = vand.u32 %v658, 4294901760
      %660 = vmatmul.mubr.f32.gmra.mrb[0].mxu0 %v659
      %v661 = vpop.f32.mrb[0].mxu0
      %v662 = vadd.f32 %v541, %v661
      %v663 = vpop.f32.mrb[0].mxu0
      %664 = vdwg.mxu0
      %665 = vmatprep.subr.mxu0 0.0
      %v666 = vand.u32 %v511, 4294901760
      %v667 = vsub.f32 %v511, %v666
      %v668 = vand.u32 %v667, 4294901760
      %v669 = vsub.f32 %v667, %v668
      %v670 = vand.u32 %v669, 4294901760
      %671 = vmatpush1.msra.mxu0 %v670
      %672 = vmatprep.subr.mxu0 0.0
      %v673 = vand.u32 %v512, 4294901760
      %v674 = vsub.f32 %v512, %v673
      %v675 = vand.u32 %v674, 4294901760
      %v676 = vsub.f32 %v674, %v675
      %v677 = vand.u32 %v676, 4294901760
      %678 = vmatpush1.msra.mxu0 %v677
      %679 = vmatprep.subr.mxu0 0.0
      %v680 = vand.u32 %v513, 4294901760
      %v681 = vsub.f32 %v513, %v680
      %v682 = vand.u32 %v681, 4294901760
      %v683 = vsub.f32 %v681, %v682
      %v684 = vand.u32 %v683, 4294901760
      %685 = vmatpush1.msra.mxu0 %v684
      %686 = vmatprep.subr.mxu0 0.0
      %v687 = vand.u32 %v514, 4294901760
      %v688 = vsub.f32 %v514, %v687
      %v689 = vand.u32 %v688, 4294901760
      %v690 = vsub.f32 %v688, %v689
      %v691 = vand.u32 %v690, 4294901760
      %692 = vmatpush1.msra.mxu0 %v691
      %693 = vmatprep.subr.mxu0 0.0
      %694 = vmatpush1.msra.mxu0 0.0
      %695 = vmatprep.subr.mxu0 0.0
      %696 = vmatpush1.msra.mxu0 0.0
      %697 = vmatprep.subr.mxu0 0.0
      %698 = vmatpush1.msra.mxu0 0.0
      %699 = vmatprep.subr.mxu0 0.0
      %700 = vmatpush1.msra.mxu0 0.0
      %701 = vmatprep.subr.mxu0 0.0
      %702 = vmatpush1.msra.mxu0 0.0
      %703 = vmatprep.subr.mxu0 0.0
      %704 = vmatpush1.msra.mxu0 0.0
      %705 = vmatprep.subr.mxu0 0.0
      %706 = vmatpush1.msra.mxu0 0.0
      %707 = vmatprep.subr.mxu0 0.0
      %708 = vmatpush1.msra.mxu0 0.0
      %709 = vmatprep.subr.mxu0 0.0
      %710 = vmatpush1.msra.mxu0 0.0
      %711 = vmatprep.subr.mxu0 0.0
      %712 = vmatpush1.msra.mxu0 0.0
      %713 = vmatprep.subr.mxu0 0.0
      %714 = vmatpush1.msra.mxu0 0.0
      %715 = vmatprep.subr.mxu0 0.0
      %716 = vmatpush1.msra.mxu0 0.0
      %717 = vmatprep.subr.mxu0 0.0
      %718 = vmatpush1.msra.mxu0 0.0
      %719 = vmatprep.subr.mxu0 0.0
      %720 = vmatpush1.msra.mxu0 0.0
      %721 = vmatprep.subr.mxu0 0.0
      %722 = vmatpush1.msra.mxu0 0.0
      %723 = vmatprep.subr.mxu0 0.0
      %724 = vmatpush1.msra.mxu0 0.0
      %725 = vmatprep.subr.mxu0 0.0
      %726 = vmatpush1.msra.mxu0 0.0
      %727 = vmatprep.subr.mxu0 0.0
      %728 = vmatpush1.msra.mxu0 0.0
      %729 = vmatprep.subr.mxu0 0.0
      %730 = vmatpush1.msra.mxu0 0.0
      %731 = vmatprep.subr.mxu0 0.0
      %732 = vmatpush1.msra.mxu0 0.0
      %733 = vmatprep.subr.mxu0 0.0
      %734 = vmatpush1.msra.mxu0 0.0
      %735 = vmatprep.subr.mxu0 0.0
      %736 = vmatpush1.msra.mxu0 0.0
      %737 = vmatprep.subr.mxu0 0.0
      %738 = vmatpush1.msra.mxu0 0.0
      %739 = vmatprep.subr.mxu0 0.0
      %740 = vmatpush1.msra.mxu0 0.0
      %741 = vmatprep.subr.mxu0 0.0
      %742 = vmatpush1.msra.mxu0 0.0
      %743 = vmatprep.subr.mxu0 0.0
      %744 = vmatpush1.msra.mxu0 0.0
      %745 = vmatprep.subr.mxu0 0.0
      %746 = vmatpush1.msra.mxu0 0.0
      %747 = vmatprep.subr.mxu0 0.0
      %748 = vmatpush1.msra.mxu0 0.0
      %749 = vmatprep.mubr.f32.mxu0 0.0
      %v750 = vand.u32 %v545, 4294901760
      %751 = vmatmul.mubr.f32.gmra.mrb[0].mxu0 %v750
      %v752 = vpop.f32.mrb[0].mxu0
      %v753 = vadd.f32 %v632, %v752
      %v754 = vpop.f32.mrb[0].mxu0
      %755 = vmatprep.mubr.f32.mxu0 0.0
      %v756 = vand.u32 %v548, 4294901760
      %757 = vmatmul.mubr.f32.gmra.mrb[0].mxu0 %v756
      %v758 = vpop.f32.mrb[0].mxu0
      %v759 = vadd.f32 %v642, %v758
      %v760 = vpop.f32.mrb[0].mxu0
      %761 = vmatprep.mubr.f32.mxu0 0.0
      %v762 = vand.u32 %v551, 4294901760
      %763 = vmatmul.mubr.f32.gmra.mrb[0].mxu0 %v762
      %v764 = vpop.f32.mrb[0].mxu0
      %v765 = vadd.f32 %v652, %v764
      %v766 = vpop.f32.mrb[0].mxu0
      %767 = vmatprep.mubr.f32.mxu0 0.0
      %v768 = vand.u32 %v554, 4294901760
      %769 = vmatmul.mubr.f32.gmra.mrb[0].mxu0 %v768
      %v770 = vpop.f32.mrb[0].mxu0
      %v771 = vadd.f32 %v662, %v770
      %v772 = vpop.f32.mrb[0].mxu0
      %773 = vdwg.mxu0
      %774 = vmatprep.subr.mxu0 0.0
      %v775 = vand.u32 %v511, 4294901760
      %v776 = vsub.f32 %v511, %v775
      %777 = vmatpush1.msra.mxu0 %v776
      %778 = vmatprep.subr.mxu0 0.0
      %v779 = vand.u32 %v512, 4294901760
      %v780 = vsub.f32 %v512, %v779
      %781 = vmatpush1.msra.mxu0 %v780
      %782 = vmatprep.subr.mxu0 0.0
      %v783 = vand.u32 %v513, 4294901760
      %v784 = vsub.f32 %v513, %v783
      %785 = vmatpush1.msra.mxu0 %v784
      %786 = vmatprep.subr.mxu0 0.0
      %v787 = vand.u32 %v514, 4294901760
      %v788 = vsub.f32 %v514, %v787
      %789 = vmatpush1.msra.mxu0 %v788
      %790 = vmatprep.subr.mxu0 0.0
      %791 = vmatpush1.msra.mxu0 0.0
      %792 = vmatprep.subr.mxu0 0.0
      %793 = vmatpush1.msra.mxu0 0.0
      %794 = vmatprep.subr.mxu0 0.0
      %795 = vmatpush1.msra.mxu0 0.0
      %796 = vmatprep.subr.mxu0 0.0
      %797 = vmatpush1.msra.mxu0 0.0
      %798 = vmatprep.subr.mxu0 0.0
      %799 = vmatpush1.msra.mxu0 0.0
      %800 = vmatprep.subr.mxu0 0.0
      %801 = vmatpush1.msra.mxu0 0.0
      %802 = vmatprep.subr.mxu0 0.0
      %803 = vmatpush1.msra.mxu0 0.0
      %804 = vmatprep.subr.mxu0 0.0
      %805 = vmatpush1.msra.mxu0 0.0
      %806 = vmatprep.subr.mxu0 0.0
      %807 = vmatpush1.msra.mxu0 0.0
      %808 = vmatprep.subr.mxu0 0.0
      %809 = vmatpush1.msra.mxu0 0.0
      %810 = vmatprep.subr.mxu0 0.0
      %811 = vmatpush1.msra.mxu0 0.0
      %812 = vmatprep.subr.mxu0 0.0
      %813 = vmatpush1.msra.mxu0 0.0
      %814 = vmatprep.subr.mxu0 0.0
      %815 = vmatpush1.msra.mxu0 0.0
      %816 = vmatprep.subr.mxu0 0.0
      %817 = vmatpush1.msra.mxu0 0.0
      %818 = vmatprep.subr.mxu0 0.0
      %819 = vmatpush1.msra.mxu0 0.0
      %820 = vmatprep.subr.mxu0 0.0
      %821 = vmatpush1.msra.mxu0 0.0
      %822 = vmatprep.subr.mxu0 0.0
      %823 = vmatpush1.msra.mxu0 0.0
      %824 = vmatprep.subr.mxu0 0.0
      %825 = vmatpush1.msra.mxu0 0.0
      %826 = vmatprep.subr.mxu0 0.0
      %827 = vmatpush1.msra.mxu0 0.0
      %828 = vmatprep.subr.mxu0 0.0
      %829 = vmatpush1.msra.mxu0 0.0
      %830 = vmatprep.subr.mxu0 0.0
      %831 = vmatpush1.msra.mxu0 0.0
      %832 = vmatprep.subr.mxu0 0.0
      %833 = vmatpush1.msra.mxu0 0.0
      %834 = vmatprep.subr.mxu0 0.0
      %835 = vmatpush1.msra.mxu0 0.0
      %836 = vmatprep.subr.mxu0 0.0
      %837 = vmatpush1.msra.mxu0 0.0
      %838 = vmatprep.subr.mxu0 0.0
      %839 = vmatpush1.msra.mxu0 0.0
      %840 = vmatprep.subr.mxu0 0.0
      %841 = vmatpush1.msra.mxu0 0.0
      %842 = vmatprep.subr.mxu0 0.0
      %843 = vmatpush1.msra.mxu0 0.0
      %844 = vmatprep.subr.mxu0 0.0
      %845 = vmatpush1.msra.mxu0 0.0
      %846 = vmatprep.mubr.f32.mxu0 0.0
      %v847 = vand.u32 %v545, 4294901760
      %v848 = vsub.f32 %v545, %v847
      %849 = vmatmul.mubr.f32.gmra.mrb[0].mxu0 %v848
      %v850 = vpop.f32.mrb[0].mxu0
      %v851 = vadd.f32 %v753, %v850
      %v852 = vpop.f32.mrb[0].mxu0
      %853 = vmatprep.mubr.f32.mxu0 0.0
      %v854 = vand.u32 %v548, 4294901760
      %v855 = vsub.f32 %v548, %v854
      %856 = vmatmul.mubr.f32.gmra.mrb[0].mxu0 %v855
      %v857 = vpop.f32.mrb[0].mxu0
      %v858 = vadd.f32 %v759, %v857
      %v859 = vpop.f32.mrb[0].mxu0
      %860 = vmatprep.mubr.f32.mxu0 0.0
      %v861 = vand.u32 %v551, 4294901760
      %v862 = vsub.f32 %v551, %v861
      %863 = vmatmul.mubr.f32.gmra.mrb[0].mxu0 %v862
      %v864 = vpop.f32.mrb[0].mxu0
      %v865 = vadd.f32 %v765, %v864
      %v866 = vpop.f32.mrb[0].mxu0
      %867 = vmatprep.mubr.f32.mxu0 0.0
      %v868 = vand.u32 %v554, 4294901760
      %v869 = vsub.f32 %v554, %v868
      %870 = vmatmul.mubr.f32.gmra.mrb[0].mxu0 %v869
      %v871 = vpop.f32.mrb[0].mxu0
      %v872 = vadd.f32 %v771, %v871
      %v873 = vpop.f32.mrb[0].mxu0
      %874 = vdwg.mxu0
      %875 = vmatprep.subr.mxu0 0.0
      %v876 = vand.u32 %v511, 4294901760
      %877 = vmatpush1.msra.mxu0 %v876
      %878 = vmatprep.subr.mxu0 0.0
      %v879 = vand.u32 %v512, 4294901760
      %880 = vmatpush1.msra.mxu0 %v879
      %881 = vmatprep.subr.mxu0 0.0
      %v882 = vand.u32 %v513, 4294901760
      %883 = vmatpush1.msra.mxu0 %v882
      %884 = vmatprep.subr.mxu0 0.0
      %v885 = vand.u32 %v514, 4294901760
      %886 = vmatpush1.msra.mxu0 %v885
      %887 = vmatprep.subr.mxu0 0.0
      %888 = vmatpush1.msra.mxu0 0.0
      %889 = vmatprep.subr.mxu0 0.0
      %890 = vmatpush1.msra.mxu0 0.0
      %891 = vmatprep.subr.mxu0 0.0
      %892 = vmatpush1.msra.mxu0 0.0
      %893 = vmatprep.subr.mxu0 0.0
      %894 = vmatpush1.msra.mxu0 0.0
      %895 = vmatprep.subr.mxu0 0.0
      %896 = vmatpush1.msra.mxu0 0.0
      %897 = vmatprep.subr.mxu0 0.0
      %898 = vmatpush1.msra.mxu0 0.0
      %899 = vmatprep.subr.mxu0 0.0
      %900 = vmatpush1.msra.mxu0 0.0
      %901 = vmatprep.subr.mxu0 0.0
      %902 = vmatpush1.msra.mxu0 0.0
      %903 = vmatprep.subr.mxu0 0.0
      %904 = vmatpush1.msra.mxu0 0.0
      %905 = vmatprep.subr.mxu0 0.0
      %906 = vmatpush1.msra.mxu0 0.0
      %907 = vmatprep.subr.mxu0 0.0
      %908 = vmatpush1.msra.mxu0 0.0
      %909 = vmatprep.subr.mxu0 0.0
      %910 = vmatpush1.msra.mxu0 0.0
      %911 = vmatprep.subr.mxu0 0.0
      %912 = vmatpush1.msra.mxu0 0.0
      %913 = vmatprep.subr.mxu0 0.0
      %914 = vmatpush1.msra.mxu0 0.0
      %915 = vmatprep.subr.mxu0 0.0
      %916 = vmatpush1.msra.mxu0 0.0
      %917 = vmatprep.subr.mxu0 0.0
      %918 = vmatpush1.msra.mxu0 0.0
      %919 = vmatprep.subr.mxu0 0.0
      %920 = vmatpush1.msra.mxu0 0.0
      %921 = vmatprep.subr.mxu0 0.0
      %922 = vmatpush1.msra.mxu0 0.0
      %923 = vmatprep.subr.mxu0 0.0
      %924 = vmatpush1.msra.mxu0 0.0
      %925 = vmatprep.subr.mxu0 0.0
      %926 = vmatpush1.msra.mxu0 0.0
      %927 = vmatprep.subr.mxu0 0.0
      %928 = vmatpush1.msra.mxu0 0.0
      %929 = vmatprep.subr.mxu0 0.0
      %930 = vmatpush1.msra.mxu0 0.0
      %931 = vmatprep.subr.mxu0 0.0
      %932 = vmatpush1.msra.mxu0 0.0
      %933 = vmatprep.subr.mxu0 0.0
      %934 = vmatpush1.msra.mxu0 0.0
      %935 = vmatprep.subr.mxu0 0.0
      %936 = vmatpush1.msra.mxu0 0.0
      %937 = vmatprep.subr.mxu0 0.0
      %938 = vmatpush1.msra.mxu0 0.0
      %939 = vmatprep.subr.mxu0 0.0
      %940 = vmatpush1.msra.mxu0 0.0
      %941 = vmatprep.subr.mxu0 0.0
      %942 = vmatpush1.msra.mxu0 0.0
      %943 = vmatprep.mubr.f32.mxu0 0.0
      %v944 = vand.u32 %v545, 4294901760
      %v945 = vsub.f32 %v545, %v944
      %v946 = vand.u32 %v945, 4294901760
      %947 = vmatmul.mubr.f32.gmra.mrb[0].mxu0 %v946
      %v948 = vpop.f32.mrb[0].mxu0
      %v949 = vadd.f32 %v851, %v948
      %v950 = vpop.f32.mrb[0].mxu0
      %951 = vmatprep.mubr.f32.mxu0 0.0
      %v952 = vand.u32 %v548, 4294901760
      %v953 = vsub.f32 %v548, %v952
      %v954 = vand.u32 %v953, 4294901760
      %955 = vmatmul.mubr.f32.gmra.mrb[0].mxu0 %v954
      %v956 = vpop.f32.mrb[0].mxu0
      %v957 = vadd.f32 %v858, %v956
      %v958 = vpop.f32.mrb[0].mxu0
      %959 = vmatprep.mubr.f32.mxu0 0.0
      %v960 = vand.u32 %v551, 4294901760
      %v961 = vsub.f32 %v551, %v960
      %v962 = vand.u32 %v961, 4294901760
      %963 = vmatmul.mubr.f32.gmra.mrb[0].mxu0 %v962
      %v964 = vpop.f32.mrb[0].mxu0
      %v965 = vadd.f32 %v865, %v964
      %v966 = vpop.f32.mrb[0].mxu0
      %967 = vmatprep.mubr.f32.mxu0 0.0
      %v968 = vand.u32 %v554, 4294901760
      %v969 = vsub.f32 %v554, %v968
      %v970 = vand.u32 %v969, 4294901760
      %971 = vmatmul.mubr.f32.gmra.mrb[0].mxu0 %v970
      %v972 = vpop.f32.mrb[0].mxu0
      %v973 = vadd.f32 %v872, %v972
      %v974 = vpop.f32.mrb[0].mxu0
      %975 = vdwg.mxu0
      %976 = vmatprep.subr.mxu0 0.0
      %v977 = vand.u32 %v511, 4294901760
      %v978 = vsub.f32 %v511, %v977
      %v979 = vand.u32 %v978, 4294901760
      %980 = vmatpush1.msra.mxu0 %v979
      %981 = vmatprep.subr.mxu0 0.0
      %v982 = vand.u32 %v512, 4294901760
      %v983 = vsub.f32 %v512, %v982
      %v984 = vand.u32 %v983, 4294901760
      %985 = vmatpush1.msra.mxu0 %v984
      %986 = vmatprep.subr.mxu0 0.0
      %v987 = vand.u32 %v513, 4294901760
      %v988 = vsub.f32 %v513, %v987
      %v989 = vand.u32 %v988, 4294901760
      %990 = vmatpush1.msra.mxu0 %v989
      %991 = vmatprep.subr.mxu0 0.0
      %v992 = vand.u32 %v514, 4294901760
      %v993 = vsub.f32 %v514, %v992
      %v994 = vand.u32 %v993, 4294901760
      %995 = vmatpush1.msra.mxu0 %v994
      %996 = vmatprep.subr.mxu0 0.0
      %997 = vmatpush1.msra.mxu0 0.0
      %998 = vmatprep.subr.mxu0 0.0
      %999 = vmatpush1.msra.mxu0 0.0
      %1000 = vmatprep.subr.mxu0 0.0
      %1001 = vmatpush1.msra.mxu0 0.0
      %1002 = vmatprep.subr.mxu0 0.0
      %1003 = vmatpush1.msra.mxu0 0.0
      %1004 = vmatprep.subr.mxu0 0.0
      %1005 = vmatpush1.msra.mxu0 0.0
      %1006 = vmatprep.subr.mxu0 0.0
      %1007 = vmatpush1.msra.mxu0 0.0
      %1008 = vmatprep.subr.mxu0 0.0
      %1009 = vmatpush1.msra.mxu0 0.0
      %1010 = vmatprep.subr.mxu0 0.0
      %1011 = vmatpush1.msra.mxu0 0.0
      %1012 = vmatprep.subr.mxu0 0.0
      %1013 = vmatpush1.msra.mxu0 0.0
      %1014 = vmatprep.subr.mxu0 0.0
      %1015 = vmatpush1.msra.mxu0 0.0
      %1016 = vmatprep.subr.mxu0 0.0
      %1017 = vmatpush1.msra.mxu0 0.0
      %1018 = vmatprep.subr.mxu0 0.0
      %1019 = vmatpush1.msra.mxu0 0.0
      %1020 = vmatprep.subr.mxu0 0.0
      %1021 = vmatpush1.msra.mxu0 0.0
      %1022 = vmatprep.subr.mxu0 0.0
      %1023 = vmatpush1.msra.mxu0 0.0
      %1024 = vmatprep.subr.mxu0 0.0
      %1025 = vmatpush1.msra.mxu0 0.0
      %1026 = vmatprep.subr.mxu0 0.0
      %1027 = vmatpush1.msra.mxu0 0.0
      %1028 = vmatprep.subr.mxu0 0.0
      %1029 = vmatpush1.msra.mxu0 0.0
      %1030 = vmatprep.subr.mxu0 0.0
      %1031 = vmatpush1.msra.mxu0 0.0
      %1032 = vmatprep.subr.mxu0 0.0
      %1033 = vmatpush1.msra.mxu0 0.0
      %1034 = vmatprep.subr.mxu0 0.0
      %1035 = vmatpush1.msra.mxu0 0.0
      %1036 = vmatprep.subr.mxu0 0.0
      %1037 = vmatpush1.msra.mxu0 0.0
      %1038 = vmatprep.subr.mxu0 0.0
      %1039 = vmatpush1.msra.mxu0 0.0
      %1040 = vmatprep.subr.mxu0 0.0
      %1041 = vmatpush1.msra.mxu0 0.0
      %1042 = vmatprep.subr.mxu0 0.0
      %1043 = vmatpush1.msra.mxu0 0.0
      %1044 = vmatprep.subr.mxu0 0.0
      %1045 = vmatpush1.msra.mxu0 0.0
      %1046 = vmatprep.subr.mxu0 0.0
      %1047 = vmatpush1.msra.mxu0 0.0
      %1048 = vmatprep.subr.mxu0 0.0
      %1049 = vmatpush1.msra.mxu0 0.0
      %1050 = vmatprep.subr.mxu0 0.0
      %1051 = vmatpush1.msra.mxu0 0.0
      %1052 = vmatprep.mubr.f32.mxu0 0.0
      %v1053 = vand.u32 %v545, 4294901760
      %1054 = vmatmul.mubr.f32.gmra.mrb[0].mxu0 %v1053
      %v1055 = vpop.f32.mrb[0].mxu0
      %v1056 = vadd.f32 %v949, %v1055
      %v1057 = vpop.f32.mrb[0].mxu0
      %1058 = vmatprep.mubr.f32.mxu0 0.0
      %v1059 = vand.u32 %v548, 4294901760
      %1060 = vmatmul.mubr.f32.gmra.mrb[0].mxu0 %v1059
      %v1061 = vpop.f32.mrb[0].mxu0
      %v1062 = vadd.f32 %v957, %v1061
      %v1063 = vpop.f32.mrb[0].mxu0
      %1064 = vmatprep.mubr.f32.mxu0 0.0
      %v1065 = vand.u32 %v551, 4294901760
      %1066 = vmatmul.mubr.f32.gmra.mrb[0].mxu0 %v1065
      %v1067 = vpop.f32.mrb[0].mxu0
      %v1068 = vadd.f32 %v965, %v1067
      %v1069 = vpop.f32.mrb[0].mxu0
      %1070 = vmatprep.mubr.f32.mxu0 0.0
      %v1071 = vand.u32 %v554, 4294901760
      %1072 = vmatmul.mubr.f32.gmra.mrb[0].mxu0 %v1071
      %v1073 = vpop.f32.mrb[0].mxu0
      %v1074 = vadd.f32 %v973, %v1073
      %v1075 = vpop.f32.mrb[0].mxu0
      %1076 = vdwg.mxu0
      %1077 = vmatprep.subr.mxu0 0.0
      %v1078 = vand.u32 %v511, 4294901760
      %1079 = vmatpush1.msra.mxu0 %v1078
      %1080 = vmatprep.subr.mxu0 0.0
      %v1081 = vand.u32 %v512, 4294901760
      %1082 = vmatpush1.msra.mxu0 %v1081
      %1083 = vmatprep.subr.mxu0 0.0
      %v1084 = vand.u32 %v513, 4294901760
      %1085 = vmatpush1.msra.mxu0 %v1084
      %1086 = vmatprep.subr.mxu0 0.0
      %v1087 = vand.u32 %v514, 4294901760
      %1088 = vmatpush1.msra.mxu0 %v1087
      %1089 = vmatprep.subr.mxu0 0.0
      %1090 = vmatpush1.msra.mxu0 0.0
      %1091 = vmatprep.subr.mxu0 0.0
      %1092 = vmatpush1.msra.mxu0 0.0
      %1093 = vmatprep.subr.mxu0 0.0
      %1094 = vmatpush1.msra.mxu0 0.0
      %1095 = vmatprep.subr.mxu0 0.0
      %1096 = vmatpush1.msra.mxu0 0.0
      %1097 = vmatprep.subr.mxu0 0.0
      %1098 = vmatpush1.msra.mxu0 0.0
      %1099 = vmatprep.subr.mxu0 0.0
      %1100 = vmatpush1.msra.mxu0 0.0
      %1101 = vmatprep.subr.mxu0 0.0
      %1102 = vmatpush1.msra.mxu0 0.0
      %1103 = vmatprep.subr.mxu0 0.0
      %1104 = vmatpush1.msra.mxu0 0.0
      %1105 = vmatprep.subr.mxu0 0.0
      %1106 = vmatpush1.msra.mxu0 0.0
      %1107 = vmatprep.subr.mxu0 0.0
      %1108 = vmatpush1.msra.mxu0 0.0
      %1109 = vmatprep.subr.mxu0 0.0
      %1110 = vmatpush1.msra.mxu0 0.0
      %1111 = vmatprep.subr.mxu0 0.0
      %1112 = vmatpush1.msra.mxu0 0.0
      %1113 = vmatprep.subr.mxu0 0.0
      %1114 = vmatpush1.msra.mxu0 0.0
      %1115 = vmatprep.subr.mxu0 0.0
      %1116 = vmatpush1.msra.mxu0 0.0
      %1117 = vmatprep.subr.mxu0 0.0
      %1118 = vmatpush1.msra.mxu0 0.0
      %1119 = vmatprep.subr.mxu0 0.0
      %1120 = vmatpush1.msra.mxu0 0.0
      %1121 = vmatprep.subr.mxu0 0.0
      %1122 = vmatpush1.msra.mxu0 0.0
      %1123 = vmatprep.subr.mxu0 0.0
      %1124 = vmatpush1.msra.mxu0 0.0
      %1125 = vmatprep.subr.mxu0 0.0
      %1126 = vmatpush1.msra.mxu0 0.0
      %1127 = vmatprep.subr.mxu0 0.0
      %1128 = vmatpush1.msra.mxu0 0.0
      %1129 = vmatprep.subr.mxu0 0.0
      %1130 = vmatpush1.msra.mxu0 0.0
      %1131 = vmatprep.subr.mxu0 0.0
      %1132 = vmatpush1.msra.mxu0 0.0
      %1133 = vmatprep.subr.mxu0 0.0
      %1134 = vmatpush1.msra.mxu0 0.0
      %1135 = vmatprep.subr.mxu0 0.0
      %1136 = vmatpush1.msra.mxu0 0.0
      %1137 = vmatprep.subr.mxu0 0.0
      %1138 = vmatpush1.msra.mxu0 0.0
      %1139 = vmatprep.subr.mxu0 0.0
      %1140 = vmatpush1.msra.mxu0 0.0
      %1141 = vmatprep.subr.mxu0 0.0
      %1142 = vmatpush1.msra.mxu0 0.0
      %1143 = vmatprep.subr.mxu0 0.0
      %1144 = vmatpush1.msra.mxu0 0.0
      %1145 = vmatprep.mubr.f32.mxu0 0.0
      %v1146 = vand.u32 %v545, 4294901760
      %1147 = vmatmul.mubr.f32.gmra.mrb[0].mxu0 %v1146
      %v1148 = vpop.f32.mrb[0].mxu0
      %v1149 = vadd.f32 %v1056, %v1148
      %v1150 = vpop.f32.mrb[0].mxu0
      %1151 = vmatprep.mubr.f32.mxu0 0.0
      %v1152 = vand.u32 %v548, 4294901760
      %1153 = vmatmul.mubr.f32.gmra.mrb[0].mxu0 %v1152
      %v1154 = vpop.f32.mrb[0].mxu0
      %v1155 = vadd.f32 %v1062, %v1154
      %v1156 = vpop.f32.mrb[0].mxu0
      %1157 = vmatprep.mubr.f32.mxu0 0.0
      %v1158 = vand.u32 %v551, 4294901760
      %1159 = vmatmul.mubr.f32.gmra.mrb[0].mxu0 %v1158
      %v1160 = vpop.f32.mrb[0].mxu0
      %v1161 = vadd.f32 %v1068, %v1160
      %v1162 = vpop.f32.mrb[0].mxu0
      %1163 = vmatprep.mubr.f32.mxu0 0.0
      %v1164 = vand.u32 %v554, 4294901760
      %1165 = vmatmul.mubr.f32.gmra.mrb[0].mxu0 %v1164
      %v1166 = vpop.f32.mrb[0].mxu0
      %v1167 = vadd.f32 %v1074, %v1166
      %v1168 = vpop.f32.mrb[0].mxu0
      %1169 = vdwg.mxu0
      %1174 = vrot.lane.b32.xlu0 %v1149, 127
      %v1175 = vpop.permute.xlu0 %1174
      %1176 = vrot.lane.b32.xlu0 %v1155, 127
      %v1177 = vpop.permute.xlu0 %1176
      %1178 = vrot.lane.b32.xlu0 %v1161, 127
      %v1179 = vpop.permute.xlu0 %1178
      %1180 = vrot.lane.b32.xlu0 %v1167, 127
      %v1181 = vpop.permute.xlu0 %1180
      %v1186 = vmul.f32 %v1149, %v1175
      %v1187 = vmul.f32 %v1155, %v1177
      %v1188 = vmul.f32 %v1161, %v1179
      %v1189 = vmul.f32 %v1167, %v1181
      %v1190 = vld [vmem:[%s5] sm:$0xff]
      %v1191 = vld [vmem:[%s5 + $0x8] sm:$0xff]
      %v1192 = vld [vmem:[%s5 + $0x10] sm:$0xff]
      %v1193 = vld [vmem:[%s5 + $0x18] sm:$0xff]
      %v1194 = vld [vmem:[%s5 + $0x20] sm:$0xff]
      %v1195 = vld [vmem:[%s5 + $0x28] sm:$0xff]
      %v1196 = vld [vmem:[%s5 + $0x30] sm:$0xff]
      %v1197 = vld [vmem:[%s5 + $0x38] sm:$0xff]
      %v1198 = vld [vmem:[%s4] sm:$0xff]
      %v1199 = vld [vmem:[%s4 + $0x8] sm:$0xff]
      %v1200 = vld [vmem:[%s4 + $0x10] sm:$0xff]
      %v1201 = vld [vmem:[%s4 + $0x18] sm:$0xff]
      %v1202 = vld [vmem:[%s4 + $0x20] sm:$0xff]
      %v1203 = vld [vmem:[%s4 + $0x28] sm:$0xff]
      %v1204 = vld [vmem:[%s4 + $0x30] sm:$0xff]
      %v1205 = vld [vmem:[%s4 + $0x38] sm:$0xff]
      %v1206 = vld [vmem:[%s4 + $0x40] sm:$0xff]
      %v1207 = vld [vmem:[%s4 + $0x48] sm:$0xff]
      %v1208 = vld [vmem:[%s4 + $0x50] sm:$0xff]
      %v1209 = vld [vmem:[%s4 + $0x58] sm:$0xff]
      %1210 = vset.pattern.permute.xlu0 0
      %1211 = vperm.xlu0 %1210, %v1149
      %v1212 = vpop.permute.xlu0 %1211
      %1214 = vset.pattern.permute.xlu0 0
      %1215 = vperm.xlu0 %1214, %v1155
      %v1216 = vpop.permute.xlu0 %1215
      %1218 = vset.pattern.permute.xlu0 0
      %1219 = vperm.xlu0 %1218, %v1161
      %v1220 = vpop.permute.xlu0 %1219
      %1222 = vset.pattern.permute.xlu0 0
      %1223 = vperm.xlu0 %1222, %v1167
      %v1224 = vpop.permute.xlu0 %1223
      %1226 = vset.pattern.permute.xlu0 0
      %1227 = vperm.xlu0 %1226, %v1175
      %v1228 = vpop.permute.xlu0 %1227
      %1230 = vset.pattern.permute.xlu0 0
      %1231 = vperm.xlu0 %1230, %v1177
      %v1232 = vpop.permute.xlu0 %1231
      %1234 = vset.pattern.permute.xlu0 0
      %1235 = vperm.xlu0 %1234, %v1179
      %v1236 = vpop.permute.xlu0 %1235
      %1238 = vset.pattern.permute.xlu0 0
      %1239 = vperm.xlu0 %1238, %v1181
      %v1240 = vpop.permute.xlu0 %1239
      %1243 = vset.pattern.permute.xlu0 0
      %1244 = vperm.xlu0 %1243, %v1186
      %v1245 = vpop.permute.xlu0 %1244
      %1248 = vset.pattern.permute.xlu0 0
      %1249 = vperm.xlu0 %1248, %v1187
      %v1250 = vpop.permute.xlu0 %1249
      %1253 = vset.pattern.permute.xlu0 0
      %1254 = vperm.xlu0 %1253, %v1188
      %v1255 = vpop.permute.xlu0 %1254
      %1258 = vset.pattern.permute.xlu0 0
      %1259 = vperm.xlu0 %1258, %v1189
      %v1260 = vpop.permute.xlu0 %1259
      %v1262 = vmul.f32 %v1198, %v1212
      %v1263 = vmul.f32 %v1199, %v1216
      %v1264 = vmul.f32 %v1200, %v1220
      %v1265 = vmul.f32 %v1201, %v1224
      %v1266 = vmul.f32 %v1202, %v1228
      %v1267 = vmul.f32 %v1203, %v1232
      %v1268 = vmul.f32 %v1204, %v1236
      %v1269 = vmul.f32 %v1205, %v1240
      %v1270 = vmul.f32 %v1206, %v1245
      %v1271 = vmul.f32 %v1207, %v1250
      %v1272 = vmul.f32 %v1208, %v1255
      %v1273 = vmul.f32 %v1209, %v1260
      %vm1274 = vcmask 785408
      %v1276 = vsel %vm1274, %v1190, 0
      %v1279 = vsel %vm1274, %v1191, 0
      %v1282 = vsel %vm1274, %v1192, 0
      %v1285 = vsel %vm1274, %v1193, 0
      %v1288 = vsel %vm1274, %v1194, 0
      %v1291 = vsel %vm1274, %v1195, 0
      %v1294 = vsel %vm1274, %v1196, 0
      %v1297 = vsel %vm1274, %v1197, 0
      %1299 = vmatprep.subr.mxu0 0.0
      %v1300 = vand.u32 %v1262, 4294901760
      %1301 = vmatpush1.msra.mxu0 %v1300
      %1302 = vmatprep.subr.mxu0 0.0
      %v1303 = vand.u32 %v1263, 4294901760
      %1304 = vmatpush1.msra.mxu0 %v1303
      %1305 = vmatprep.subr.mxu0 0.0
      %v1306 = vand.u32 %v1264, 4294901760
      %1307 = vmatpush1.msra.mxu0 %v1306
      %1308 = vmatprep.subr.mxu0 0.0
      %v1309 = vand.u32 %v1265, 4294901760
      %1310 = vmatpush1.msra.mxu0 %v1309
      %1311 = vmatprep.subr.mxu0 0.0
      %v1312 = vand.u32 %v1266, 4294901760
      %1313 = vmatpush1.msra.mxu0 %v1312
      %1314 = vmatprep.subr.mxu0 0.0
      %v1315 = vand.u32 %v1267, 4294901760
      %1316 = vmatpush1.msra.mxu0 %v1315
      %1317 = vmatprep.subr.mxu0 0.0
      %v1318 = vand.u32 %v1268, 4294901760
      %1319 = vmatpush1.msra.mxu0 %v1318
      %1320 = vmatprep.subr.mxu0 0.0
      %v1321 = vand.u32 %v1269, 4294901760
      %1322 = vmatpush1.msra.mxu0 %v1321
      %1323 = vmatprep.subr.mxu0 0.0
      %v1324 = vand.u32 %v1270, 4294901760
      %1325 = vmatpush1.msra.mxu0 %v1324
      %1326 = vmatprep.subr.mxu0 0.0
      %v1327 = vand.u32 %v1271, 4294901760
      %1328 = vmatpush1.msra.mxu0 %v1327
      %1329 = vmatprep.subr.mxu0 0.0
      %v1330 = vand.u32 %v1272, 4294901760
      %1331 = vmatpush1.msra.mxu0 %v1330
      %1332 = vmatprep.subr.mxu0 0.0
      %v1333 = vand.u32 %v1273, 4294901760
      %1334 = vmatpush1.msra.mxu0 %v1333
      %1335 = vmatprep.subr.mxu0 0.0
      %1336 = vmatpush1.msra.mxu0 0.0
      %1337 = vmatprep.subr.mxu0 0.0
      %1338 = vmatpush1.msra.mxu0 0.0
      %1339 = vmatprep.subr.mxu0 0.0
      %1340 = vmatpush1.msra.mxu0 0.0
      %1341 = vmatprep.subr.mxu0 0.0
      %1342 = vmatpush1.msra.mxu0 0.0
      %1343 = vmatprep.subr.mxu0 0.0
      %1344 = vmatpush1.msra.mxu0 0.0
      %1345 = vmatprep.subr.mxu0 0.0
      %1346 = vmatpush1.msra.mxu0 0.0
      %1347 = vmatprep.subr.mxu0 0.0
      %1348 = vmatpush1.msra.mxu0 0.0
      %1349 = vmatprep.subr.mxu0 0.0
      %1350 = vmatpush1.msra.mxu0 0.0
      %1351 = vmatprep.subr.mxu0 0.0
      %1352 = vmatpush1.msra.mxu0 0.0
      %1353 = vmatprep.subr.mxu0 0.0
      %1354 = vmatpush1.msra.mxu0 0.0
      %1355 = vmatprep.subr.mxu0 0.0
      %1356 = vmatpush1.msra.mxu0 0.0
      %1357 = vmatprep.subr.mxu0 0.0
      %1358 = vmatpush1.msra.mxu0 0.0
      %1359 = vmatprep.subr.mxu0 0.0
      %1360 = vmatpush1.msra.mxu0 0.0
      %1361 = vmatprep.subr.mxu0 0.0
      %1362 = vmatpush1.msra.mxu0 0.0
      %1363 = vmatprep.subr.mxu0 0.0
      %1364 = vmatpush1.msra.mxu0 0.0
      %1365 = vmatprep.subr.mxu0 0.0
      %1366 = vmatpush1.msra.mxu0 0.0
      %1367 = vmatprep.subr.mxu0 0.0
      %1368 = vmatpush1.msra.mxu0 0.0
      %1369 = vmatprep.subr.mxu0 0.0
      %1370 = vmatpush1.msra.mxu0 0.0
      %1371 = vmatprep.subr.mxu0 0.0
      %1372 = vmatpush1.msra.mxu0 0.0
      %1373 = vmatprep.subr.mxu0 0.0
      %1374 = vmatpush1.msra.mxu0 0.0
      %1375 = vmatprep.mubr.f32.mxu0 0.0
      %v1376 = vand.u32 %v1276, 4294901760
      %v1377 = vsub.f32 %v1276, %v1376
      %v1378 = vand.u32 %v1377, 4294901760
      %v1379 = vsub.f32 %v1377, %v1378
      %v1380 = vand.u32 %v1379, 4294901760
      %1381 = vmatmul.mubr.f32.gmra.mrb[0].mxu0 %v1380
      %v1382 = vpop.f32.mrb[0].mxu0
      %v1383 = vadd.f32 0.0, %v1382
      %v1384 = vpop.f32.mrb[0].mxu0
      %1385 = vmatprep.mubr.f32.mxu0 0.0
      %v1386 = vand.u32 %v1279, 4294901760
      %v1387 = vsub.f32 %v1279, %v1386
      %v1388 = vand.u32 %v1387, 4294901760
      %v1389 = vsub.f32 %v1387, %v1388
      %v1390 = vand.u32 %v1389, 4294901760
      %1391 = vmatmul.mubr.f32.gmra.mrb[0].mxu0 %v1390
      %v1392 = vpop.f32.mrb[0].mxu0
      %v1393 = vadd.f32 0.0, %v1392
      %v1394 = vpop.f32.mrb[0].mxu0
      %1395 = vmatprep.mubr.f32.mxu0 0.0
      %v1396 = vand.u32 %v1282, 4294901760
      %v1397 = vsub.f32 %v1282, %v1396
      %v1398 = vand.u32 %v1397, 4294901760
      %v1399 = vsub.f32 %v1397, %v1398
      %v1400 = vand.u32 %v1399, 4294901760
      %1401 = vmatmul.mubr.f32.gmra.mrb[0].mxu0 %v1400
      %v1402 = vpop.f32.mrb[0].mxu0
      %v1403 = vadd.f32 0.0, %v1402
      %v1404 = vpop.f32.mrb[0].mxu0
      %1405 = vmatprep.mubr.f32.mxu0 0.0
      %v1406 = vand.u32 %v1285, 4294901760
      %v1407 = vsub.f32 %v1285, %v1406
      %v1408 = vand.u32 %v1407, 4294901760
      %v1409 = vsub.f32 %v1407, %v1408
      %v1410 = vand.u32 %v1409, 4294901760
      %1411 = vmatmul.mubr.f32.gmra.mrb[0].mxu0 %v1410
      %v1412 = vpop.f32.mrb[0].mxu0
      %v1413 = vadd.f32 0.0, %v1412
      %v1414 = vpop.f32.mrb[0].mxu0
      %1415 = vmatprep.mubr.f32.mxu0 0.0
      %v1416 = vand.u32 %v1288, 4294901760
      %v1417 = vsub.f32 %v1288, %v1416
      %v1418 = vand.u32 %v1417, 4294901760
      %v1419 = vsub.f32 %v1417, %v1418
      %v1420 = vand.u32 %v1419, 4294901760
      %1421 = vmatmul.mubr.f32.gmra.mrb[0].mxu0 %v1420
      %v1422 = vpop.f32.mrb[0].mxu0
      %v1423 = vadd.f32 0.0, %v1422
      %v1424 = vpop.f32.mrb[0].mxu0
      %1425 = vmatprep.mubr.f32.mxu0 0.0
      %v1426 = vand.u32 %v1291, 4294901760
      %v1427 = vsub.f32 %v1291, %v1426
      %v1428 = vand.u32 %v1427, 4294901760
      %v1429 = vsub.f32 %v1427, %v1428
      %v1430 = vand.u32 %v1429, 4294901760
      %1431 = vmatmul.mubr.f32.gmra.mrb[0].mxu0 %v1430
      %v1432 = vpop.f32.mrb[0].mxu0
      %v1433 = vadd.f32 0.0, %v1432
      %v1434 = vpop.f32.mrb[0].mxu0
      %1435 = vmatprep.mubr.f32.mxu0 0.0
      %v1436 = vand.u32 %v1294, 4294901760
      %v1437 = vsub.f32 %v1294, %v1436
      %v1438 = vand.u32 %v1437, 4294901760
      %v1439 = vsub.f32 %v1437, %v1438
      %v1440 = vand.u32 %v1439, 4294901760
      %1441 = vmatmul.mubr.f32.gmra.mrb[0].mxu0 %v1440
      %v1442 = vpop.f32.mrb[0].mxu0
      %v1443 = vadd.f32 0.0, %v1442
      %v1444 = vpop.f32.mrb[0].mxu0
      %1445 = vmatprep.mubr.f32.mxu0 0.0
      %v1446 = vand.u32 %v1297, 4294901760
      %v1447 = vsub.f32 %v1297, %v1446
      %v1448 = vand.u32 %v1447, 4294901760
      %v1449 = vsub.f32 %v1447, %v1448
      %v1450 = vand.u32 %v1449, 4294901760
      %1451 = vmatmul.mubr.f32.gmra.mrb[0].mxu0 %v1450
      %v1452 = vpop.f32.mrb[0].mxu0
      %v1453 = vadd.f32 0.0, %v1452
      %v1454 = vpop.f32.mrb[0].mxu0
      %1455 = vdwg.mxu0
      %1456 = vmatprep.subr.mxu0 0.0
      %v1457 = vand.u32 %v1262, 4294901760
      %v1458 = vsub.f32 %v1262, %v1457
      %v1459 = vand.u32 %v1458, 4294901760
      %v1460 = vsub.f32 %v1458, %v1459
      %v1461 = vand.u32 %v1460, 4294901760
      %1462 = vmatpush1.msra.mxu0 %v1461
      %1463 = vmatprep.subr.mxu0 0.0
      %v1464 = vand.u32 %v1263, 4294901760
      %v1465 = vsub.f32 %v1263, %v1464
      %v1466 = vand.u32 %v1465, 4294901760
      %v1467 = vsub.f32 %v1465, %v1466
      %v1468 = vand.u32 %v1467, 4294901760
      %1469 = vmatpush1.msra.mxu0 %v1468
      %1470 = vmatprep.subr.mxu0 0.0
      %v1471 = vand.u32 %v1264, 4294901760
      %v1472 = vsub.f32 %v1264, %v1471
      %v1473 = vand.u32 %v1472, 4294901760
      %v1474 = vsub.f32 %v1472, %v1473
      %v1475 = vand.u32 %v1474, 4294901760
      %1476 = vmatpush1.msra.mxu0 %v1475
      %1477 = vmatprep.subr.mxu0 0.0
      %v1478 = vand.u32 %v1265, 4294901760
      %v1479 = vsub.f32 %v1265, %v1478
      %v1480 = vand.u32 %v1479, 4294901760
      %v1481 = vsub.f32 %v1479, %v1480
      %v1482 = vand.u32 %v1481, 4294901760
      %1483 = vmatpush1.msra.mxu0 %v1482
      %1484 = vmatprep.subr.mxu0 0.0
      %v1485 = vand.u32 %v1266, 4294901760
      %v1486 = vsub.f32 %v1266, %v1485
      %v1487 = vand.u32 %v1486, 4294901760
      %v1488 = vsub.f32 %v1486, %v1487
      %v1489 = vand.u32 %v1488, 4294901760
      %1490 = vmatpush1.msra.mxu0 %v1489
      %1491 = vmatprep.subr.mxu0 0.0
      %v1492 = vand.u32 %v1267, 4294901760
      %v1493 = vsub.f32 %v1267, %v1492
      %v1494 = vand.u32 %v1493, 4294901760
      %v1495 = vsub.f32 %v1493, %v1494
      %v1496 = vand.u32 %v1495, 4294901760
      %1497 = vmatpush1.msra.mxu0 %v1496
      %1498 = vmatprep.subr.mxu0 0.0
      %v1499 = vand.u32 %v1268, 4294901760
      %v1500 = vsub.f32 %v1268, %v1499
      %v1501 = vand.u32 %v1500, 4294901760
      %v1502 = vsub.f32 %v1500, %v1501
      %v1503 = vand.u32 %v1502, 4294901760
      %1504 = vmatpush1.msra.mxu0 %v1503
      %1505 = vmatprep.subr.mxu0 0.0
      %v1506 = vand.u32 %v1269, 4294901760
      %v1507 = vsub.f32 %v1269, %v1506
      %v1508 = vand.u32 %v1507, 4294901760
      %v1509 = vsub.f32 %v1507, %v1508
      %v1510 = vand.u32 %v1509, 4294901760
      %1511 = vmatpush1.msra.mxu0 %v1510
      %1512 = vmatprep.subr.mxu0 0.0
      %v1513 = vand.u32 %v1270, 4294901760
      %v1514 = vsub.f32 %v1270, %v1513
      %v1515 = vand.u32 %v1514, 4294901760
      %v1516 = vsub.f32 %v1514, %v1515
      %v1517 = vand.u32 %v1516, 4294901760
      %1518 = vmatpush1.msra.mxu0 %v1517
      %1519 = vmatprep.subr.mxu0 0.0
      %v1520 = vand.u32 %v1271, 4294901760
      %v1521 = vsub.f32 %v1271, %v1520
      %v1522 = vand.u32 %v1521, 4294901760
      %v1523 = vsub.f32 %v1521, %v1522
      %v1524 = vand.u32 %v1523, 4294901760
      %1525 = vmatpush1.msra.mxu0 %v1524
      %1526 = vmatprep.subr.mxu0 0.0
      %v1527 = vand.u32 %v1272, 4294901760
      %v1528 = vsub.f32 %v1272, %v1527
      %v1529 = vand.u32 %v1528, 4294901760
      %v1530 = vsub.f32 %v1528, %v1529
      %v1531 = vand.u32 %v1530, 4294901760
      %1532 = vmatpush1.msra.mxu0 %v1531
      %1533 = vmatprep.subr.mxu0 0.0
      %v1534 = vand.u32 %v1273, 4294901760
      %v1535 = vsub.f32 %v1273, %v1534
      %v1536 = vand.u32 %v1535, 4294901760
      %v1537 = vsub.f32 %v1535, %v1536
      %v1538 = vand.u32 %v1537, 4294901760
      %1539 = vmatpush1.msra.mxu0 %v1538
      %1540 = vmatprep.subr.mxu0 0.0
      %1541 = vmatpush1.msra.mxu0 0.0
      %1542 = vmatprep.subr.mxu0 0.0
      %1543 = vmatpush1.msra.mxu0 0.0
      %1544 = vmatprep.subr.mxu0 0.0
      %1545 = vmatpush1.msra.mxu0 0.0
      %1546 = vmatprep.subr.mxu0 0.0
      %1547 = vmatpush1.msra.mxu0 0.0
      %1548 = vmatprep.subr.mxu0 0.0
      %1549 = vmatpush1.msra.mxu0 0.0
      %1550 = vmatprep.subr.mxu0 0.0
      %1551 = vmatpush1.msra.mxu0 0.0
      %1552 = vmatprep.subr.mxu0 0.0
      %1553 = vmatpush1.msra.mxu0 0.0
      %1554 = vmatprep.subr.mxu0 0.0
      %1555 = vmatpush1.msra.mxu0 0.0
      %1556 = vmatprep.subr.mxu0 0.0
      %1557 = vmatpush1.msra.mxu0 0.0
      %1558 = vmatprep.subr.mxu0 0.0
      %1559 = vmatpush1.msra.mxu0 0.0
      %1560 = vmatprep.subr.mxu0 0.0
      %1561 = vmatpush1.msra.mxu0 0.0
      %1562 = vmatprep.subr.mxu0 0.0
      %1563 = vmatpush1.msra.mxu0 0.0
      %1564 = vmatprep.subr.mxu0 0.0
      %1565 = vmatpush1.msra.mxu0 0.0
      %1566 = vmatprep.subr.mxu0 0.0
      %1567 = vmatpush1.msra.mxu0 0.0
      %1568 = vmatprep.subr.mxu0 0.0
      %1569 = vmatpush1.msra.mxu0 0.0
      %1570 = vmatprep.subr.mxu0 0.0
      %1571 = vmatpush1.msra.mxu0 0.0
      %1572 = vmatprep.subr.mxu0 0.0
      %1573 = vmatpush1.msra.mxu0 0.0
      %1574 = vmatprep.subr.mxu0 0.0
      %1575 = vmatpush1.msra.mxu0 0.0
      %1576 = vmatprep.subr.mxu0 0.0
      %1577 = vmatpush1.msra.mxu0 0.0
      %1578 = vmatprep.subr.mxu0 0.0
      %1579 = vmatpush1.msra.mxu0 0.0
      %1580 = vmatprep.mubr.f32.mxu0 0.0
      %v1581 = vand.u32 %v1276, 4294901760
      %1582 = vmatmul.mubr.f32.gmra.mrb[0].mxu0 %v1581
      %v1583 = vpop.f32.mrb[0].mxu0
      %v1584 = vadd.f32 %v1383, %v1583
      %v1585 = vpop.f32.mrb[0].mxu0
      %1586 = vmatprep.mubr.f32.mxu0 0.0
      %v1587 = vand.u32 %v1279, 4294901760
      %1588 = vmatmul.mubr.f32.gmra.mrb[0].mxu0 %v1587
      %v1589 = vpop.f32.mrb[0].mxu0
      %v1590 = vadd.f32 %v1393, %v1589
      %v1591 = vpop.f32.mrb[0].mxu0
      %1592 = vmatprep.mubr.f32.mxu0 0.0
      %v1593 = vand.u32 %v1282, 4294901760
      %1594 = vmatmul.mubr.f32.gmra.mrb[0].mxu0 %v1593
      %v1595 = vpop.f32.mrb[0].mxu0
      %v1596 = vadd.f32 %v1403, %v1595
      %v1597 = vpop.f32.mrb[0].mxu0
      %1598 = vmatprep.mubr.f32.mxu0 0.0
      %v1599 = vand.u32 %v1285, 4294901760
      %1600 = vmatmul.mubr.f32.gmra.mrb[0].mxu0 %v1599
      %v1601 = vpop.f32.mrb[0].mxu0
      %v1602 = vadd.f32 %v1413, %v1601
      %v1603 = vpop.f32.mrb[0].mxu0
      %1604 = vmatprep.mubr.f32.mxu0 0.0
      %v1605 = vand.u32 %v1288, 4294901760
      %1606 = vmatmul.mubr.f32.gmra.mrb[0].mxu0 %v1605
      %v1607 = vpop.f32.mrb[0].mxu0
      %v1608 = vadd.f32 %v1423, %v1607
      %v1609 = vpop.f32.mrb[0].mxu0
      %1610 = vmatprep.mubr.f32.mxu0 0.0
      %v1611 = vand.u32 %v1291, 4294901760
      %1612 = vmatmul.mubr.f32.gmra.mrb[0].mxu0 %v1611
      %v1613 = vpop.f32.mrb[0].mxu0
      %v1614 = vadd.f32 %v1433, %v1613
      %v1615 = vpop.f32.mrb[0].mxu0
      %1616 = vmatprep.mubr.f32.mxu0 0.0
      %v1617 = vand.u32 %v1294, 4294901760
      %1618 = vmatmul.mubr.f32.gmra.mrb[0].mxu0 %v1617
      %v1619 = vpop.f32.mrb[0].mxu0
      %v1620 = vadd.f32 %v1443, %v1619
      %v1621 = vpop.f32.mrb[0].mxu0
      %1622 = vmatprep.mubr.f32.mxu0 0.0
      %v1623 = vand.u32 %v1297, 4294901760
      %1624 = vmatmul.mubr.f32.gmra.mrb[0].mxu0 %v1623
      %v1625 = vpop.f32.mrb[0].mxu0
      %v1626 = vadd.f32 %v1453, %v1625
      %v1627 = vpop.f32.mrb[0].mxu0
      %1628 = vdwg.mxu0
      %1629 = vmatprep.subr.mxu0 0.0
      %v1630 = vand.u32 %v1262, 4294901760
      %v1631 = vsub.f32 %v1262, %v1630
      %1632 = vmatpush1.msra.mxu0 %v1631
      %1633 = vmatprep.subr.mxu0 0.0
      %v1634 = vand.u32 %v1263, 4294901760
      %v1635 = vsub.f32 %v1263, %v1634
      %1636 = vmatpush1.msra.mxu0 %v1635
      %1637 = vmatprep.subr.mxu0 0.0
      %v1638 = vand.u32 %v1264, 4294901760
      %v1639 = vsub.f32 %v1264, %v1638
      %1640 = vmatpush1.msra.mxu0 %v1639
      %1641 = vmatprep.subr.mxu0 0.0
      %v1642 = vand.u32 %v1265, 4294901760
      %v1643 = vsub.f32 %v1265, %v1642
      %1644 = vmatpush1.msra.mxu0 %v1643
      %1645 = vmatprep.subr.mxu0 0.0
      %v1646 = vand.u32 %v1266, 4294901760
      %v1647 = vsub.f32 %v1266, %v1646
      %1648 = vmatpush1.msra.mxu0 %v1647
      %1649 = vmatprep.subr.mxu0 0.0
      %v1650 = vand.u32 %v1267, 4294901760
      %v1651 = vsub.f32 %v1267, %v1650
      %1652 = vmatpush1.msra.mxu0 %v1651
      %1653 = vmatprep.subr.mxu0 0.0
      %v1654 = vand.u32 %v1268, 4294901760
      %v1655 = vsub.f32 %v1268, %v1654
      %1656 = vmatpush1.msra.mxu0 %v1655
      %1657 = vmatprep.subr.mxu0 0.0
      %v1658 = vand.u32 %v1269, 4294901760
      %v1659 = vsub.f32 %v1269, %v1658
      %1660 = vmatpush1.msra.mxu0 %v1659
      %1661 = vmatprep.subr.mxu0 0.0
      %v1662 = vand.u32 %v1270, 4294901760
      %v1663 = vsub.f32 %v1270, %v1662
      %1664 = vmatpush1.msra.mxu0 %v1663
      %1665 = vmatprep.subr.mxu0 0.0
      %v1666 = vand.u32 %v1271, 4294901760
      %v1667 = vsub.f32 %v1271, %v1666
      %1668 = vmatpush1.msra.mxu0 %v1667
      %1669 = vmatprep.subr.mxu0 0.0
      %v1670 = vand.u32 %v1272, 4294901760
      %v1671 = vsub.f32 %v1272, %v1670
      %1672 = vmatpush1.msra.mxu0 %v1671
      %1673 = vmatprep.subr.mxu0 0.0
      %v1674 = vand.u32 %v1273, 4294901760
      %v1675 = vsub.f32 %v1273, %v1674
      %1676 = vmatpush1.msra.mxu0 %v1675
      %1677 = vmatprep.subr.mxu0 0.0
      %1678 = vmatpush1.msra.mxu0 0.0
      %1679 = vmatprep.subr.mxu0 0.0
      %1680 = vmatpush1.msra.mxu0 0.0
      %1681 = vmatprep.subr.mxu0 0.0
      %1682 = vmatpush1.msra.mxu0 0.0
      %1683 = vmatprep.subr.mxu0 0.0
      %1684 = vmatpush1.msra.mxu0 0.0
      %1685 = vmatprep.subr.mxu0 0.0
      %1686 = vmatpush1.msra.mxu0 0.0
      %1687 = vmatprep.subr.mxu0 0.0
      %1688 = vmatpush1.msra.mxu0 0.0
      %1689 = vmatprep.subr.mxu0 0.0
      %1690 = vmatpush1.msra.mxu0 0.0
      %1691 = vmatprep.subr.mxu0 0.0
      %1692 = vmatpush1.msra.mxu0 0.0
      %1693 = vmatprep.subr.mxu0 0.0
      %1694 = vmatpush1.msra.mxu0 0.0
      %1695 = vmatprep.subr.mxu0 0.0
      %1696 = vmatpush1.msra.mxu0 0.0
      %1697 = vmatprep.subr.mxu0 0.0
      %1698 = vmatpush1.msra.mxu0 0.0
      %1699 = vmatprep.subr.mxu0 0.0
      %1700 = vmatpush1.msra.mxu0 0.0
      %1701 = vmatprep.subr.mxu0 0.0
      %1702 = vmatpush1.msra.mxu0 0.0
      %1703 = vmatprep.subr.mxu0 0.0
      %1704 = vmatpush1.msra.mxu0 0.0
      %1705 = vmatprep.subr.mxu0 0.0
      %1706 = vmatpush1.msra.mxu0 0.0
      %1707 = vmatprep.subr.mxu0 0.0
      %1708 = vmatpush1.msra.mxu0 0.0
      %1709 = vmatprep.subr.mxu0 0.0
      %1710 = vmatpush1.msra.mxu0 0.0
      %1711 = vmatprep.subr.mxu0 0.0
      %1712 = vmatpush1.msra.mxu0 0.0
      %1713 = vmatprep.subr.mxu0 0.0
      %1714 = vmatpush1.msra.mxu0 0.0
      %1715 = vmatprep.subr.mxu0 0.0
      %1716 = vmatpush1.msra.mxu0 0.0
      %1717 = vmatprep.mubr.f32.mxu0 0.0
      %v1718 = vand.u32 %v1276, 4294901760
      %v1719 = vsub.f32 %v1276, %v1718
      %1720 = vmatmul.mubr.f32.gmra.mrb[0].mxu0 %v1719
      %v1721 = vpop.f32.mrb[0].mxu0
      %v1722 = vadd.f32 %v1584, %v1721
      %v1723 = vpop.f32.mrb[0].mxu0
      %1724 = vmatprep.mubr.f32.mxu0 0.0
      %v1725 = vand.u32 %v1279, 4294901760
      %v1726 = vsub.f32 %v1279, %v1725
      %1727 = vmatmul.mubr.f32.gmra.mrb[0].mxu0 %v1726
      %v1728 = vpop.f32.mrb[0].mxu0
      %v1729 = vadd.f32 %v1590, %v1728
      %v1730 = vpop.f32.mrb[0].mxu0
      %1731 = vmatprep.mubr.f32.mxu0 0.0
      %v1732 = vand.u32 %v1282, 4294901760
      %v1733 = vsub.f32 %v1282, %v1732
      %1734 = vmatmul.mubr.f32.gmra.mrb[0].mxu0 %v1733
      %v1735 = vpop.f32.mrb[0].mxu0
      %v1736 = vadd.f32 %v1596, %v1735
      %v1737 = vpop.f32.mrb[0].mxu0
      %1738 = vmatprep.mubr.f32.mxu0 0.0
      %v1739 = vand.u32 %v1285, 4294901760
      %v1740 = vsub.f32 %v1285, %v1739
      %1741 = vmatmul.mubr.f32.gmra.mrb[0].mxu0 %v1740
      %v1742 = vpop.f32.mrb[0].mxu0
      %v1743 = vadd.f32 %v1602, %v1742
      %v1744 = vpop.f32.mrb[0].mxu0
      %1745 = vmatprep.mubr.f32.mxu0 0.0
      %v1746 = vand.u32 %v1288, 4294901760
      %v1747 = vsub.f32 %v1288, %v1746
      %1748 = vmatmul.mubr.f32.gmra.mrb[0].mxu0 %v1747
      %v1749 = vpop.f32.mrb[0].mxu0
      %v1750 = vadd.f32 %v1608, %v1749
      %v1751 = vpop.f32.mrb[0].mxu0
      %1752 = vmatprep.mubr.f32.mxu0 0.0
      %v1753 = vand.u32 %v1291, 4294901760
      %v1754 = vsub.f32 %v1291, %v1753
      %1755 = vmatmul.mubr.f32.gmra.mrb[0].mxu0 %v1754
      %v1756 = vpop.f32.mrb[0].mxu0
      %v1757 = vadd.f32 %v1614, %v1756
      %v1758 = vpop.f32.mrb[0].mxu0
      %1759 = vmatprep.mubr.f32.mxu0 0.0
      %v1760 = vand.u32 %v1294, 4294901760
      %v1761 = vsub.f32 %v1294, %v1760
      %1762 = vmatmul.mubr.f32.gmra.mrb[0].mxu0 %v1761
      %v1763 = vpop.f32.mrb[0].mxu0
      %v1764 = vadd.f32 %v1620, %v1763
      %v1765 = vpop.f32.mrb[0].mxu0
      %1766 = vmatprep.mubr.f32.mxu0 0.0
      %v1767 = vand.u32 %v1297, 4294901760
      %v1768 = vsub.f32 %v1297, %v1767
      %1769 = vmatmul.mubr.f32.gmra.mrb[0].mxu0 %v1768
      %v1770 = vpop.f32.mrb[0].mxu0
      %v1771 = vadd.f32 %v1626, %v1770
      %v1772 = vpop.f32.mrb[0].mxu0
      %1773 = vdwg.mxu0
      %1774 = vmatprep.subr.mxu0 0.0
      %v1775 = vand.u32 %v1262, 4294901760
      %1776 = vmatpush1.msra.mxu0 %v1775
      %1777 = vmatprep.subr.mxu0 0.0
      %v1778 = vand.u32 %v1263, 4294901760
      %1779 = vmatpush1.msra.mxu0 %v1778
      %1780 = vmatprep.subr.mxu0 0.0
      %v1781 = vand.u32 %v1264, 4294901760
      %1782 = vmatpush1.msra.mxu0 %v1781
      %1783 = vmatprep.subr.mxu0 0.0
      %v1784 = vand.u32 %v1265, 4294901760
      %1785 = vmatpush1.msra.mxu0 %v1784
      %1786 = vmatprep.subr.mxu0 0.0
      %v1787 = vand.u32 %v1266, 4294901760
      %1788 = vmatpush1.msra.mxu0 %v1787
      %1789 = vmatprep.subr.mxu0 0.0
      %v1790 = vand.u32 %v1267, 4294901760
      %1791 = vmatpush1.msra.mxu0 %v1790
      %1792 = vmatprep.subr.mxu0 0.0
      %v1793 = vand.u32 %v1268, 4294901760
      %1794 = vmatpush1.msra.mxu0 %v1793
      %1795 = vmatprep.subr.mxu0 0.0
      %v1796 = vand.u32 %v1269, 4294901760
      %1797 = vmatpush1.msra.mxu0 %v1796
      %1798 = vmatprep.subr.mxu0 0.0
      %v1799 = vand.u32 %v1270, 4294901760
      %1800 = vmatpush1.msra.mxu0 %v1799
      %1801 = vmatprep.subr.mxu0 0.0
      %v1802 = vand.u32 %v1271, 4294901760
      %1803 = vmatpush1.msra.mxu0 %v1802
      %1804 = vmatprep.subr.mxu0 0.0
      %v1805 = vand.u32 %v1272, 4294901760
      %1806 = vmatpush1.msra.mxu0 %v1805
      %1807 = vmatprep.subr.mxu0 0.0
      %v1808 = vand.u32 %v1273, 4294901760
      %1809 = vmatpush1.msra.mxu0 %v1808
      %1810 = vmatprep.subr.mxu0 0.0
      %1811 = vmatpush1.msra.mxu0 0.0
      %1812 = vmatprep.subr.mxu0 0.0
      %1813 = vmatpush1.msra.mxu0 0.0
      %1814 = vmatprep.subr.mxu0 0.0
      %1815 = vmatpush1.msra.mxu0 0.0
      %1816 = vmatprep.subr.mxu0 0.0
      %1817 = vmatpush1.msra.mxu0 0.0
      %1818 = vmatprep.subr.mxu0 0.0
      %1819 = vmatpush1.msra.mxu0 0.0
      %1820 = vmatprep.subr.mxu0 0.0
      %1821 = vmatpush1.msra.mxu0 0.0
      %1822 = vmatprep.subr.mxu0 0.0
      %1823 = vmatpush1.msra.mxu0 0.0
      %1824 = vmatprep.subr.mxu0 0.0
      %1825 = vmatpush1.msra.mxu0 0.0
      %1826 = vmatprep.subr.mxu0 0.0
      %1827 = vmatpush1.msra.mxu0 0.0
      %1828 = vmatprep.subr.mxu0 0.0
      %1829 = vmatpush1.msra.mxu0 0.0
      %1830 = vmatprep.subr.mxu0 0.0
      %1831 = vmatpush1.msra.mxu0 0.0
      %1832 = vmatprep.subr.mxu0 0.0
      %1833 = vmatpush1.msra.mxu0 0.0
      %1834 = vmatprep.subr.mxu0 0.0
      %1835 = vmatpush1.msra.mxu0 0.0
      %1836 = vmatprep.subr.mxu0 0.0
      %1837 = vmatpush1.msra.mxu0 0.0
      %1838 = vmatprep.subr.mxu0 0.0
      %1839 = vmatpush1.msra.mxu0 0.0
      %1840 = vmatprep.subr.mxu0 0.0
      %1841 = vmatpush1.msra.mxu0 0.0
      %1842 = vmatprep.subr.mxu0 0.0
      %1843 = vmatpush1.msra.mxu0 0.0
      %1844 = vmatprep.subr.mxu0 0.0
      %1845 = vmatpush1.msra.mxu0 0.0
      %1846 = vmatprep.subr.mxu0 0.0
      %1847 = vmatpush1.msra.mxu0 0.0
      %1848 = vmatprep.subr.mxu0 0.0
      %1849 = vmatpush1.msra.mxu0 0.0
      %1850 = vmatprep.mubr.f32.mxu0 0.0
      %v1851 = vand.u32 %v1276, 4294901760
      %v1852 = vsub.f32 %v1276, %v1851
      %v1853 = vand.u32 %v1852, 4294901760
      %1854 = vmatmul.mubr.f32.gmra.mrb[0].mxu0 %v1853
      %v1855 = vpop.f32.mrb[0].mxu0
      %v1856 = vadd.f32 %v1722, %v1855
      %v1857 = vpop.f32.mrb[0].mxu0
      %1858 = vmatprep.mubr.f32.mxu0 0.0
      %v1859 = vand.u32 %v1279, 4294901760
      %v1860 = vsub.f32 %v1279, %v1859
      %v1861 = vand.u32 %v1860, 4294901760
      %1862 = vmatmul.mubr.f32.gmra.mrb[0].mxu0 %v1861
      %v1863 = vpop.f32.mrb[0].mxu0
      %v1864 = vadd.f32 %v1729, %v1863
      %v1865 = vpop.f32.mrb[0].mxu0
      %1866 = vmatprep.mubr.f32.mxu0 0.0
      %v1867 = vand.u32 %v1282, 4294901760
      %v1868 = vsub.f32 %v1282, %v1867
      %v1869 = vand.u32 %v1868, 4294901760
      %1870 = vmatmul.mubr.f32.gmra.mrb[0].mxu0 %v1869
      %v1871 = vpop.f32.mrb[0].mxu0
      %v1872 = vadd.f32 %v1736, %v1871
      %v1873 = vpop.f32.mrb[0].mxu0
      %1874 = vmatprep.mubr.f32.mxu0 0.0
      %v1875 = vand.u32 %v1285, 4294901760
      %v1876 = vsub.f32 %v1285, %v1875
      %v1877 = vand.u32 %v1876, 4294901760
      %1878 = vmatmul.mubr.f32.gmra.mrb[0].mxu0 %v1877
      %v1879 = vpop.f32.mrb[0].mxu0
      %v1880 = vadd.f32 %v1743, %v1879
      %v1881 = vpop.f32.mrb[0].mxu0
      %1882 = vmatprep.mubr.f32.mxu0 0.0
      %v1883 = vand.u32 %v1288, 4294901760
      %v1884 = vsub.f32 %v1288, %v1883
      %v1885 = vand.u32 %v1884, 4294901760
      %1886 = vmatmul.mubr.f32.gmra.mrb[0].mxu0 %v1885
      %v1887 = vpop.f32.mrb[0].mxu0
      %v1888 = vadd.f32 %v1750, %v1887
      %v1889 = vpop.f32.mrb[0].mxu0
      %1890 = vmatprep.mubr.f32.mxu0 0.0
      %v1891 = vand.u32 %v1291, 4294901760
      %v1892 = vsub.f32 %v1291, %v1891
      %v1893 = vand.u32 %v1892, 4294901760
      %1894 = vmatmul.mubr.f32.gmra.mrb[0].mxu0 %v1893
      %v1895 = vpop.f32.mrb[0].mxu0
      %v1896 = vadd.f32 %v1757, %v1895
      %v1897 = vpop.f32.mrb[0].mxu0
      %1898 = vmatprep.mubr.f32.mxu0 0.0
      %v1899 = vand.u32 %v1294, 4294901760
      %v1900 = vsub.f32 %v1294, %v1899
      %v1901 = vand.u32 %v1900, 4294901760
      %1902 = vmatmul.mubr.f32.gmra.mrb[0].mxu0 %v1901
      %v1903 = vpop.f32.mrb[0].mxu0
      %v1904 = vadd.f32 %v1764, %v1903
      %v1905 = vpop.f32.mrb[0].mxu0
      %1906 = vmatprep.mubr.f32.mxu0 0.0
      %v1907 = vand.u32 %v1297, 4294901760
      %v1908 = vsub.f32 %v1297, %v1907
      %v1909 = vand.u32 %v1908, 4294901760
      %1910 = vmatmul.mubr.f32.gmra.mrb[0].mxu0 %v1909
      %v1911 = vpop.f32.mrb[0].mxu0
      %v1912 = vadd.f32 %v1771, %v1911
      %v1913 = vpop.f32.mrb[0].mxu0
      %1914 = vdwg.mxu0
      %1915 = vmatprep.subr.mxu0 0.0
      %v1916 = vand.u32 %v1262, 4294901760
      %v1917 = vsub.f32 %v1262, %v1916
      %v1918 = vand.u32 %v1917, 4294901760
      %1919 = vmatpush1.msra.mxu0 %v1918
      %1920 = vmatprep.subr.mxu0 0.0
      %v1921 = vand.u32 %v1263, 4294901760
      %v1922 = vsub.f32 %v1263, %v1921
      %v1923 = vand.u32 %v1922, 4294901760
      %1924 = vmatpush1.msra.mxu0 %v1923
      %1925 = vmatprep.subr.mxu0 0.0
      %v1926 = vand.u32 %v1264, 4294901760
      %v1927 = vsub.f32 %v1264, %v1926
      %v1928 = vand.u32 %v1927, 4294901760
      %1929 = vmatpush1.msra.mxu0 %v1928
      %1930 = vmatprep.subr.mxu0 0.0
      %v1931 = vand.u32 %v1265, 4294901760
      %v1932 = vsub.f32 %v1265, %v1931
      %v1933 = vand.u32 %v1932, 4294901760
      %1934 = vmatpush1.msra.mxu0 %v1933
      %1935 = vmatprep.subr.mxu0 0.0
      %v1936 = vand.u32 %v1266, 4294901760
      %v1937 = vsub.f32 %v1266, %v1936
      %v1938 = vand.u32 %v1937, 4294901760
      %1939 = vmatpush1.msra.mxu0 %v1938
      %1940 = vmatprep.subr.mxu0 0.0
      %v1941 = vand.u32 %v1267, 4294901760
      %v1942 = vsub.f32 %v1267, %v1941
      %v1943 = vand.u32 %v1942, 4294901760
      %1944 = vmatpush1.msra.mxu0 %v1943
      %1945 = vmatprep.subr.mxu0 0.0
      %v1946 = vand.u32 %v1268, 4294901760
      %v1947 = vsub.f32 %v1268, %v1946
      %v1948 = vand.u32 %v1947, 4294901760
      %1949 = vmatpush1.msra.mxu0 %v1948
      %1950 = vmatprep.subr.mxu0 0.0
      %v1951 = vand.u32 %v1269, 4294901760
      %v1952 = vsub.f32 %v1269, %v1951
      %v1953 = vand.u32 %v1952, 4294901760
      %1954 = vmatpush1.msra.mxu0 %v1953
      %1955 = vmatprep.subr.mxu0 0.0
      %v1956 = vand.u32 %v1270, 4294901760
      %v1957 = vsub.f32 %v1270, %v1956
      %v1958 = vand.u32 %v1957, 4294901760
      %1959 = vmatpush1.msra.mxu0 %v1958
      %1960 = vmatprep.subr.mxu0 0.0
      %v1961 = vand.u32 %v1271, 4294901760
      %v1962 = vsub.f32 %v1271, %v1961
      %v1963 = vand.u32 %v1962, 4294901760
      %1964 = vmatpush1.msra.mxu0 %v1963
      %1965 = vmatprep.subr.mxu0 0.0
      %v1966 = vand.u32 %v1272, 4294901760
      %v1967 = vsub.f32 %v1272, %v1966
      %v1968 = vand.u32 %v1967, 4294901760
      %1969 = vmatpush1.msra.mxu0 %v1968
      %1970 = vmatprep.subr.mxu0 0.0
      %v1971 = vand.u32 %v1273, 4294901760
      %v1972 = vsub.f32 %v1273, %v1971
      %v1973 = vand.u32 %v1972, 4294901760
      %1974 = vmatpush1.msra.mxu0 %v1973
      %1975 = vmatprep.subr.mxu0 0.0
      %1976 = vmatpush1.msra.mxu0 0.0
      %1977 = vmatprep.subr.mxu0 0.0
      %1978 = vmatpush1.msra.mxu0 0.0
      %1979 = vmatprep.subr.mxu0 0.0
      %1980 = vmatpush1.msra.mxu0 0.0
      %1981 = vmatprep.subr.mxu0 0.0
      %1982 = vmatpush1.msra.mxu0 0.0
      %1983 = vmatprep.subr.mxu0 0.0
      %1984 = vmatpush1.msra.mxu0 0.0
      %1985 = vmatprep.subr.mxu0 0.0
      %1986 = vmatpush1.msra.mxu0 0.0
      %1987 = vmatprep.subr.mxu0 0.0
      %1988 = vmatpush1.msra.mxu0 0.0
      %1989 = vmatprep.subr.mxu0 0.0
      %1990 = vmatpush1.msra.mxu0 0.0
      %1991 = vmatprep.subr.mxu0 0.0
      %1992 = vmatpush1.msra.mxu0 0.0
      %1993 = vmatprep.subr.mxu0 0.0
      %1994 = vmatpush1.msra.mxu0 0.0
      %1995 = vmatprep.subr.mxu0 0.0
      %1996 = vmatpush1.msra.mxu0 0.0
      %1997 = vmatprep.subr.mxu0 0.0
      %1998 = vmatpush1.msra.mxu0 0.0
      %1999 = vmatprep.subr.mxu0 0.0
      %2000 = vmatpush1.msra.mxu0 0.0
      %2001 = vmatprep.subr.mxu0 0.0
      %2002 = vmatpush1.msra.mxu0 0.0
      %2003 = vmatprep.subr.mxu0 0.0
      %2004 = vmatpush1.msra.mxu0 0.0
      %2005 = vmatprep.subr.mxu0 0.0
      %2006 = vmatpush1.msra.mxu0 0.0
      %2007 = vmatprep.subr.mxu0 0.0
      %2008 = vmatpush1.msra.mxu0 0.0
      %2009 = vmatprep.subr.mxu0 0.0
      %2010 = vmatpush1.msra.mxu0 0.0
      %2011 = vmatprep.subr.mxu0 0.0
      %2012 = vmatpush1.msra.mxu0 0.0
      %2013 = vmatprep.subr.mxu0 0.0
      %2014 = vmatpush1.msra.mxu0 0.0
      %2015 = vmatprep.mubr.f32.mxu0 0.0
      %v2016 = vand.u32 %v1276, 4294901760
      %2017 = vmatmul.mubr.f32.gmra.mrb[0].mxu0 %v2016
      %v2018 = vpop.f32.mrb[0].mxu0
      %v2019 = vadd.f32 %v1856, %v2018
      %v2020 = vpop.f32.mrb[0].mxu0
      %2021 = vmatprep.mubr.f32.mxu0 0.0
      %v2022 = vand.u32 %v1279, 4294901760
      %2023 = vmatmul.mubr.f32.gmra.mrb[0].mxu0 %v2022
      %v2024 = vpop.f32.mrb[0].mxu0
      %v2025 = vadd.f32 %v1864, %v2024
      %v2026 = vpop.f32.mrb[0].mxu0
      %2027 = vmatprep.mubr.f32.mxu0 0.0
      %v2028 = vand.u32 %v1282, 4294901760
      %2029 = vmatmul.mubr.f32.gmra.mrb[0].mxu0 %v2028
      %v2030 = vpop.f32.mrb[0].mxu0
      %v2031 = vadd.f32 %v1872, %v2030
      %v2032 = vpop.f32.mrb[0].mxu0
      %2033 = vmatprep.mubr.f32.mxu0 0.0
      %v2034 = vand.u32 %v1285, 4294901760
      %2035 = vmatmul.mubr.f32.gmra.mrb[0].mxu0 %v2034
      %v2036 = vpop.f32.mrb[0].mxu0
      %v2037 = vadd.f32 %v1880, %v2036
      %v2038 = vpop.f32.mrb[0].mxu0
      %2039 = vmatprep.mubr.f32.mxu0 0.0
      %v2040 = vand.u32 %v1288, 4294901760
      %2041 = vmatmul.mubr.f32.gmra.mrb[0].mxu0 %v2040
      %v2042 = vpop.f32.mrb[0].mxu0
      %v2043 = vadd.f32 %v1888, %v2042
      %v2044 = vpop.f32.mrb[0].mxu0
      %2045 = vmatprep.mubr.f32.mxu0 0.0
      %v2046 = vand.u32 %v1291, 4294901760
      %2047 = vmatmul.mubr.f32.gmra.mrb[0].mxu0 %v2046
      %v2048 = vpop.f32.mrb[0].mxu0
      %v2049 = vadd.f32 %v1896, %v2048
      %v2050 = vpop.f32.mrb[0].mxu0
      %2051 = vmatprep.mubr.f32.mxu0 0.0
      %v2052 = vand.u32 %v1294, 4294901760
      %2053 = vmatmul.mubr.f32.gmra.mrb[0].mxu0 %v2052
      %v2054 = vpop.f32.mrb[0].mxu0
      %v2055 = vadd.f32 %v1904, %v2054
      %v2056 = vpop.f32.mrb[0].mxu0
      %2057 = vmatprep.mubr.f32.mxu0 0.0
      %v2058 = vand.u32 %v1297, 4294901760
      %2059 = vmatmul.mubr.f32.gmra.mrb[0].mxu0 %v2058
      %v2060 = vpop.f32.mrb[0].mxu0
      %v2061 = vadd.f32 %v1912, %v2060
      %v2062 = vpop.f32.mrb[0].mxu0
      %2063 = vdwg.mxu0
      %2064 = vmatprep.subr.mxu0 0.0
      %v2065 = vand.u32 %v1262, 4294901760
      %2066 = vmatpush1.msra.mxu0 %v2065
      %2067 = vmatprep.subr.mxu0 0.0
      %v2068 = vand.u32 %v1263, 4294901760
      %2069 = vmatpush1.msra.mxu0 %v2068
      %2070 = vmatprep.subr.mxu0 0.0
      %v2071 = vand.u32 %v1264, 4294901760
      %2072 = vmatpush1.msra.mxu0 %v2071
      %2073 = vmatprep.subr.mxu0 0.0
      %v2074 = vand.u32 %v1265, 4294901760
      %2075 = vmatpush1.msra.mxu0 %v2074
      %2076 = vmatprep.subr.mxu0 0.0
      %v2077 = vand.u32 %v1266, 4294901760
      %2078 = vmatpush1.msra.mxu0 %v2077
      %2079 = vmatprep.subr.mxu0 0.0
      %v2080 = vand.u32 %v1267, 4294901760
      %2081 = vmatpush1.msra.mxu0 %v2080
      %2082 = vmatprep.subr.mxu0 0.0
      %v2083 = vand.u32 %v1268, 4294901760
      %2084 = vmatpush1.msra.mxu0 %v2083
      %2085 = vmatprep.subr.mxu0 0.0
      %v2086 = vand.u32 %v1269, 4294901760
      %2087 = vmatpush1.msra.mxu0 %v2086
      %2088 = vmatprep.subr.mxu0 0.0
      %v2089 = vand.u32 %v1270, 4294901760
      %2090 = vmatpush1.msra.mxu0 %v2089
      %2091 = vmatprep.subr.mxu0 0.0
      %v2092 = vand.u32 %v1271, 4294901760
      %2093 = vmatpush1.msra.mxu0 %v2092
      %2094 = vmatprep.subr.mxu0 0.0
      %v2095 = vand.u32 %v1272, 4294901760
      %2096 = vmatpush1.msra.mxu0 %v2095
      %2097 = vmatprep.subr.mxu0 0.0
      %v2098 = vand.u32 %v1273, 4294901760
      %2099 = vmatpush1.msra.mxu0 %v2098
      %2100 = vmatprep.subr.mxu0 0.0
      %2101 = vmatpush1.msra.mxu0 0.0
      %2102 = vmatprep.subr.mxu0 0.0
      %2103 = vmatpush1.msra.mxu0 0.0
      %2104 = vmatprep.subr.mxu0 0.0
      %2105 = vmatpush1.msra.mxu0 0.0
      %2106 = vmatprep.subr.mxu0 0.0
      %2107 = vmatpush1.msra.mxu0 0.0
      %2108 = vmatprep.subr.mxu0 0.0
      %2109 = vmatpush1.msra.mxu0 0.0
      %2110 = vmatprep.subr.mxu0 0.0
      %2111 = vmatpush1.msra.mxu0 0.0
      %2112 = vmatprep.subr.mxu0 0.0
      %2113 = vmatpush1.msra.mxu0 0.0
      %2114 = vmatprep.subr.mxu0 0.0
      %2115 = vmatpush1.msra.mxu0 0.0
      %2116 = vmatprep.subr.mxu0 0.0
      %2117 = vmatpush1.msra.mxu0 0.0
      %2118 = vmatprep.subr.mxu0 0.0
      %2119 = vmatpush1.msra.mxu0 0.0
      %2120 = vmatprep.subr.mxu0 0.0
      %2121 = vmatpush1.msra.mxu0 0.0
      %2122 = vmatprep.subr.mxu0 0.0
      %2123 = vmatpush1.msra.mxu0 0.0
      %2124 = vmatprep.subr.mxu0 0.0
      %2125 = vmatpush1.msra.mxu0 0.0
      %2126 = vmatprep.subr.mxu0 0.0
      %2127 = vmatpush1.msra.mxu0 0.0
      %2128 = vmatprep.subr.mxu0 0.0
      %2129 = vmatpush1.msra.mxu0 0.0
      %2130 = vmatprep.subr.mxu0 0.0
      %2131 = vmatpush1.msra.mxu0 0.0
      %2132 = vmatprep.subr.mxu0 0.0
      %2133 = vmatpush1.msra.mxu0 0.0
      %2134 = vmatprep.subr.mxu0 0.0
      %2135 = vmatpush1.msra.mxu0 0.0
      %2136 = vmatprep.subr.mxu0 0.0
      %2137 = vmatpush1.msra.mxu0 0.0
      %2138 = vmatprep.subr.mxu0 0.0
      %2139 = vmatpush1.msra.mxu0 0.0
      %2140 = vmatprep.mubr.f32.mxu0 0.0
      %v2141 = vand.u32 %v1276, 4294901760
      %2142 = vmatmul.mubr.f32.gmra.mrb[0].mxu0 %v2141
      %v2143 = vpop.f32.mrb[0].mxu0
      %v2144 = vadd.f32 %v2019, %v2143
      %v2145 = vpop.f32.mrb[0].mxu0
      %2146 = vmatprep.mubr.f32.mxu0 0.0
      %v2147 = vand.u32 %v1279, 4294901760
      %2148 = vmatmul.mubr.f32.gmra.mrb[0].mxu0 %v2147
      %v2149 = vpop.f32.mrb[0].mxu0
      %v2150 = vadd.f32 %v2025, %v2149
      %v2151 = vpop.f32.mrb[0].mxu0
      %2152 = vmatprep.mubr.f32.mxu0 0.0
      %v2153 = vand.u32 %v1282, 4294901760
      %2154 = vmatmul.mubr.f32.gmra.mrb[0].mxu0 %v2153
      %v2155 = vpop.f32.mrb[0].mxu0
      %v2156 = vadd.f32 %v2031, %v2155
      %v2157 = vpop.f32.mrb[0].mxu0
      %2158 = vmatprep.mubr.f32.mxu0 0.0
      %v2159 = vand.u32 %v1285, 4294901760
      %2160 = vmatmul.mubr.f32.gmra.mrb[0].mxu0 %v2159
      %v2161 = vpop.f32.mrb[0].mxu0
      %v2162 = vadd.f32 %v2037, %v2161
      %v2163 = vpop.f32.mrb[0].mxu0
      %2164 = vmatprep.mubr.f32.mxu0 0.0
      %v2165 = vand.u32 %v1288, 4294901760
      %2166 = vmatmul.mubr.f32.gmra.mrb[0].mxu0 %v2165
      %v2167 = vpop.f32.mrb[0].mxu0
      %v2168 = vadd.f32 %v2043, %v2167
      %v2169 = vpop.f32.mrb[0].mxu0
      %2170 = vmatprep.mubr.f32.mxu0 0.0
      %v2171 = vand.u32 %v1291, 4294901760
      %2172 = vmatmul.mubr.f32.gmra.mrb[0].mxu0 %v2171
      %v2173 = vpop.f32.mrb[0].mxu0
      %v2174 = vadd.f32 %v2049, %v2173
      %v2175 = vpop.f32.mrb[0].mxu0
      %2176 = vmatprep.mubr.f32.mxu0 0.0
      %v2177 = vand.u32 %v1294, 4294901760
      %2178 = vmatmul.mubr.f32.gmra.mrb[0].mxu0 %v2177
      %v2179 = vpop.f32.mrb[0].mxu0
      %v2180 = vadd.f32 %v2055, %v2179
      %v2181 = vpop.f32.mrb[0].mxu0
      %2182 = vmatprep.mubr.f32.mxu0 0.0
      %v2183 = vand.u32 %v1297, 4294901760
      %2184 = vmatmul.mubr.f32.gmra.mrb[0].mxu0 %v2183
      %v2185 = vpop.f32.mrb[0].mxu0
      %v2186 = vadd.f32 %v2061, %v2185
      %v2187 = vpop.f32.mrb[0].mxu0
      %2188 = vdwg.mxu0
      %v2189 = vmul.f32 %v461, %v469
      %v2190 = vmul.f32 %v462, %v470
      %v2191 = vmul.f32 %v463, %v471
      %v2192 = vmul.f32 %v464, %v472
      %v2193 = vmul.f32 %v465, %v473
      %v2194 = vmul.f32 %v466, %v474
      %v2195 = vmul.f32 %v467, %v475
      %v2196 = vmul.f32 %v468, %v476
      %v2197 = vld [vmem:[%s6] sm:$0xff]
      %v2198 = vld [vmem:[%s6 + $0x8] sm:$0xff]
      %v2199 = vld [vmem:[%s6 + $0x10] sm:$0xff]
      %v2200 = vld [vmem:[%s6 + $0x18] sm:$0xff]
      %v2201 = vld [vmem:[%s6 + $0x20] sm:$0xff]
      %v2202 = vld [vmem:[%s6 + $0x28] sm:$0xff]
      %v2203 = vld [vmem:[%s6 + $0x30] sm:$0xff]
      %v2204 = vld [vmem:[%s6 + $0x38] sm:$0xff]
      %2206 = vset.pattern.permute.xlu0 0
      %2207 = vperm.xlu0 %2206, %v2197
      %v2208 = vpop.permute.xlu0 %2207
      %2211 = vset.pattern.permute.xlu0 0
      %2212 = vperm.xlu0 %2211, %v2198
      %v2213 = vpop.permute.xlu0 %2212
      %2216 = vset.pattern.permute.xlu0 0
      %2217 = vperm.xlu0 %2216, %v2199
      %v2218 = vpop.permute.xlu0 %2217
      %2221 = vset.pattern.permute.xlu0 0
      %2222 = vperm.xlu0 %2221, %v2200
      %v2223 = vpop.permute.xlu0 %2222
      %2226 = vset.pattern.permute.xlu0 0
      %2227 = vperm.xlu0 %2226, %v2201
      %v2228 = vpop.permute.xlu0 %2227
      %2231 = vset.pattern.permute.xlu0 0
      %2232 = vperm.xlu0 %2231, %v2202
      %v2233 = vpop.permute.xlu0 %2232
      %2236 = vset.pattern.permute.xlu0 0
      %2237 = vperm.xlu0 %2236, %v2203
      %v2238 = vpop.permute.xlu0 %2237
      %2241 = vset.pattern.permute.xlu0 0
      %2242 = vperm.xlu0 %2241, %v2204
      %v2243 = vpop.permute.xlu0 %2242
      %v2246 = vsel %vm1274, %v2144, 0
      %v2249 = vsel %vm1274, %v2150, 0
      %v2252 = vsel %vm1274, %v2156, 0
      %v2255 = vsel %vm1274, %v2162, 0
      %v2258 = vsel %vm1274, %v2168, 0
      %v2261 = vsel %vm1274, %v2174, 0
      %v2264 = vsel %vm1274, %v2180, 0
      %v2267 = vsel %vm1274, %v2186, 0
      %v2269 = vand.u32 %v462, 4294901760
      %2270 = vmatprep.subr.mxu0 %v2269
      %v2271 = vand.u32 %v461, 4294901760
      %2272 = vmatpush1.msra.mxu0 %v2271
      %v2273 = vand.u32 %v464, 4294901760
      %2274 = vmatprep.subr.mxu0 %v2273
      %v2275 = vand.u32 %v463, 4294901760
      %2276 = vmatpush1.msra.mxu0 %v2275
      %v2277 = vand.u32 %v466, 4294901760
      %2278 = vmatprep.subr.mxu0 %v2277
      %v2279 = vand.u32 %v465, 4294901760
      %2280 = vmatpush1.msra.mxu0 %v2279
      %v2281 = vand.u32 %v468, 4294901760
      %2282 = vmatprep.subr.mxu0 %v2281
      %v2283 = vand.u32 %v467, 4294901760
      %2284 = vmatpush1.msra.mxu0 %v2283
      %v2285 = vand.u32 %v470, 4294901760
      %2286 = vmatprep.subr.mxu0 %v2285
      %v2287 = vand.u32 %v469, 4294901760
      %2288 = vmatpush1.msra.mxu0 %v2287
      %v2289 = vand.u32 %v472, 4294901760
      %2290 = vmatprep.subr.mxu0 %v2289
      %v2291 = vand.u32 %v471, 4294901760
      %2292 = vmatpush1.msra.mxu0 %v2291
      %v2293 = vand.u32 %v474, 4294901760
      %2294 = vmatprep.subr.mxu0 %v2293
      %v2295 = vand.u32 %v473, 4294901760
      %2296 = vmatpush1.msra.mxu0 %v2295
      %v2297 = vand.u32 %v476, 4294901760
      %2298 = vmatprep.subr.mxu0 %v2297
      %v2299 = vand.u32 %v475, 4294901760
      %2300 = vmatpush1.msra.mxu0 %v2299
      %v2301 = vand.u32 %v2190, 4294901760
      %2302 = vmatprep.subr.mxu0 %v2301
      %v2303 = vand.u32 %v2189, 4294901760
      %2304 = vmatpush1.msra.mxu0 %v2303
      %v2305 = vand.u32 %v2192, 4294901760
      %2306 = vmatprep.subr.mxu0 %v2305
      %v2307 = vand.u32 %v2191, 4294901760
      %2308 = vmatpush1.msra.mxu0 %v2307
      %v2309 = vand.u32 %v2194, 4294901760
      %2310 = vmatprep.subr.mxu0 %v2309
      %v2311 = vand.u32 %v2193, 4294901760
      %2312 = vmatpush1.msra.mxu0 %v2311
      %v2313 = vand.u32 %v2196, 4294901760
      %2314 = vmatprep.subr.mxu0 %v2313
      %v2315 = vand.u32 %v2195, 4294901760
      %2316 = vmatpush1.msra.mxu0 %v2315
      %2317 = vmatprep.subr.mxu0 0.0
      %2318 = vmatpush1.msra.mxu0 0.0
      %2319 = vmatprep.subr.mxu0 0.0
      %2320 = vmatpush1.msra.mxu0 0.0
      %2321 = vmatprep.subr.mxu0 0.0
      %2322 = vmatpush1.msra.mxu0 0.0
      %2323 = vmatprep.subr.mxu0 0.0
      %2324 = vmatpush1.msra.mxu0 0.0
      %2325 = vmatprep.subr.mxu0 0.0
      %2326 = vmatpush1.msra.mxu0 0.0
      %2327 = vmatprep.subr.mxu0 0.0
      %2328 = vmatpush1.msra.mxu0 0.0
      %2329 = vmatprep.subr.mxu0 0.0
      %2330 = vmatpush1.msra.mxu0 0.0
      %2331 = vmatprep.subr.mxu0 0.0
      %2332 = vmatpush1.msra.mxu0 0.0
      %2333 = vmatprep.subr.mxu0 0.0
      %2334 = vmatpush1.msra.mxu0 0.0
      %2335 = vmatprep.subr.mxu0 0.0
      %2336 = vmatpush1.msra.mxu0 0.0
      %2337 = vmatprep.subr.mxu0 0.0
      %2338 = vmatpush1.msra.mxu0 0.0
      %2339 = vmatprep.subr.mxu0 0.0
      %2340 = vmatpush1.msra.mxu0 0.0
      %2341 = vmatprep.subr.mxu0 0.0
      %2342 = vmatpush1.msra.mxu0 0.0
      %2343 = vmatprep.subr.mxu0 0.0
      %2344 = vmatpush1.msra.mxu0 0.0
      %2345 = vmatprep.subr.mxu0 0.0
      %2346 = vmatpush1.msra.mxu0 0.0
      %2347 = vmatprep.subr.mxu0 0.0
      %2348 = vmatpush1.msra.mxu0 0.0
      %2349 = vmatprep.subr.mxu0 0.0
      %2350 = vmatpush1.msra.mxu0 0.0
      %2351 = vmatprep.subr.mxu0 0.0
      %2352 = vmatpush1.msra.mxu0 0.0
      %2353 = vmatprep.subr.mxu0 0.0
      %2354 = vmatpush1.msra.mxu0 0.0
      %2355 = vmatprep.subr.mxu0 0.0
      %2356 = vmatpush1.msra.mxu0 0.0
      %2357 = vmatprep.mubr.f32.mxu0 0.0
      %v2358 = vand.u32 %v2246, 4294901760
      %v2359 = vsub.f32 %v2246, %v2358
      %v2360 = vand.u32 %v2359, 4294901760
      %v2361 = vsub.f32 %v2359, %v2360
      %v2362 = vand.u32 %v2361, 4294901760
      %2363 = vmatmul.mubr.f32.gmra.mrb[0].mxu0 %v2362
      %v2364 = vpop.f32.mrb[0].mxu0
      %v2365 = vadd.f32 %v2208, %v2364
      %v2366 = vpop.f32.mrb[0].mxu0
      %v2367 = vadd.f32 %v2208, %v2366
      %2368 = vmatprep.mubr.f32.mxu0 0.0
      %v2369 = vand.u32 %v2249, 4294901760
      %v2370 = vsub.f32 %v2249, %v2369
      %v2371 = vand.u32 %v2370, 4294901760
      %v2372 = vsub.f32 %v2370, %v2371
      %v2373 = vand.u32 %v2372, 4294901760
      %2374 = vmatmul.mubr.f32.gmra.mrb[0].mxu0 %v2373
      %v2375 = vpop.f32.mrb[0].mxu0
      %v2376 = vadd.f32 %v2213, %v2375
      %v2377 = vpop.f32.mrb[0].mxu0
      %v2378 = vadd.f32 %v2213, %v2377
      %2379 = vmatprep.mubr.f32.mxu0 0.0
      %v2380 = vand.u32 %v2252, 4294901760
      %v2381 = vsub.f32 %v2252, %v2380
      %v2382 = vand.u32 %v2381, 4294901760
      %v2383 = vsub.f32 %v2381, %v2382
      %v2384 = vand.u32 %v2383, 4294901760
      %2385 = vmatmul.mubr.f32.gmra.mrb[0].mxu0 %v2384
      %v2386 = vpop.f32.mrb[0].mxu0
      %v2387 = vadd.f32 %v2218, %v2386
      %v2388 = vpop.f32.mrb[0].mxu0
      %v2389 = vadd.f32 %v2218, %v2388
      %2390 = vmatprep.mubr.f32.mxu0 0.0
      %v2391 = vand.u32 %v2255, 4294901760
      %v2392 = vsub.f32 %v2255, %v2391
      %v2393 = vand.u32 %v2392, 4294901760
      %v2394 = vsub.f32 %v2392, %v2393
      %v2395 = vand.u32 %v2394, 4294901760
      %2396 = vmatmul.mubr.f32.gmra.mrb[0].mxu0 %v2395
      %v2397 = vpop.f32.mrb[0].mxu0
      %v2398 = vadd.f32 %v2223, %v2397
      %v2399 = vpop.f32.mrb[0].mxu0
      %v2400 = vadd.f32 %v2223, %v2399
      %2401 = vmatprep.mubr.f32.mxu0 0.0
      %v2402 = vand.u32 %v2258, 4294901760
      %v2403 = vsub.f32 %v2258, %v2402
      %v2404 = vand.u32 %v2403, 4294901760
      %v2405 = vsub.f32 %v2403, %v2404
      %v2406 = vand.u32 %v2405, 4294901760
      %2407 = vmatmul.mubr.f32.gmra.mrb[0].mxu0 %v2406
      %v2408 = vpop.f32.mrb[0].mxu0
      %v2409 = vadd.f32 %v2228, %v2408
      %v2410 = vpop.f32.mrb[0].mxu0
      %v2411 = vadd.f32 %v2228, %v2410
      %2412 = vmatprep.mubr.f32.mxu0 0.0
      %v2413 = vand.u32 %v2261, 4294901760
      %v2414 = vsub.f32 %v2261, %v2413
      %v2415 = vand.u32 %v2414, 4294901760
      %v2416 = vsub.f32 %v2414, %v2415
      %v2417 = vand.u32 %v2416, 4294901760
      %2418 = vmatmul.mubr.f32.gmra.mrb[0].mxu0 %v2417
      %v2419 = vpop.f32.mrb[0].mxu0
      %v2420 = vadd.f32 %v2233, %v2419
      %v2421 = vpop.f32.mrb[0].mxu0
      %v2422 = vadd.f32 %v2233, %v2421
      %2423 = vmatprep.mubr.f32.mxu0 0.0
      %v2424 = vand.u32 %v2264, 4294901760
      %v2425 = vsub.f32 %v2264, %v2424
      %v2426 = vand.u32 %v2425, 4294901760
      %v2427 = vsub.f32 %v2425, %v2426
      %v2428 = vand.u32 %v2427, 4294901760
      %2429 = vmatmul.mubr.f32.gmra.mrb[0].mxu0 %v2428
      %v2430 = vpop.f32.mrb[0].mxu0
      %v2431 = vadd.f32 %v2238, %v2430
      %v2432 = vpop.f32.mrb[0].mxu0
      %v2433 = vadd.f32 %v2238, %v2432
      %2434 = vmatprep.mubr.f32.mxu0 0.0
      %v2435 = vand.u32 %v2267, 4294901760
      %v2436 = vsub.f32 %v2267, %v2435
      %v2437 = vand.u32 %v2436, 4294901760
      %v2438 = vsub.f32 %v2436, %v2437
      %v2439 = vand.u32 %v2438, 4294901760
      %2440 = vmatmul.mubr.f32.gmra.mrb[0].mxu0 %v2439
      %v2441 = vpop.f32.mrb[0].mxu0
      %v2442 = vadd.f32 %v2243, %v2441
      %v2443 = vpop.f32.mrb[0].mxu0
      %v2444 = vadd.f32 %v2243, %v2443
      %2445 = vdwg.mxu0
      %v2446 = vand.u32 %v462, 4294901760
      %v2447 = vsub.f32 %v462, %v2446
      %v2448 = vand.u32 %v2447, 4294901760
      %v2449 = vsub.f32 %v2447, %v2448
      %v2450 = vand.u32 %v2449, 4294901760
      %2451 = vmatprep.subr.mxu0 %v2450
      %v2452 = vand.u32 %v461, 4294901760
      %v2453 = vsub.f32 %v461, %v2452
      %v2454 = vand.u32 %v2453, 4294901760
      %v2455 = vsub.f32 %v2453, %v2454
      %v2456 = vand.u32 %v2455, 4294901760
      %2457 = vmatpush1.msra.mxu0 %v2456
      %v2458 = vand.u32 %v464, 4294901760
      %v2459 = vsub.f32 %v464, %v2458
      %v2460 = vand.u32 %v2459, 4294901760
      %v2461 = vsub.f32 %v2459, %v2460
      %v2462 = vand.u32 %v2461, 4294901760
      %2463 = vmatprep.subr.mxu0 %v2462
      %v2464 = vand.u32 %v463, 4294901760
      %v2465 = vsub.f32 %v463, %v2464
      %v2466 = vand.u32 %v2465, 4294901760
      %v2467 = vsub.f32 %v2465, %v2466
      %v2468 = vand.u32 %v2467, 4294901760
      %2469 = vmatpush1.msra.mxu0 %v2468
      %v2470 = vand.u32 %v466, 4294901760
      %v2471 = vsub.f32 %v466, %v2470
      %v2472 = vand.u32 %v2471, 4294901760
      %v2473 = vsub.f32 %v2471, %v2472
      %v2474 = vand.u32 %v2473, 4294901760
      %2475 = vmatprep.subr.mxu0 %v2474
      %v2476 = vand.u32 %v465, 4294901760
      %v2477 = vsub.f32 %v465, %v2476
      %v2478 = vand.u32 %v2477, 4294901760
      %v2479 = vsub.f32 %v2477, %v2478
      %v2480 = vand.u32 %v2479, 4294901760
      %2481 = vmatpush1.msra.mxu0 %v2480
      %v2482 = vand.u32 %v468, 4294901760
      %v2483 = vsub.f32 %v468, %v2482
      %v2484 = vand.u32 %v2483, 4294901760
      %v2485 = vsub.f32 %v2483, %v2484
      %v2486 = vand.u32 %v2485, 4294901760
      %2487 = vmatprep.subr.mxu0 %v2486
      %v2488 = vand.u32 %v467, 4294901760
      %v2489 = vsub.f32 %v467, %v2488
      %v2490 = vand.u32 %v2489, 4294901760
      %v2491 = vsub.f32 %v2489, %v2490
      %v2492 = vand.u32 %v2491, 4294901760
      %2493 = vmatpush1.msra.mxu0 %v2492
      %v2494 = vand.u32 %v470, 4294901760
      %v2495 = vsub.f32 %v470, %v2494
      %v2496 = vand.u32 %v2495, 4294901760
      %v2497 = vsub.f32 %v2495, %v2496
      %v2498 = vand.u32 %v2497, 4294901760
      %2499 = vmatprep.subr.mxu0 %v2498
      %v2500 = vand.u32 %v469, 4294901760
      %v2501 = vsub.f32 %v469, %v2500
      %v2502 = vand.u32 %v2501, 4294901760
      %v2503 = vsub.f32 %v2501, %v2502
      %v2504 = vand.u32 %v2503, 4294901760
      %2505 = vmatpush1.msra.mxu0 %v2504
      %v2506 = vand.u32 %v472, 4294901760
      %v2507 = vsub.f32 %v472, %v2506
      %v2508 = vand.u32 %v2507, 4294901760
      %v2509 = vsub.f32 %v2507, %v2508
      %v2510 = vand.u32 %v2509, 4294901760
      %2511 = vmatprep.subr.mxu0 %v2510
      %v2512 = vand.u32 %v471, 4294901760
      %v2513 = vsub.f32 %v471, %v2512
      %v2514 = vand.u32 %v2513, 4294901760
      %v2515 = vsub.f32 %v2513, %v2514
      %v2516 = vand.u32 %v2515, 4294901760
      %2517 = vmatpush1.msra.mxu0 %v2516
      %v2518 = vand.u32 %v474, 4294901760
      %v2519 = vsub.f32 %v474, %v2518
      %v2520 = vand.u32 %v2519, 4294901760
      %v2521 = vsub.f32 %v2519, %v2520
      %v2522 = vand.u32 %v2521, 4294901760
      %2523 = vmatprep.subr.mxu0 %v2522
      %v2524 = vand.u32 %v473, 4294901760
      %v2525 = vsub.f32 %v473, %v2524
      %v2526 = vand.u32 %v2525, 4294901760
      %v2527 = vsub.f32 %v2525, %v2526
      %v2528 = vand.u32 %v2527, 4294901760
      %2529 = vmatpush1.msra.mxu0 %v2528
      %v2530 = vand.u32 %v476, 4294901760
      %v2531 = vsub.f32 %v476, %v2530
      %v2532 = vand.u32 %v2531, 4294901760
      %v2533 = vsub.f32 %v2531, %v2532
      %v2534 = vand.u32 %v2533, 4294901760
      %2535 = vmatprep.subr.mxu0 %v2534
      %v2536 = vand.u32 %v475, 4294901760
      %v2537 = vsub.f32 %v475, %v2536
      %v2538 = vand.u32 %v2537, 4294901760
      %v2539 = vsub.f32 %v2537, %v2538
      %v2540 = vand.u32 %v2539, 4294901760
      %2541 = vmatpush1.msra.mxu0 %v2540
      %v2542 = vand.u32 %v2190, 4294901760
      %v2543 = vsub.f32 %v2190, %v2542
      %v2544 = vand.u32 %v2543, 4294901760
      %v2545 = vsub.f32 %v2543, %v2544
      %v2546 = vand.u32 %v2545, 4294901760
      %2547 = vmatprep.subr.mxu0 %v2546
      %v2548 = vand.u32 %v2189, 4294901760
      %v2549 = vsub.f32 %v2189, %v2548
      %v2550 = vand.u32 %v2549, 4294901760
      %v2551 = vsub.f32 %v2549, %v2550
      %v2552 = vand.u32 %v2551, 4294901760
      %2553 = vmatpush1.msra.mxu0 %v2552
      %v2554 = vand.u32 %v2192, 4294901760
      %v2555 = vsub.f32 %v2192, %v2554
      %v2556 = vand.u32 %v2555, 4294901760
      %v2557 = vsub.f32 %v2555, %v2556
      %v2558 = vand.u32 %v2557, 4294901760
      %2559 = vmatprep.subr.mxu0 %v2558
      %v2560 = vand.u32 %v2191, 4294901760
      %v2561 = vsub.f32 %v2191, %v2560
      %v2562 = vand.u32 %v2561, 4294901760
      %v2563 = vsub.f32 %v2561, %v2562
      %v2564 = vand.u32 %v2563, 4294901760
      %2565 = vmatpush1.msra.mxu0 %v2564
      %v2566 = vand.u32 %v2194, 4294901760
      %v2567 = vsub.f32 %v2194, %v2566
      %v2568 = vand.u32 %v2567, 4294901760
      %v2569 = vsub.f32 %v2567, %v2568
      %v2570 = vand.u32 %v2569, 4294901760
      %2571 = vmatprep.subr.mxu0 %v2570
      %v2572 = vand.u32 %v2193, 4294901760
      %v2573 = vsub.f32 %v2193, %v2572
      %v2574 = vand.u32 %v2573, 4294901760
      %v2575 = vsub.f32 %v2573, %v2574
      %v2576 = vand.u32 %v2575, 4294901760
      %2577 = vmatpush1.msra.mxu0 %v2576
      %v2578 = vand.u32 %v2196, 4294901760
      %v2579 = vsub.f32 %v2196, %v2578
      %v2580 = vand.u32 %v2579, 4294901760
      %v2581 = vsub.f32 %v2579, %v2580
      %v2582 = vand.u32 %v2581, 4294901760
      %2583 = vmatprep.subr.mxu0 %v2582
      %v2584 = vand.u32 %v2195, 4294901760
      %v2585 = vsub.f32 %v2195, %v2584
      %v2586 = vand.u32 %v2585, 4294901760
      %v2587 = vsub.f32 %v2585, %v2586
      %v2588 = vand.u32 %v2587, 4294901760
      %2589 = vmatpush1.msra.mxu0 %v2588
      %2590 = vmatprep.subr.mxu0 0.0
      %2591 = vmatpush1.msra.mxu0 0.0
      %2592 = vmatprep.subr.mxu0 0.0
      %2593 = vmatpush1.msra.mxu0 0.0
      %2594 = vmatprep.subr.mxu0 0.0
      %2595 = vmatpush1.msra.mxu0 0.0
      %2596 = vmatprep.subr.mxu0 0.0
      %2597 = vmatpush1.msra.mxu0 0.0
      %2598 = vmatprep.subr.mxu0 0.0
      %2599 = vmatpush1.msra.mxu0 0.0
      %2600 = vmatprep.subr.mxu0 0.0
      %2601 = vmatpush1.msra.mxu0 0.0
      %2602 = vmatprep.subr.mxu0 0.0
      %2603 = vmatpush1.msra.mxu0 0.0
      %2604 = vmatprep.subr.mxu0 0.0
      %2605 = vmatpush1.msra.mxu0 0.0
      %2606 = vmatprep.subr.mxu0 0.0
      %2607 = vmatpush1.msra.mxu0 0.0
      %2608 = vmatprep.subr.mxu0 0.0
      %2609 = vmatpush1.msra.mxu0 0.0
      %2610 = vmatprep.subr.mxu0 0.0
      %2611 = vmatpush1.msra.mxu0 0.0
      %2612 = vmatprep.subr.mxu0 0.0
      %2613 = vmatpush1.msra.mxu0 0.0
      %2614 = vmatprep.subr.mxu0 0.0
      %2615 = vmatpush1.msra.mxu0 0.0
      %2616 = vmatprep.subr.mxu0 0.0
      %2617 = vmatpush1.msra.mxu0 0.0
      %2618 = vmatprep.subr.mxu0 0.0
      %2619 = vmatpush1.msra.mxu0 0.0
      %2620 = vmatprep.subr.mxu0 0.0
      %2621 = vmatpush1.msra.mxu0 0.0
      %2622 = vmatprep.subr.mxu0 0.0
      %2623 = vmatpush1.msra.mxu0 0.0
      %2624 = vmatprep.subr.mxu0 0.0
      %2625 = vmatpush1.msra.mxu0 0.0
      %2626 = vmatprep.subr.mxu0 0.0
      %2627 = vmatpush1.msra.mxu0 0.0
      %2628 = vmatprep.subr.mxu0 0.0
      %2629 = vmatpush1.msra.mxu0 0.0
      %2630 = vmatprep.mubr.f32.mxu0 0.0
      %v2631 = vand.u32 %v2246, 4294901760
      %2632 = vmatmul.mubr.f32.gmra.mrb[0].mxu0 %v2631
      %v2633 = vpop.f32.mrb[0].mxu0
      %v2634 = vadd.f32 %v2365, %v2633
      %v2635 = vpop.f32.mrb[0].mxu0
      %v2636 = vadd.f32 %v2367, %v2635
      %2637 = vmatprep.mubr.f32.mxu0 0.0
      %v2638 = vand.u32 %v2249, 4294901760
      %2639 = vmatmul.mubr.f32.gmra.mrb[0].mxu0 %v2638
      %v2640 = vpop.f32.mrb[0].mxu0
      %v2641 = vadd.f32 %v2376, %v2640
      %v2642 = vpop.f32.mrb[0].mxu0
      %v2643 = vadd.f32 %v2378, %v2642
      %2644 = vmatprep.mubr.f32.mxu0 0.0
      %v2645 = vand.u32 %v2252, 4294901760
      %2646 = vmatmul.mubr.f32.gmra.mrb[0].mxu0 %v2645
      %v2647 = vpop.f32.mrb[0].mxu0
      %v2648 = vadd.f32 %v2387, %v2647
      %v2649 = vpop.f32.mrb[0].mxu0
      %v2650 = vadd.f32 %v2389, %v2649
      %2651 = vmatprep.mubr.f32.mxu0 0.0
      %v2652 = vand.u32 %v2255, 4294901760
      %2653 = vmatmul.mubr.f32.gmra.mrb[0].mxu0 %v2652
      %v2654 = vpop.f32.mrb[0].mxu0
      %v2655 = vadd.f32 %v2398, %v2654
      %v2656 = vpop.f32.mrb[0].mxu0
      %v2657 = vadd.f32 %v2400, %v2656
      %2658 = vmatprep.mubr.f32.mxu0 0.0
      %v2659 = vand.u32 %v2258, 4294901760
      %2660 = vmatmul.mubr.f32.gmra.mrb[0].mxu0 %v2659
      %v2661 = vpop.f32.mrb[0].mxu0
      %v2662 = vadd.f32 %v2409, %v2661
      %v2663 = vpop.f32.mrb[0].mxu0
      %v2664 = vadd.f32 %v2411, %v2663
      %2665 = vmatprep.mubr.f32.mxu0 0.0
      %v2666 = vand.u32 %v2261, 4294901760
      %2667 = vmatmul.mubr.f32.gmra.mrb[0].mxu0 %v2666
      %v2668 = vpop.f32.mrb[0].mxu0
      %v2669 = vadd.f32 %v2420, %v2668
      %v2670 = vpop.f32.mrb[0].mxu0
      %v2671 = vadd.f32 %v2422, %v2670
      %2672 = vmatprep.mubr.f32.mxu0 0.0
      %v2673 = vand.u32 %v2264, 4294901760
      %2674 = vmatmul.mubr.f32.gmra.mrb[0].mxu0 %v2673
      %v2675 = vpop.f32.mrb[0].mxu0
      %v2676 = vadd.f32 %v2431, %v2675
      %v2677 = vpop.f32.mrb[0].mxu0
      %v2678 = vadd.f32 %v2433, %v2677
      %2679 = vmatprep.mubr.f32.mxu0 0.0
      %v2680 = vand.u32 %v2267, 4294901760
      %2681 = vmatmul.mubr.f32.gmra.mrb[0].mxu0 %v2680
      %v2682 = vpop.f32.mrb[0].mxu0
      %v2683 = vadd.f32 %v2442, %v2682
      %v2684 = vpop.f32.mrb[0].mxu0
      %v2685 = vadd.f32 %v2444, %v2684
      %2686 = vdwg.mxu0
      %v2687 = vand.u32 %v462, 4294901760
      %v2688 = vsub.f32 %v462, %v2687
      %2689 = vmatprep.subr.mxu0 %v2688
      %v2690 = vand.u32 %v461, 4294901760
      %v2691 = vsub.f32 %v461, %v2690
      %2692 = vmatpush1.msra.mxu0 %v2691
      %v2693 = vand.u32 %v464, 4294901760
      %v2694 = vsub.f32 %v464, %v2693
      %2695 = vmatprep.subr.mxu0 %v2694
      %v2696 = vand.u32 %v463, 4294901760
      %v2697 = vsub.f32 %v463, %v2696
      %2698 = vmatpush1.msra.mxu0 %v2697
      %v2699 = vand.u32 %v466, 4294901760
      %v2700 = vsub.f32 %v466, %v2699
      %2701 = vmatprep.subr.mxu0 %v2700
      %v2702 = vand.u32 %v465, 4294901760
      %v2703 = vsub.f32 %v465, %v2702
      %2704 = vmatpush1.msra.mxu0 %v2703
      %v2705 = vand.u32 %v468, 4294901760
      %v2706 = vsub.f32 %v468, %v2705
      %2707 = vmatprep.subr.mxu0 %v2706
      %v2708 = vand.u32 %v467, 4294901760
      %v2709 = vsub.f32 %v467, %v2708
      %2710 = vmatpush1.msra.mxu0 %v2709
      %v2711 = vand.u32 %v470, 4294901760
      %v2712 = vsub.f32 %v470, %v2711
      %2713 = vmatprep.subr.mxu0 %v2712
      %v2714 = vand.u32 %v469, 4294901760
      %v2715 = vsub.f32 %v469, %v2714
      %2716 = vmatpush1.msra.mxu0 %v2715
      %v2717 = vand.u32 %v472, 4294901760
      %v2718 = vsub.f32 %v472, %v2717
      %2719 = vmatprep.subr.mxu0 %v2718
      %v2720 = vand.u32 %v471, 4294901760
      %v2721 = vsub.f32 %v471, %v2720
      %2722 = vmatpush1.msra.mxu0 %v2721
      %v2723 = vand.u32 %v474, 4294901760
      %v2724 = vsub.f32 %v474, %v2723
      %2725 = vmatprep.subr.mxu0 %v2724
      %v2726 = vand.u32 %v473, 4294901760
      %v2727 = vsub.f32 %v473, %v2726
      %2728 = vmatpush1.msra.mxu0 %v2727
      %v2729 = vand.u32 %v476, 4294901760
      %v2730 = vsub.f32 %v476, %v2729
      %2731 = vmatprep.subr.mxu0 %v2730
      %v2732 = vand.u32 %v475, 4294901760
      %v2733 = vsub.f32 %v475, %v2732
      %2734 = vmatpush1.msra.mxu0 %v2733
      %v2735 = vand.u32 %v2190, 4294901760
      %v2736 = vsub.f32 %v2190, %v2735
      %2737 = vmatprep.subr.mxu0 %v2736
      %v2738 = vand.u32 %v2189, 4294901760
      %v2739 = vsub.f32 %v2189, %v2738
      %2740 = vmatpush1.msra.mxu0 %v2739
      %v2741 = vand.u32 %v2192, 4294901760
      %v2742 = vsub.f32 %v2192, %v2741
      %2743 = vmatprep.subr.mxu0 %v2742
      %v2744 = vand.u32 %v2191, 4294901760
      %v2745 = vsub.f32 %v2191, %v2744
      %2746 = vmatpush1.msra.mxu0 %v2745
      %v2747 = vand.u32 %v2194, 4294901760
      %v2748 = vsub.f32 %v2194, %v2747
      %2749 = vmatprep.subr.mxu0 %v2748
      %v2750 = vand.u32 %v2193, 4294901760
      %v2751 = vsub.f32 %v2193, %v2750
      %2752 = vmatpush1.msra.mxu0 %v2751
      %v2753 = vand.u32 %v2196, 4294901760
      %v2754 = vsub.f32 %v2196, %v2753
      %2755 = vmatprep.subr.mxu0 %v2754
      %v2756 = vand.u32 %v2195, 4294901760
      %v2757 = vsub.f32 %v2195, %v2756
      %2758 = vmatpush1.msra.mxu0 %v2757
      %2759 = vmatprep.subr.mxu0 0.0
      %2760 = vmatpush1.msra.mxu0 0.0
      %2761 = vmatprep.subr.mxu0 0.0
      %2762 = vmatpush1.msra.mxu0 0.0
      %2763 = vmatprep.subr.mxu0 0.0
      %2764 = vmatpush1.msra.mxu0 0.0
      %2765 = vmatprep.subr.mxu0 0.0
      %2766 = vmatpush1.msra.mxu0 0.0
      %2767 = vmatprep.subr.mxu0 0.0
      %2768 = vmatpush1.msra.mxu0 0.0
      %2769 = vmatprep.subr.mxu0 0.0
      %2770 = vmatpush1.msra.mxu0 0.0
      %2771 = vmatprep.subr.mxu0 0.0
      %2772 = vmatpush1.msra.mxu0 0.0
      %2773 = vmatprep.subr.mxu0 0.0
      %2774 = vmatpush1.msra.mxu0 0.0
      %2775 = vmatprep.subr.mxu0 0.0
      %2776 = vmatpush1.msra.mxu0 0.0
      %2777 = vmatprep.subr.mxu0 0.0
      %2778 = vmatpush1.msra.mxu0 0.0
      %2779 = vmatprep.subr.mxu0 0.0
      %2780 = vmatpush1.msra.mxu0 0.0
      %2781 = vmatprep.subr.mxu0 0.0
      %2782 = vmatpush1.msra.mxu0 0.0
      %2783 = vmatprep.subr.mxu0 0.0
      %2784 = vmatpush1.msra.mxu0 0.0
      %2785 = vmatprep.subr.mxu0 0.0
      %2786 = vmatpush1.msra.mxu0 0.0
      %2787 = vmatprep.subr.mxu0 0.0
      %2788 = vmatpush1.msra.mxu0 0.0
      %2789 = vmatprep.subr.mxu0 0.0
      %2790 = vmatpush1.msra.mxu0 0.0
      %2791 = vmatprep.subr.mxu0 0.0
      %2792 = vmatpush1.msra.mxu0 0.0
      %2793 = vmatprep.subr.mxu0 0.0
      %2794 = vmatpush1.msra.mxu0 0.0
      %2795 = vmatprep.subr.mxu0 0.0
      %2796 = vmatpush1.msra.mxu0 0.0
      %2797 = vmatprep.subr.mxu0 0.0
      %2798 = vmatpush1.msra.mxu0 0.0
      %2799 = vmatprep.mubr.f32.mxu0 0.0
      %v2800 = vand.u32 %v2246, 4294901760
      %v2801 = vsub.f32 %v2246, %v2800
      %2802 = vmatmul.mubr.f32.gmra.mrb[0].mxu0 %v2801
      %v2803 = vpop.f32.mrb[0].mxu0
      %v2804 = vadd.f32 %v2634, %v2803
      %v2805 = vpop.f32.mrb[0].mxu0
      %v2806 = vadd.f32 %v2636, %v2805
      %2807 = vmatprep.mubr.f32.mxu0 0.0
      %v2808 = vand.u32 %v2249, 4294901760
      %v2809 = vsub.f32 %v2249, %v2808
      %2810 = vmatmul.mubr.f32.gmra.mrb[0].mxu0 %v2809
      %v2811 = vpop.f32.mrb[0].mxu0
      %v2812 = vadd.f32 %v2641, %v2811
      %v2813 = vpop.f32.mrb[0].mxu0
      %v2814 = vadd.f32 %v2643, %v2813
      %2815 = vmatprep.mubr.f32.mxu0 0.0
      %v2816 = vand.u32 %v2252, 4294901760
      %v2817 = vsub.f32 %v2252, %v2816
      %2818 = vmatmul.mubr.f32.gmra.mrb[0].mxu0 %v2817
      %v2819 = vpop.f32.mrb[0].mxu0
      %v2820 = vadd.f32 %v2648, %v2819
      %v2821 = vpop.f32.mrb[0].mxu0
      %v2822 = vadd.f32 %v2650, %v2821
      %2823 = vmatprep.mubr.f32.mxu0 0.0
      %v2824 = vand.u32 %v2255, 4294901760
      %v2825 = vsub.f32 %v2255, %v2824
      %2826 = vmatmul.mubr.f32.gmra.mrb[0].mxu0 %v2825
      %v2827 = vpop.f32.mrb[0].mxu0
      %v2828 = vadd.f32 %v2655, %v2827
      %v2829 = vpop.f32.mrb[0].mxu0
      %v2830 = vadd.f32 %v2657, %v2829
      %2831 = vmatprep.mubr.f32.mxu0 0.0
      %v2832 = vand.u32 %v2258, 4294901760
      %v2833 = vsub.f32 %v2258, %v2832
      %2834 = vmatmul.mubr.f32.gmra.mrb[0].mxu0 %v2833
      %v2835 = vpop.f32.mrb[0].mxu0
      %v2836 = vadd.f32 %v2662, %v2835
      %v2837 = vpop.f32.mrb[0].mxu0
      %v2838 = vadd.f32 %v2664, %v2837
      %2839 = vmatprep.mubr.f32.mxu0 0.0
      %v2840 = vand.u32 %v2261, 4294901760
      %v2841 = vsub.f32 %v2261, %v2840
      %2842 = vmatmul.mubr.f32.gmra.mrb[0].mxu0 %v2841
      %v2843 = vpop.f32.mrb[0].mxu0
      %v2844 = vadd.f32 %v2669, %v2843
      %v2845 = vpop.f32.mrb[0].mxu0
      %v2846 = vadd.f32 %v2671, %v2845
      %2847 = vmatprep.mubr.f32.mxu0 0.0
      %v2848 = vand.u32 %v2264, 4294901760
      %v2849 = vsub.f32 %v2264, %v2848
      %2850 = vmatmul.mubr.f32.gmra.mrb[0].mxu0 %v2849
      %v2851 = vpop.f32.mrb[0].mxu0
      %v2852 = vadd.f32 %v2676, %v2851
      %v2853 = vpop.f32.mrb[0].mxu0
      %v2854 = vadd.f32 %v2678, %v2853
      %2855 = vmatprep.mubr.f32.mxu0 0.0
      %v2856 = vand.u32 %v2267, 4294901760
      %v2857 = vsub.f32 %v2267, %v2856
      %2858 = vmatmul.mubr.f32.gmra.mrb[0].mxu0 %v2857
      %v2859 = vpop.f32.mrb[0].mxu0
      %v2860 = vadd.f32 %v2683, %v2859
      %v2861 = vpop.f32.mrb[0].mxu0
      %v2862 = vadd.f32 %v2685, %v2861
      %2863 = vdwg.mxu0
      %v2864 = vand.u32 %v462, 4294901760
      %2865 = vmatprep.subr.mxu0 %v2864
      %v2866 = vand.u32 %v461, 4294901760
      %2867 = vmatpush1.msra.mxu0 %v2866
      %v2868 = vand.u32 %v464, 4294901760
      %2869 = vmatprep.subr.mxu0 %v2868
      %v2870 = vand.u32 %v463, 4294901760
      %2871 = vmatpush1.msra.mxu0 %v2870
      %v2872 = vand.u32 %v466, 4294901760
      %2873 = vmatprep.subr.mxu0 %v2872
      %v2874 = vand.u32 %v465, 4294901760
      %2875 = vmatpush1.msra.mxu0 %v2874
      %v2876 = vand.u32 %v468, 4294901760
      %2877 = vmatprep.subr.mxu0 %v2876
      %v2878 = vand.u32 %v467, 4294901760
      %2879 = vmatpush1.msra.mxu0 %v2878
      %v2880 = vand.u32 %v470, 4294901760
      %2881 = vmatprep.subr.mxu0 %v2880
      %v2882 = vand.u32 %v469, 4294901760
      %2883 = vmatpush1.msra.mxu0 %v2882
      %v2884 = vand.u32 %v472, 4294901760
      %2885 = vmatprep.subr.mxu0 %v2884
      %v2886 = vand.u32 %v471, 4294901760
      %2887 = vmatpush1.msra.mxu0 %v2886
      %v2888 = vand.u32 %v474, 4294901760
      %2889 = vmatprep.subr.mxu0 %v2888
      %v2890 = vand.u32 %v473, 4294901760
      %2891 = vmatpush1.msra.mxu0 %v2890
      %v2892 = vand.u32 %v476, 4294901760
      %2893 = vmatprep.subr.mxu0 %v2892
      %v2894 = vand.u32 %v475, 4294901760
      %2895 = vmatpush1.msra.mxu0 %v2894
      %v2896 = vand.u32 %v2190, 4294901760
      %2897 = vmatprep.subr.mxu0 %v2896
      %v2898 = vand.u32 %v2189, 4294901760
      %2899 = vmatpush1.msra.mxu0 %v2898
      %v2900 = vand.u32 %v2192, 4294901760
      %2901 = vmatprep.subr.mxu0 %v2900
      %v2902 = vand.u32 %v2191, 4294901760
      %2903 = vmatpush1.msra.mxu0 %v2902
      %v2904 = vand.u32 %v2194, 4294901760
      %2905 = vmatprep.subr.mxu0 %v2904
      %v2906 = vand.u32 %v2193, 4294901760
      %2907 = vmatpush1.msra.mxu0 %v2906
      %v2908 = vand.u32 %v2196, 4294901760
      %2909 = vmatprep.subr.mxu0 %v2908
      %v2910 = vand.u32 %v2195, 4294901760
      %2911 = vmatpush1.msra.mxu0 %v2910
      %2912 = vmatprep.subr.mxu0 0.0
      %2913 = vmatpush1.msra.mxu0 0.0
      %2914 = vmatprep.subr.mxu0 0.0
      %2915 = vmatpush1.msra.mxu0 0.0
      %2916 = vmatprep.subr.mxu0 0.0
      %2917 = vmatpush1.msra.mxu0 0.0
      %2918 = vmatprep.subr.mxu0 0.0
      %2919 = vmatpush1.msra.mxu0 0.0
      %2920 = vmatprep.subr.mxu0 0.0
      %2921 = vmatpush1.msra.mxu0 0.0
      %2922 = vmatprep.subr.mxu0 0.0
      %2923 = vmatpush1.msra.mxu0 0.0
      %2924 = vmatprep.subr.mxu0 0.0
      %2925 = vmatpush1.msra.mxu0 0.0
      %2926 = vmatprep.subr.mxu0 0.0
      %2927 = vmatpush1.msra.mxu0 0.0
      %2928 = vmatprep.subr.mxu0 0.0
      %2929 = vmatpush1.msra.mxu0 0.0
      %2930 = vmatprep.subr.mxu0 0.0
      %2931 = vmatpush1.msra.mxu0 0.0
      %2932 = vmatprep.subr.mxu0 0.0
      %2933 = vmatpush1.msra.mxu0 0.0
      %2934 = vmatprep.subr.mxu0 0.0
      %2935 = vmatpush1.msra.mxu0 0.0
      %2936 = vmatprep.subr.mxu0 0.0
      %2937 = vmatpush1.msra.mxu0 0.0
      %2938 = vmatprep.subr.mxu0 0.0
      %2939 = vmatpush1.msra.mxu0 0.0
      %2940 = vmatprep.subr.mxu0 0.0
      %2941 = vmatpush1.msra.mxu0 0.0
      %2942 = vmatprep.subr.mxu0 0.0
      %2943 = vmatpush1.msra.mxu0 0.0
      %2944 = vmatprep.subr.mxu0 0.0
      %2945 = vmatpush1.msra.mxu0 0.0
      %2946 = vmatprep.subr.mxu0 0.0
      %2947 = vmatpush1.msra.mxu0 0.0
      %2948 = vmatprep.subr.mxu0 0.0
      %2949 = vmatpush1.msra.mxu0 0.0
      %2950 = vmatprep.subr.mxu0 0.0
      %2951 = vmatpush1.msra.mxu0 0.0
      %2952 = vmatprep.mubr.f32.mxu0 0.0
      %v2953 = vand.u32 %v2246, 4294901760
      %v2954 = vsub.f32 %v2246, %v2953
      %v2955 = vand.u32 %v2954, 4294901760
      %2956 = vmatmul.mubr.f32.gmra.mrb[0].mxu0 %v2955
      %v2957 = vpop.f32.mrb[0].mxu0
      %v2958 = vadd.f32 %v2804, %v2957
      %v2959 = vpop.f32.mrb[0].mxu0
      %v2960 = vadd.f32 %v2806, %v2959
      %2961 = vmatprep.mubr.f32.mxu0 0.0
      %v2962 = vand.u32 %v2249, 4294901760
      %v2963 = vsub.f32 %v2249, %v2962
      %v2964 = vand.u32 %v2963, 4294901760
      %2965 = vmatmul.mubr.f32.gmra.mrb[0].mxu0 %v2964
      %v2966 = vpop.f32.mrb[0].mxu0
      %v2967 = vadd.f32 %v2812, %v2966
      %v2968 = vpop.f32.mrb[0].mxu0
      %v2969 = vadd.f32 %v2814, %v2968
      %2970 = vmatprep.mubr.f32.mxu0 0.0
      %v2971 = vand.u32 %v2252, 4294901760
      %v2972 = vsub.f32 %v2252, %v2971
      %v2973 = vand.u32 %v2972, 4294901760
      %2974 = vmatmul.mubr.f32.gmra.mrb[0].mxu0 %v2973
      %v2975 = vpop.f32.mrb[0].mxu0
      %v2976 = vadd.f32 %v2820, %v2975
      %v2977 = vpop.f32.mrb[0].mxu0
      %v2978 = vadd.f32 %v2822, %v2977
      %2979 = vmatprep.mubr.f32.mxu0 0.0
      %v2980 = vand.u32 %v2255, 4294901760
      %v2981 = vsub.f32 %v2255, %v2980
      %v2982 = vand.u32 %v2981, 4294901760
      %2983 = vmatmul.mubr.f32.gmra.mrb[0].mxu0 %v2982
      %v2984 = vpop.f32.mrb[0].mxu0
      %v2985 = vadd.f32 %v2828, %v2984
      %v2986 = vpop.f32.mrb[0].mxu0
      %v2987 = vadd.f32 %v2830, %v2986
      %2988 = vmatprep.mubr.f32.mxu0 0.0
      %v2989 = vand.u32 %v2258, 4294901760
      %v2990 = vsub.f32 %v2258, %v2989
      %v2991 = vand.u32 %v2990, 4294901760
      %2992 = vmatmul.mubr.f32.gmra.mrb[0].mxu0 %v2991
      %v2993 = vpop.f32.mrb[0].mxu0
      %v2994 = vadd.f32 %v2836, %v2993
      %v2995 = vpop.f32.mrb[0].mxu0
      %v2996 = vadd.f32 %v2838, %v2995
      %2997 = vmatprep.mubr.f32.mxu0 0.0
      %v2998 = vand.u32 %v2261, 4294901760
      %v2999 = vsub.f32 %v2261, %v2998
      %v3000 = vand.u32 %v2999, 4294901760
      %3001 = vmatmul.mubr.f32.gmra.mrb[0].mxu0 %v3000
      %v3002 = vpop.f32.mrb[0].mxu0
      %v3003 = vadd.f32 %v2844, %v3002
      %v3004 = vpop.f32.mrb[0].mxu0
      %v3005 = vadd.f32 %v2846, %v3004
      %3006 = vmatprep.mubr.f32.mxu0 0.0
      %v3007 = vand.u32 %v2264, 4294901760
      %v3008 = vsub.f32 %v2264, %v3007
      %v3009 = vand.u32 %v3008, 4294901760
      %3010 = vmatmul.mubr.f32.gmra.mrb[0].mxu0 %v3009
      %v3011 = vpop.f32.mrb[0].mxu0
      %v3012 = vadd.f32 %v2852, %v3011
      %v3013 = vpop.f32.mrb[0].mxu0
      %v3014 = vadd.f32 %v2854, %v3013
      %3015 = vmatprep.mubr.f32.mxu0 0.0
      %v3016 = vand.u32 %v2267, 4294901760
      %v3017 = vsub.f32 %v2267, %v3016
      %v3018 = vand.u32 %v3017, 4294901760
      %3019 = vmatmul.mubr.f32.gmra.mrb[0].mxu0 %v3018
      %v3020 = vpop.f32.mrb[0].mxu0
      %v3021 = vadd.f32 %v2860, %v3020
      %v3022 = vpop.f32.mrb[0].mxu0
      %v3023 = vadd.f32 %v2862, %v3022
      %3024 = vdwg.mxu0
      %v3025 = vand.u32 %v462, 4294901760
      %v3026 = vsub.f32 %v462, %v3025
      %v3027 = vand.u32 %v3026, 4294901760
      %3028 = vmatprep.subr.mxu0 %v3027
      %v3029 = vand.u32 %v461, 4294901760
      %v3030 = vsub.f32 %v461, %v3029
      %v3031 = vand.u32 %v3030, 4294901760
      %3032 = vmatpush1.msra.mxu0 %v3031
      %v3033 = vand.u32 %v464, 4294901760
      %v3034 = vsub.f32 %v464, %v3033
      %v3035 = vand.u32 %v3034, 4294901760
      %3036 = vmatprep.subr.mxu0 %v3035
      %v3037 = vand.u32 %v463, 4294901760
      %v3038 = vsub.f32 %v463, %v3037
      %v3039 = vand.u32 %v3038, 4294901760
      %3040 = vmatpush1.msra.mxu0 %v3039
      %v3041 = vand.u32 %v466, 4294901760
      %v3042 = vsub.f32 %v466, %v3041
      %v3043 = vand.u32 %v3042, 4294901760
      %3044 = vmatprep.subr.mxu0 %v3043
      %v3045 = vand.u32 %v465, 4294901760
      %v3046 = vsub.f32 %v465, %v3045
      %v3047 = vand.u32 %v3046, 4294901760
      %3048 = vmatpush1.msra.mxu0 %v3047
      %v3049 = vand.u32 %v468, 4294901760
      %v3050 = vsub.f32 %v468, %v3049
      %v3051 = vand.u32 %v3050, 4294901760
      %3052 = vmatprep.subr.mxu0 %v3051
      %v3053 = vand.u32 %v467, 4294901760
      %v3054 = vsub.f32 %v467, %v3053
      %v3055 = vand.u32 %v3054, 4294901760
      %3056 = vmatpush1.msra.mxu0 %v3055
      %v3057 = vand.u32 %v470, 4294901760
      %v3058 = vsub.f32 %v470, %v3057
      %v3059 = vand.u32 %v3058, 4294901760
      %3060 = vmatprep.subr.mxu0 %v3059
      %v3061 = vand.u32 %v469, 4294901760
      %v3062 = vsub.f32 %v469, %v3061
      %v3063 = vand.u32 %v3062, 4294901760
      %3064 = vmatpush1.msra.mxu0 %v3063
      %v3065 = vand.u32 %v472, 4294901760
      %v3066 = vsub.f32 %v472, %v3065
      %v3067 = vand.u32 %v3066, 4294901760
      %3068 = vmatprep.subr.mxu0 %v3067
      %v3069 = vand.u32 %v471, 4294901760
      %v3070 = vsub.f32 %v471, %v3069
      %v3071 = vand.u32 %v3070, 4294901760
      %3072 = vmatpush1.msra.mxu0 %v3071
      %v3073 = vand.u32 %v474, 4294901760
      %v3074 = vsub.f32 %v474, %v3073
      %v3075 = vand.u32 %v3074, 4294901760
      %3076 = vmatprep.subr.mxu0 %v3075
      %v3077 = vand.u32 %v473, 4294901760
      %v3078 = vsub.f32 %v473, %v3077
      %v3079 = vand.u32 %v3078, 4294901760
      %3080 = vmatpush1.msra.mxu0 %v3079
      %v3081 = vand.u32 %v476, 4294901760
      %v3082 = vsub.f32 %v476, %v3081
      %v3083 = vand.u32 %v3082, 4294901760
      %3084 = vmatprep.subr.mxu0 %v3083
      %v3085 = vand.u32 %v475, 4294901760
      %v3086 = vsub.f32 %v475, %v3085
      %v3087 = vand.u32 %v3086, 4294901760
      %3088 = vmatpush1.msra.mxu0 %v3087
      %v3089 = vand.u32 %v2190, 4294901760
      %v3090 = vsub.f32 %v2190, %v3089
      %v3091 = vand.u32 %v3090, 4294901760
      %3092 = vmatprep.subr.mxu0 %v3091
      %v3093 = vand.u32 %v2189, 4294901760
      %v3094 = vsub.f32 %v2189, %v3093
      %v3095 = vand.u32 %v3094, 4294901760
      %3096 = vmatpush1.msra.mxu0 %v3095
      %v3097 = vand.u32 %v2192, 4294901760
      %v3098 = vsub.f32 %v2192, %v3097
      %v3099 = vand.u32 %v3098, 4294901760
      %3100 = vmatprep.subr.mxu0 %v3099
      %v3101 = vand.u32 %v2191, 4294901760
      %v3102 = vsub.f32 %v2191, %v3101
      %v3103 = vand.u32 %v3102, 4294901760
      %3104 = vmatpush1.msra.mxu0 %v3103
      %v3105 = vand.u32 %v2194, 4294901760
      %v3106 = vsub.f32 %v2194, %v3105
      %v3107 = vand.u32 %v3106, 4294901760
      %3108 = vmatprep.subr.mxu0 %v3107
      %v3109 = vand.u32 %v2193, 4294901760
      %v3110 = vsub.f32 %v2193, %v3109
      %v3111 = vand.u32 %v3110, 4294901760
      %3112 = vmatpush1.msra.mxu0 %v3111
      %v3113 = vand.u32 %v2196, 4294901760
      %v3114 = vsub.f32 %v2196, %v3113
      %v3115 = vand.u32 %v3114, 4294901760
      %3116 = vmatprep.subr.mxu0 %v3115
      %v3117 = vand.u32 %v2195, 4294901760
      %v3118 = vsub.f32 %v2195, %v3117
      %v3119 = vand.u32 %v3118, 4294901760
      %3120 = vmatpush1.msra.mxu0 %v3119
      %3121 = vmatprep.subr.mxu0 0.0
      %3122 = vmatpush1.msra.mxu0 0.0
      %3123 = vmatprep.subr.mxu0 0.0
      %3124 = vmatpush1.msra.mxu0 0.0
      %3125 = vmatprep.subr.mxu0 0.0
      %3126 = vmatpush1.msra.mxu0 0.0
      %3127 = vmatprep.subr.mxu0 0.0
      %3128 = vmatpush1.msra.mxu0 0.0
      %3129 = vmatprep.subr.mxu0 0.0
      %3130 = vmatpush1.msra.mxu0 0.0
      %3131 = vmatprep.subr.mxu0 0.0
      %3132 = vmatpush1.msra.mxu0 0.0
      %3133 = vmatprep.subr.mxu0 0.0
      %3134 = vmatpush1.msra.mxu0 0.0
      %3135 = vmatprep.subr.mxu0 0.0
      %3136 = vmatpush1.msra.mxu0 0.0
      %3137 = vmatprep.subr.mxu0 0.0
      %3138 = vmatpush1.msra.mxu0 0.0
      %3139 = vmatprep.subr.mxu0 0.0
      %3140 = vmatpush1.msra.mxu0 0.0
      %3141 = vmatprep.subr.mxu0 0.0
      %3142 = vmatpush1.msra.mxu0 0.0
      %3143 = vmatprep.subr.mxu0 0.0
      %3144 = vmatpush1.msra.mxu0 0.0
      %3145 = vmatprep.subr.mxu0 0.0
      %3146 = vmatpush1.msra.mxu0 0.0
      %3147 = vmatprep.subr.mxu0 0.0
      %3148 = vmatpush1.msra.mxu0 0.0
      %3149 = vmatprep.subr.mxu0 0.0
      %3150 = vmatpush1.msra.mxu0 0.0
      %3151 = vmatprep.subr.mxu0 0.0
      %3152 = vmatpush1.msra.mxu0 0.0
      %3153 = vmatprep.subr.mxu0 0.0
      %3154 = vmatpush1.msra.mxu0 0.0
      %3155 = vmatprep.subr.mxu0 0.0
      %3156 = vmatpush1.msra.mxu0 0.0
      %3157 = vmatprep.subr.mxu0 0.0
      %3158 = vmatpush1.msra.mxu0 0.0
      %3159 = vmatprep.subr.mxu0 0.0
      %3160 = vmatpush1.msra.mxu0 0.0
      %3161 = vmatprep.mubr.f32.mxu0 0.0
      %v3162 = vand.u32 %v2246, 4294901760
      %3163 = vmatmul.mubr.f32.gmra.mrb[0].mxu0 %v3162
      %v3164 = vpop.f32.mrb[0].mxu0
      %v3165 = vadd.f32 %v2958, %v3164
      %v3166 = vpop.f32.mrb[0].mxu0
      %v3167 = vadd.f32 %v2960, %v3166
      %3168 = vmatprep.mubr.f32.mxu0 0.0
      %v3169 = vand.u32 %v2249, 4294901760
      %3170 = vmatmul.mubr.f32.gmra.mrb[0].mxu0 %v3169
      %v3171 = vpop.f32.mrb[0].mxu0
      %v3172 = vadd.f32 %v2967, %v3171
      %v3173 = vpop.f32.mrb[0].mxu0
      %v3174 = vadd.f32 %v2969, %v3173
      %3175 = vmatprep.mubr.f32.mxu0 0.0
      %v3176 = vand.u32 %v2252, 4294901760
      %3177 = vmatmul.mubr.f32.gmra.mrb[0].mxu0 %v3176
      %v3178 = vpop.f32.mrb[0].mxu0
      %v3179 = vadd.f32 %v2976, %v3178
      %v3180 = vpop.f32.mrb[0].mxu0
      %v3181 = vadd.f32 %v2978, %v3180
      %3182 = vmatprep.mubr.f32.mxu0 0.0
      %v3183 = vand.u32 %v2255, 4294901760
      %3184 = vmatmul.mubr.f32.gmra.mrb[0].mxu0 %v3183
      %v3185 = vpop.f32.mrb[0].mxu0
      %v3186 = vadd.f32 %v2985, %v3185
      %v3187 = vpop.f32.mrb[0].mxu0
      %v3188 = vadd.f32 %v2987, %v3187
      %3189 = vmatprep.mubr.f32.mxu0 0.0
      %v3190 = vand.u32 %v2258, 4294901760
      %3191 = vmatmul.mubr.f32.gmra.mrb[0].mxu0 %v3190
      %v3192 = vpop.f32.mrb[0].mxu0
      %v3193 = vadd.f32 %v2994, %v3192
      %v3194 = vpop.f32.mrb[0].mxu0
      %v3195 = vadd.f32 %v2996, %v3194
      %3196 = vmatprep.mubr.f32.mxu0 0.0
      %v3197 = vand.u32 %v2261, 4294901760
      %3198 = vmatmul.mubr.f32.gmra.mrb[0].mxu0 %v3197
      %v3199 = vpop.f32.mrb[0].mxu0
      %v3200 = vadd.f32 %v3003, %v3199
      %v3201 = vpop.f32.mrb[0].mxu0
      %v3202 = vadd.f32 %v3005, %v3201
      %3203 = vmatprep.mubr.f32.mxu0 0.0
      %v3204 = vand.u32 %v2264, 4294901760
      %3205 = vmatmul.mubr.f32.gmra.mrb[0].mxu0 %v3204
      %v3206 = vpop.f32.mrb[0].mxu0
      %v3207 = vadd.f32 %v3012, %v3206
      %v3208 = vpop.f32.mrb[0].mxu0
      %v3209 = vadd.f32 %v3014, %v3208
      %3210 = vmatprep.mubr.f32.mxu0 0.0
      %v3211 = vand.u32 %v2267, 4294901760
      %3212 = vmatmul.mubr.f32.gmra.mrb[0].mxu0 %v3211
      %v3213 = vpop.f32.mrb[0].mxu0
      %v3214 = vadd.f32 %v3021, %v3213
      %v3215 = vpop.f32.mrb[0].mxu0
      %v3216 = vadd.f32 %v3023, %v3215
      %3217 = vdwg.mxu0
      %v3218 = vand.u32 %v462, 4294901760
      %3219 = vmatprep.subr.mxu0 %v3218
      %v3220 = vand.u32 %v461, 4294901760
      %3221 = vmatpush1.msra.mxu0 %v3220
      %v3222 = vand.u32 %v464, 4294901760
      %3223 = vmatprep.subr.mxu0 %v3222
      %v3224 = vand.u32 %v463, 4294901760
      %3225 = vmatpush1.msra.mxu0 %v3224
      %v3226 = vand.u32 %v466, 4294901760
      %3227 = vmatprep.subr.mxu0 %v3226
      %v3228 = vand.u32 %v465, 4294901760
      %3229 = vmatpush1.msra.mxu0 %v3228
      %v3230 = vand.u32 %v468, 4294901760
      %3231 = vmatprep.subr.mxu0 %v3230
      %v3232 = vand.u32 %v467, 4294901760
      %3233 = vmatpush1.msra.mxu0 %v3232
      %v3234 = vand.u32 %v470, 4294901760
      %3235 = vmatprep.subr.mxu0 %v3234
      %v3236 = vand.u32 %v469, 4294901760
      %3237 = vmatpush1.msra.mxu0 %v3236
      %v3238 = vand.u32 %v472, 4294901760
      %3239 = vmatprep.subr.mxu0 %v3238
      %v3240 = vand.u32 %v471, 4294901760
      %3241 = vmatpush1.msra.mxu0 %v3240
      %v3242 = vand.u32 %v474, 4294901760
      %3243 = vmatprep.subr.mxu0 %v3242
      %v3244 = vand.u32 %v473, 4294901760
      %3245 = vmatpush1.msra.mxu0 %v3244
      %v3246 = vand.u32 %v476, 4294901760
      %3247 = vmatprep.subr.mxu0 %v3246
      %v3248 = vand.u32 %v475, 4294901760
      %3249 = vmatpush1.msra.mxu0 %v3248
      %v3250 = vand.u32 %v2190, 4294901760
      %3251 = vmatprep.subr.mxu0 %v3250
      %v3252 = vand.u32 %v2189, 4294901760
      %3253 = vmatpush1.msra.mxu0 %v3252
      %v3254 = vand.u32 %v2192, 4294901760
      %3255 = vmatprep.subr.mxu0 %v3254
      %v3256 = vand.u32 %v2191, 4294901760
      %3257 = vmatpush1.msra.mxu0 %v3256
      %v3258 = vand.u32 %v2194, 4294901760
      %3259 = vmatprep.subr.mxu0 %v3258
      %v3260 = vand.u32 %v2193, 4294901760
      %3261 = vmatpush1.msra.mxu0 %v3260
      %v3262 = vand.u32 %v2196, 4294901760
      %3263 = vmatprep.subr.mxu0 %v3262
      %v3264 = vand.u32 %v2195, 4294901760
      %3265 = vmatpush1.msra.mxu0 %v3264
      %3266 = vmatprep.subr.mxu0 0.0
      %3267 = vmatpush1.msra.mxu0 0.0
      %3268 = vmatprep.subr.mxu0 0.0
      %3269 = vmatpush1.msra.mxu0 0.0
      %3270 = vmatprep.subr.mxu0 0.0
      %3271 = vmatpush1.msra.mxu0 0.0
      %3272 = vmatprep.subr.mxu0 0.0
      %3273 = vmatpush1.msra.mxu0 0.0
      %3274 = vmatprep.subr.mxu0 0.0
      %3275 = vmatpush1.msra.mxu0 0.0
      %3276 = vmatprep.subr.mxu0 0.0
      %3277 = vmatpush1.msra.mxu0 0.0
      %3278 = vmatprep.subr.mxu0 0.0
      %3279 = vmatpush1.msra.mxu0 0.0
      %3280 = vmatprep.subr.mxu0 0.0
      %3281 = vmatpush1.msra.mxu0 0.0
      %3282 = vmatprep.subr.mxu0 0.0
      %3283 = vmatpush1.msra.mxu0 0.0
      %3284 = vmatprep.subr.mxu0 0.0
      %3285 = vmatpush1.msra.mxu0 0.0
      %3286 = vmatprep.subr.mxu0 0.0
      %3287 = vmatpush1.msra.mxu0 0.0
      %3288 = vmatprep.subr.mxu0 0.0
      %3289 = vmatpush1.msra.mxu0 0.0
      %3290 = vmatprep.subr.mxu0 0.0
      %3291 = vmatpush1.msra.mxu0 0.0
      %3292 = vmatprep.subr.mxu0 0.0
      %3293 = vmatpush1.msra.mxu0 0.0
      %3294 = vmatprep.subr.mxu0 0.0
      %3295 = vmatpush1.msra.mxu0 0.0
      %3296 = vmatprep.subr.mxu0 0.0
      %3297 = vmatpush1.msra.mxu0 0.0
      %3298 = vmatprep.subr.mxu0 0.0
      %3299 = vmatpush1.msra.mxu0 0.0
      %3300 = vmatprep.subr.mxu0 0.0
      %3301 = vmatpush1.msra.mxu0 0.0
      %3302 = vmatprep.subr.mxu0 0.0
      %3303 = vmatpush1.msra.mxu0 0.0
      %3304 = vmatprep.subr.mxu0 0.0
      %3305 = vmatpush1.msra.mxu0 0.0
      %3306 = vmatprep.mubr.f32.mxu0 0.0
      %v3307 = vand.u32 %v2246, 4294901760
      %3308 = vmatmul.mubr.f32.gmra.mrb[0].mxu0 %v3307
      %v3309 = vpop.f32.mrb[0].mxu0
      %v3310 = vadd.f32 %v3165, %v3309
      %v3311 = vpop.f32.mrb[0].mxu0
      %v3312 = vadd.f32 %v3167, %v3311
      %3313 = vmatprep.mubr.f32.mxu0 0.0
      %v3314 = vand.u32 %v2249, 4294901760
      %3315 = vmatmul.mubr.f32.gmra.mrb[0].mxu0 %v3314
      %v3316 = vpop.f32.mrb[0].mxu0
      %v3317 = vadd.f32 %v3172, %v3316
      %v3318 = vpop.f32.mrb[0].mxu0
      %v3319 = vadd.f32 %v3174, %v3318
      %3320 = vmatprep.mubr.f32.mxu0 0.0
      %v3321 = vand.u32 %v2252, 4294901760
      %3322 = vmatmul.mubr.f32.gmra.mrb[0].mxu0 %v3321
      %v3323 = vpop.f32.mrb[0].mxu0
      %v3324 = vadd.f32 %v3179, %v3323
      %v3325 = vpop.f32.mrb[0].mxu0
      %v3326 = vadd.f32 %v3181, %v3325
      %3327 = vmatprep.mubr.f32.mxu0 0.0
      %v3328 = vand.u32 %v2255, 4294901760
      %3329 = vmatmul.mubr.f32.gmra.mrb[0].mxu0 %v3328
      %v3330 = vpop.f32.mrb[0].mxu0
      %v3331 = vadd.f32 %v3186, %v3330
      %v3332 = vpop.f32.mrb[0].mxu0
      %v3333 = vadd.f32 %v3188, %v3332
      %3334 = vmatprep.mubr.f32.mxu0 0.0
      %v3335 = vand.u32 %v2258, 4294901760
      %3336 = vmatmul.mubr.f32.gmra.mrb[0].mxu0 %v3335
      %v3337 = vpop.f32.mrb[0].mxu0
      %v3338 = vadd.f32 %v3193, %v3337
      %v3339 = vpop.f32.mrb[0].mxu0
      %v3340 = vadd.f32 %v3195, %v3339
      %3341 = vmatprep.mubr.f32.mxu0 0.0
      %v3342 = vand.u32 %v2261, 4294901760
      %3343 = vmatmul.mubr.f32.gmra.mrb[0].mxu0 %v3342
      %v3344 = vpop.f32.mrb[0].mxu0
      %v3345 = vadd.f32 %v3200, %v3344
      %v3346 = vpop.f32.mrb[0].mxu0
      %v3347 = vadd.f32 %v3202, %v3346
      %3348 = vmatprep.mubr.f32.mxu0 0.0
      %v3349 = vand.u32 %v2264, 4294901760
      %3350 = vmatmul.mubr.f32.gmra.mrb[0].mxu0 %v3349
      %v3351 = vpop.f32.mrb[0].mxu0
      %v3352 = vadd.f32 %v3207, %v3351
      %v3353 = vpop.f32.mrb[0].mxu0
      %v3354 = vadd.f32 %v3209, %v3353
      %3355 = vmatprep.mubr.f32.mxu0 0.0
      %v3356 = vand.u32 %v2267, 4294901760
      %3357 = vmatmul.mubr.f32.gmra.mrb[0].mxu0 %v3356
      %v3358 = vpop.f32.mrb[0].mxu0
      %v3359 = vadd.f32 %v3214, %v3358
      %v3360 = vpop.f32.mrb[0].mxu0
      %v3361 = vadd.f32 %v3216, %v3360
      %3362 = vdwg.mxu0
      %v3363 = vmax.f32 %v3310, 0.0
      %v3364 = vmax.f32 %v3312, 0.0
      %v3365 = vmax.f32 %v3317, 0.0
      %v3366 = vmax.f32 %v3319, 0.0
      %v3367 = vmax.f32 %v3324, 0.0
      %v3368 = vmax.f32 %v3326, 0.0
      %v3369 = vmax.f32 %v3331, 0.0
      %v3370 = vmax.f32 %v3333, 0.0
      %v3371 = vmax.f32 %v3338, 0.0
      %v3372 = vmax.f32 %v3340, 0.0
      %v3373 = vmax.f32 %v3345, 0.0
      %v3374 = vmax.f32 %v3347, 0.0
      %v3375 = vmax.f32 %v3352, 0.0
      %v3376 = vmax.f32 %v3354, 0.0
      %v3377 = vmax.f32 %v3359, 0.0
      %v3378 = vmax.f32 %v3361, 0.0
      %v3379 = vlaneseq
      %v3380 = vand.u32 %v3379, 127
      %v3381 = vadd.s32 %v3380, 128
      %vm3382 = vcmp.lt.s32.totalorder %v3380, 0
      %v3383 = vsub.s32 0, %v3380
      %v3384 = vsel %vm3382, %v3383, %v3380
      %v3385 = vshrl.u32 %v3384, 4
      %v3386 = vand.u32 %v3384, 15
      %v3387 = vsub.s32 0, %v3386
      %v3388 = vsel %vm3382, %v3387, %v3386
      %vm3389 = vcmp.lt.s32.totalorder %v3381, 0
      %v3390 = vsub.s32 0, %v3381
      %v3391 = vsel %vm3389, %v3390, %v3381
      %v3392 = vshrl.u32 %v3391, 4
      %v3393 = vand.u32 %v3391, 15
      %v3394 = vsub.s32 0, %v3393
      %v3395 = vsel %vm3389, %v3394, %v3393
      %vm3396 = vcmp.ne.s32.totalorder %v3388, 0
      %vm3397 = vcmp.ne.s32.totalorder %v3395, 0
      %vm3398 = vcmp.lt.s32.totalorder %v3388, 0
      %vm3399 = vcmp.lt.s32.totalorder %v3395, 0
      %vm3400 = vmand %vm3398, %vm3396
      %vm3401 = vmand %vm3399, %vm3397
      %v3402 = vadd.s32 %v3388, 16
      %v3403 = vadd.s32 %v3395, 16
      %v3404 = vsel %vm3400, %v3402, %v3388
      %v3405 = vsel %vm3401, %v3403, %v3395
      %vm3406 = vcmp.ge.s32.totalorder %v3404, 1
      %vm3407 = vcmp.ge.s32.totalorder %v3405, 1
      %v3408 = vsel %vm3406, 1, 0
      %v3409 = vsel %vm3407, 1, 0
      %v3410 = vcvt.s32.f32 %v3408
      %v3411 = vcvt.s32.f32 %v3409
      %vm3412 = vcmp.le.s32.totalorder %v3404, 14
      %vm3413 = vcmp.le.s32.totalorder %v3405, 14
      %v3414 = vsel %vm3412, 1, 0
      %v3415 = vsel %vm3413, 1, 0
      %v3416 = vcvt.s32.f32 %v3414
      %v3417 = vcvt.s32.f32 %v3415
      %vm3418 = vcmask 138240
      %3419 = vst.msk [vmem:[#allocation2] sm:$0xff] %vm3418, 0.0
      %3420 = vst.msk [vmem:[#allocation2 + $0x18] sm:$0xff] %vm3418, 0.0
      %3421 = vst.msk [vmem:[#allocation2 + $0x30] sm:$0xff] %vm3418, 0.0
      %3422 = vst.msk [vmem:[#allocation2 + $0x48] sm:$0xff] %vm3418, 0.0
      %vm3423 = vcmask 277640
      %3424 = vst.msk [vmem:[#allocation2 + $0x10] sm:$0xff] %vm3423, 0.0
      %3425 = vst.msk [vmem:[#allocation2 + $0x28] sm:$0xff] %vm3423, 0.0
      %3426 = vst.msk [vmem:[#allocation2 + $0x40] sm:$0xff] %vm3423, 0.0
      %3427 = vst.msk [vmem:[#allocation2 + $0x58] sm:$0xff] %vm3423, 0.0
      %3436 = vrot.lane.b32.xlu0 %v3363, 17
      %v3437 = vpop.permute.xlu0 %3436
      %3438 = vrot.lane.b32.xlu0 %v3364, 17
      %v3439 = vpop.permute.xlu0 %3438
      %3440 = vrot.lane.b32.xlu0 %v3365, 17
      %v3441 = vpop.permute.xlu0 %3440
      %3442 = vrot.lane.b32.xlu0 %v3366, 17
      %v3443 = vpop.permute.xlu0 %3442
      %3444 = vrot.lane.b32.xlu0 %v3367, 17
      %v3445 = vpop.permute.xlu0 %3444
      %3446 = vrot.lane.b32.xlu0 %v3368, 17
      %v3447 = vpop.permute.xlu0 %3446
      %3448 = vrot.lane.b32.xlu0 %v3369, 17
      %v3449 = vpop.permute.xlu0 %3448
      %3450 = vrot.lane.b32.xlu0 %v3370, 17
      %v3451 = vpop.permute.xlu0 %3450
      %v3452 = vsel %vm3418, %v3437, %v3439
      %v3453 = vsel %vm3418, %v3441, %v3443
      %v3454 = vsel %vm3418, %v3445, %v3447
      %v3455 = vsel %vm3418, %v3449, %v3451
      %vm3468 = vcmask 1047688
      %3469 = vst.msk [vmem:[#allocation2] sm:$0xff] %vm3468, %v3437
      %3470 = vst [vmem:[#allocation2 + $0x8] sm:$0xff] %v3452
      %3471 = vst.msk [vmem:[#allocation2 + $0x10] sm:$0xff] %vm3418, %v3439
      %3472 = vst.msk [vmem:[#allocation2 + $0x18] sm:$0xff] %vm3468, %v3441
      %3473 = vst [vmem:[#allocation2 + $0x20] sm:$0xff] %v3453
      %3474 = vst.msk [vmem:[#allocation2 + $0x28] sm:$0xff] %vm3418, %v3443
      %3475 = vst.msk [vmem:[#allocation2 + $0x30] sm:$0xff] %vm3468, %v3445
      %3476 = vst [vmem:[#allocation2 + $0x38] sm:$0xff] %v3454
      %3477 = vst.msk [vmem:[#allocation2 + $0x40] sm:$0xff] %vm3418, %v3447
      %3478 = vst.msk [vmem:[#allocation2 + $0x48] sm:$0xff] %vm3468, %v3449
      %3479 = vst [vmem:[#allocation2 + $0x50] sm:$0xff] %v3455
      %3480 = vst.msk [vmem:[#allocation2 + $0x58] sm:$0xff] %vm3418, %v3451
      %v3481 = vld [vmem:[%s7] sm:$0xff]
      %v3482 = vld [vmem:[%s7 + $0x8] sm:$0xff]
      %v3483 = vld [vmem:[%s7 + $0x10] sm:$0xff]
      %v3484 = vld [vmem:[%s7 + $0x18] sm:$0xff]
      %v3485 = vld [vmem:[#allocation2] sm:$0xff]
      %v3486 = vld [vmem:[#allocation2 + $0x8] sm:$0xff]
      %v3487 = vld [vmem:[#allocation2 + $0x18] sm:$0xff]
      %v3488 = vld [vmem:[#allocation2 + $0x20] sm:$0xff]
      %v3489 = vld [vmem:[#allocation2 + $0x30] sm:$0xff]
      %v3490 = vld [vmem:[#allocation2 + $0x38] sm:$0xff]
      %v3491 = vld [vmem:[#allocation2 + $0x48] sm:$0xff]
      %v3492 = vld [vmem:[#allocation2 + $0x50] sm:$0xff]
      %3494 = vset.pattern.permute.xlu0 0
      %3495 = vperm.xlu0 %3494, %v3481
      %v3496 = vpop.permute.xlu0 %3495
      %3499 = vset.pattern.permute.xlu0 0
      %3500 = vperm.xlu0 %3499, %v3482
      %v3501 = vpop.permute.xlu0 %3500
      %3504 = vset.pattern.permute.xlu0 0
      %3505 = vperm.xlu0 %3504, %v3483
      %v3506 = vpop.permute.xlu0 %3505
      %3509 = vset.pattern.permute.xlu0 0
      %3510 = vperm.xlu0 %3509, %v3484
      %v3511 = vpop.permute.xlu0 %3510
      %v3513 = vmul.f32 %v3485, %v3496
      %v3514 = vmul.f32 %v3486, %v3496
      %v3515 = vmul.f32 %v3487, %v3501
      %v3516 = vmul.f32 %v3488, %v3501
      %v3517 = vmul.f32 %v3489, %v3506
      %v3518 = vmul.f32 %v3490, %v3506
      %v3519 = vmul.f32 %v3491, %v3511
      %v3520 = vmul.f32 %v3492, %v3511
      %v3521 = vld [vmem:[#allocation2] sm:$0xff]
      %v3522 = vld [vmem:[#allocation2 + $0x8] sm:$0xff]
      %v3523 = vld [vmem:[#allocation2 + $0x10] sm:$0xff]
      %v3524 = vld [vmem:[#allocation2 + $0x18] sm:$0xff]
      %v3525 = vld [vmem:[#allocation2 + $0x20] sm:$0xff]
      %v3526 = vld [vmem:[#allocation2 + $0x28] sm:$0xff]
      %v3527 = vld [vmem:[#allocation2 + $0x30] sm:$0xff]
      %v3528 = vld [vmem:[#allocation2 + $0x38] sm:$0xff]
      %v3529 = vld [vmem:[#allocation2 + $0x40] sm:$0xff]
      %v3530 = vld [vmem:[#allocation2 + $0x48] sm:$0xff]
      %v3531 = vld [vmem:[#allocation2 + $0x50] sm:$0xff]
      %v3532 = vld [vmem:[#allocation2 + $0x58] sm:$0xff]
      %3533 = vset.pattern.permute.xlu0 3
      %3534 = vperm.xlu0 %3533, %v3481
      %v3535 = vpop.permute.xlu0 %3534
      %3537 = vset.pattern.permute.xlu0 3
      %3538 = vperm.xlu0 %3537, %v3482
      %v3539 = vpop.permute.xlu0 %3538
      %3541 = vset.pattern.permute.xlu0 3
      %3542 = vperm.xlu0 %3541, %v3483
      %v3543 = vpop.permute.xlu0 %3542
      %3545 = vset.pattern.permute.xlu0 3
      %3546 = vperm.xlu0 %3545, %v3484
      %v3547 = vpop.permute.xlu0 %3546
      %v3549 = vmul.f32 %v3521, %v3535
      %v3550 = vmul.f32 %v3522, %v3535
      %v3551 = vmul.f32 %v3523, %v3535
      %v3552 = vmul.f32 %v3524, %v3539
      %v3553 = vmul.f32 %v3525, %v3539
      %v3554 = vmul.f32 %v3526, %v3539
      %v3555 = vmul.f32 %v3527, %v3543
      %v3556 = vmul.f32 %v3528, %v3543
      %v3557 = vmul.f32 %v3529, %v3543
      %v3558 = vmul.f32 %v3530, %v3547
      %v3559 = vmul.f32 %v3531, %v3547
      %v3560 = vmul.f32 %v3532, %v3547
      %3573 = vrot.lane.b32.xlu0 %v3549, 112
      %v3574 = vpop.permute.xlu0 %3573
      %3575 = vrot.lane.b32.xlu0 %v3550, 112
      %v3576 = vpop.permute.xlu0 %3575
      %3577 = vrot.lane.b32.xlu0 %v3551, 112
      %v3578 = vpop.permute.xlu0 %3577
      %3579 = vrot.lane.b32.xlu0 %v3552, 112
      %v3580 = vpop.permute.xlu0 %3579
      %3581 = vrot.lane.b32.xlu0 %v3553, 112
      %v3582 = vpop.permute.xlu0 %3581
      %3583 = vrot.lane.b32.xlu0 %v3554, 112
      %v3584 = vpop.permute.xlu0 %3583
      %3585 = vrot.lane.b32.xlu0 %v3555, 112
      %v3586 = vpop.permute.xlu0 %3585
      %3587 = vrot.lane.b32.xlu0 %v3556, 112
      %v3588 = vpop.permute.xlu0 %3587
      %3589 = vrot.lane.b32.xlu0 %v3557, 112
      %v3590 = vpop.permute.xlu0 %3589
      %3591 = vrot.lane.b32.xlu0 %v3558, 112
      %v3592 = vpop.permute.xlu0 %3591
      %3593 = vrot.lane.b32.xlu0 %v3559, 112
      %v3594 = vpop.permute.xlu0 %3593
      %3595 = vrot.lane.b32.xlu0 %v3560, 112
      %v3596 = vpop.permute.xlu0 %3595
      %vm3597 = vcmask 916480
      %v3598 = vsel %vm3597, %v3574, %v3576
      %v3599 = vsel %vm3597, %v3576, %v3578
      %v3600 = vsel %vm3597, %v3580, %v3582
      %v3601 = vsel %vm3597, %v3582, %v3584
      %v3602 = vsel %vm3597, %v3586, %v3588
      %v3603 = vsel %vm3597, %v3588, %v3590
      %v3604 = vsel %vm3597, %v3592, %v3594
      %v3605 = vsel %vm3597, %v3594, %v3596
      %v3614 = vadd.f32 %v3513, %v3598
      %v3615 = vadd.f32 %v3514, %v3599
      %v3616 = vadd.f32 %v3515, %v3600
      %v3617 = vadd.f32 %v3516, %v3601
      %v3618 = vadd.f32 %v3517, %v3602
      %v3619 = vadd.f32 %v3518, %v3603
      %v3620 = vadd.f32 %v3519, %v3604
      %v3621 = vadd.f32 %v3520, %v3605
      %3622 = vset.pattern.permute.xlu0 6
      %3623 = vperm.xlu0 %3622, %v3481
      %v3624 = vpop.permute.xlu0 %3623
      %3626 = vset.pattern.permute.xlu0 6
      %3627 = vperm.xlu0 %3626, %v3482
      %v3628 = vpop.permute.xlu0 %3627
      %3630 = vset.pattern.permute.xlu0 6
      %3631 = vperm.xlu0 %3630, %v3483
      %v3632 = vpop.permute.xlu0 %3631
      %3634 = vset.pattern.permute.xlu0 6
      %3635 = vperm.xlu0 %3634, %v3484
      %v3636 = vpop.permute.xlu0 %3635
      %v3638 = vmul.f32 %v3521, %v3624
      %v3639 = vmul.f32 %v3522, %v3624
      %v3640 = vmul.f32 %v3523, %v3624
      %v3641 = vmul.f32 %v3524, %v3628
      %v3642 = vmul.f32 %v3525, %v3628
      %v3643 = vmul.f32 %v3526, %v3628
      %v3644 = vmul.f32 %v3527, %v3632
      %v3645 = vmul.f32 %v3528, %v3632
      %v3646 = vmul.f32 %v3529, %v3632
      %v3647 = vmul.f32 %v3530, %v3636
      %v3648 = vmul.f32 %v3531, %v3636
      %v3649 = vmul.f32 %v3532, %v3636
      %3662 = vrot.lane.b32.xlu0 %v3638, 96
      %v3663 = vpop.permute.xlu0 %3662
      %3664 = vrot.lane.b32.xlu0 %v3639, 96
      %v3665 = vpop.permute.xlu0 %3664
      %3666 = vrot.lane.b32.xlu0 %v3640, 96
      %v3667 = vpop.permute.xlu0 %3666
      %3668 = vrot.lane.b32.xlu0 %v3641, 96
      %v3669 = vpop.permute.xlu0 %3668
      %3670 = vrot.lane.b32.xlu0 %v3642, 96
      %v3671 = vpop.permute.xlu0 %3670
      %3672 = vrot.lane.b32.xlu0 %v3643, 96
      %v3673 = vpop.permute.xlu0 %3672
      %3674 = vrot.lane.b32.xlu0 %v3644, 96
      %v3675 = vpop.permute.xlu0 %3674
      %3676 = vrot.lane.b32.xlu0 %v3645, 96
      %v3677 = vpop.permute.xlu0 %3676
      %3678 = vrot.lane.b32.xlu0 %v3646, 96
      %v3679 = vpop.permute.xlu0 %3678
      %3680 = vrot.lane.b32.xlu0 %v3647, 96
      %v3681 = vpop.permute.xlu0 %3680
      %3682 = vrot.lane.b32.xlu0 %v3648, 96
      %v3683 = vpop.permute.xlu0 %3682
      %3684 = vrot.lane.b32.xlu0 %v3649, 96
      %v3685 = vpop.permute.xlu0 %3684
      %v3686 = vsel %vm1274, %v3663, %v3665
      %v3687 = vsel %vm1274, %v3665, %v3667
      %v3688 = vsel %vm1274, %v3669, %v3671
      %v3689 = vsel %vm1274, %v3671, %v3673
      %v3690 = vsel %vm1274, %v3675, %v3677
      %v3691 = vsel %vm1274, %v3677, %v3679
      %v3692 = vsel %vm1274, %v3681, %v3683
      %v3693 = vsel %vm1274, %v3683, %v3685
      %v3702 = vadd.f32 %v3614, %v3686
      %v3703 = vadd.f32 %v3615, %v3687
      %v3704 = vadd.f32 %v3616, %v3688
      %v3705 = vadd.f32 %v3617, %v3689
      %v3706 = vadd.f32 %v3618, %v3690
      %v3707 = vadd.f32 %v3619, %v3691
      %v3708 = vadd.f32 %v3620, %v3692
      %v3709 = vadd.f32 %v3621, %v3693
      %3710 = vset.pattern.permute.xlu0 1
      %3711 = vperm.xlu0 %3710, %v3481
      %v3712 = vpop.permute.xlu0 %3711
      %3714 = vset.pattern.permute.xlu0 1
      %3715 = vperm.xlu0 %3714, %v3482
      %v3716 = vpop.permute.xlu0 %3715
      %3718 = vset.pattern.permute.xlu0 1
      %3719 = vperm.xlu0 %3718, %v3483
      %v3720 = vpop.permute.xlu0 %3719
      %3722 = vset.pattern.permute.xlu0 1
      %3723 = vperm.xlu0 %3722, %v3484
      %v3724 = vpop.permute.xlu0 %3723
      %v3726 = vmul.f32 %v3521, %v3712
      %v3727 = vmul.f32 %v3522, %v3712
      %v3728 = vmul.f32 %v3523, %v3712
      %v3729 = vmul.f32 %v3524, %v3716
      %v3730 = vmul.f32 %v3525, %v3716
      %v3731 = vmul.f32 %v3526, %v3716
      %v3732 = vmul.f32 %v3527, %v3720
      %v3733 = vmul.f32 %v3528, %v3720
      %v3734 = vmul.f32 %v3529, %v3720
      %v3735 = vmul.f32 %v3530, %v3724
      %v3736 = vmul.f32 %v3531, %v3724
      %v3737 = vmul.f32 %v3532, %v3724
      %3738 = vset.pattern.permute.xlu0 4
      %3739 = vperm.xlu0 %3738, %v3481
      %v3740 = vpop.permute.xlu0 %3739
      %3742 = vset.pattern.permute.xlu0 4
      %3743 = vperm.xlu0 %3742, %v3482
      %v3744 = vpop.permute.xlu0 %3743
      %3746 = vset.pattern.permute.xlu0 4
      %3747 = vperm.xlu0 %3746, %v3483
      %v3748 = vpop.permute.xlu0 %3747
      %3750 = vset.pattern.permute.xlu0 4
      %3751 = vperm.xlu0 %3750, %v3484
      %v3752 = vpop.permute.xlu0 %3751
      %v3754 = vmul.f32 %v3363, %v3740
      %v3755 = vmul.f32 %v3364, %v3740
      %v3756 = vmul.f32 %v3365, %v3744
      %v3757 = vmul.f32 %v3366, %v3744
      %v3758 = vmul.f32 %v3367, %v3748
      %v3759 = vmul.f32 %v3368, %v3748
      %v3760 = vmul.f32 %v3369, %v3752
      %v3761 = vmul.f32 %v3370, %v3752
      %3770 = vrot.lane.b32.xlu0 %v3754, 1
      %v3771 = vpop.permute.xlu0 %3770
      %3772 = vrot.lane.b32.xlu0 %v3755, 1
      %v3773 = vpop.permute.xlu0 %3772
      %3774 = vrot.lane.b32.xlu0 %v3756, 1
      %v3775 = vpop.permute.xlu0 %3774
      %3776 = vrot.lane.b32.xlu0 %v3757, 1
      %v3777 = vpop.permute.xlu0 %3776
      %3778 = vrot.lane.b32.xlu0 %v3758, 1
      %v3779 = vpop.permute.xlu0 %3778
      %3780 = vrot.lane.b32.xlu0 %v3759, 1
      %v3781 = vpop.permute.xlu0 %3780
      %3782 = vrot.lane.b32.xlu0 %v3760, 1
      %v3783 = vpop.permute.xlu0 %3782
      %3784 = vrot.lane.b32.xlu0 %v3761, 1
      %v3785 = vpop.permute.xlu0 %3784
      %v3786 = vsel %vm510, %v3771, %v3773
      %v3787 = vsel %vm510, %v3775, %v3777
      %v3788 = vsel %vm510, %v3779, %v3781
      %v3789 = vsel %vm510, %v3783, %v3785
      %v3802 = vadd.f32 %v3726, %v3771
      %v3803 = vadd.f32 %v3727, %v3786
      %v3804 = vadd.f32 %v3728, %v3773
      %v3805 = vadd.f32 %v3729, %v3775
      %v3806 = vadd.f32 %v3730, %v3787
      %v3807 = vadd.f32 %v3731, %v3777
      %v3808 = vadd.f32 %v3732, %v3779
      %v3809 = vadd.f32 %v3733, %v3788
      %v3810 = vadd.f32 %v3734, %v3781
      %v3811 = vadd.f32 %v3735, %v3783
      %v3812 = vadd.f32 %v3736, %v3789
      %v3813 = vadd.f32 %v3737, %v3785
      %3814 = vset.pattern.permute.xlu0 7
      %3815 = vperm.xlu0 %3814, %v3481
      %v3816 = vpop.permute.xlu0 %3815
      %3818 = vset.pattern.permute.xlu0 7
      %3819 = vperm.xlu0 %3818, %v3482
      %v3820 = vpop.permute.xlu0 %3819
      %3822 = vset.pattern.permute.xlu0 7
      %3823 = vperm.xlu0 %3822, %v3483
      %v3824 = vpop.permute.xlu0 %3823
      %3826 = vset.pattern.permute.xlu0 7
      %3827 = vperm.xlu0 %3826, %v3484
      %v3828 = vpop.permute.xlu0 %3827
      %v3830 = vmul.f32 %v3521, %v3816
      %v3831 = vmul.f32 %v3522, %v3816
      %v3832 = vmul.f32 %v3523, %v3816
      %v3833 = vmul.f32 %v3524, %v3820
      %v3834 = vmul.f32 %v3525, %v3820
      %v3835 = vmul.f32 %v3526, %v3820
      %v3836 = vmul.f32 %v3527, %v3824
      %v3837 = vmul.f32 %v3528, %v3824
      %v3838 = vmul.f32 %v3529, %v3824
      %v3839 = vmul.f32 %v3530, %v3828
      %v3840 = vmul.f32 %v3531, %v3828
      %v3841 = vmul.f32 %v3532, %v3828
      %3854 = vrot.lane.b32.xlu0 %v3830, 96
      %v3855 = vpop.permute.xlu0 %3854
      %3856 = vrot.lane.b32.xlu0 %v3831, 96
      %v3857 = vpop.permute.xlu0 %3856
      %3858 = vrot.lane.b32.xlu0 %v3832, 96
      %v3859 = vpop.permute.xlu0 %3858
      %3860 = vrot.lane.b32.xlu0 %v3833, 96
      %v3861 = vpop.permute.xlu0 %3860
      %3862 = vrot.lane.b32.xlu0 %v3834, 96
      %v3863 = vpop.permute.xlu0 %3862
      %3864 = vrot.lane.b32.xlu0 %v3835, 96
      %v3865 = vpop.permute.xlu0 %3864
      %3866 = vrot.lane.b32.xlu0 %v3836, 96
      %v3867 = vpop.permute.xlu0 %3866
      %3868 = vrot.lane.b32.xlu0 %v3837, 96
      %v3869 = vpop.permute.xlu0 %3868
      %3870 = vrot.lane.b32.xlu0 %v3838, 96
      %v3871 = vpop.permute.xlu0 %3870
      %3872 = vrot.lane.b32.xlu0 %v3839, 96
      %v3873 = vpop.permute.xlu0 %3872
      %3874 = vrot.lane.b32.xlu0 %v3840, 96
      %v3875 = vpop.permute.xlu0 %3874
      %3876 = vrot.lane.b32.xlu0 %v3841, 96
      %v3877 = vpop.permute.xlu0 %3876
      %v3878 = vsel %vm1274, %v3855, %v3857
      %v3879 = vsel %vm1274, %v3857, %v3859
      %v3880 = vsel %vm1274, %v3861, %v3863
      %v3881 = vsel %vm1274, %v3863, %v3865
      %v3882 = vsel %vm1274, %v3867, %v3869
      %v3883 = vsel %vm1274, %v3869, %v3871
      %v3884 = vsel %vm1274, %v3873, %v3875
      %v3885 = vsel %vm1274, %v3875, %v3877
      %v3898 = vadd.f32 %v3802, %v3878
      %v3899 = vadd.f32 %v3803, %v3879
      %v3900 = vadd.f32 %v3804, %v3859
      %v3901 = vadd.f32 %v3805, %v3880
      %v3902 = vadd.f32 %v3806, %v3881
      %v3903 = vadd.f32 %v3807, %v3865
      %v3904 = vadd.f32 %v3808, %v3882
      %v3905 = vadd.f32 %v3809, %v3883
      %v3906 = vadd.f32 %v3810, %v3871
      %v3907 = vadd.f32 %v3811, %v3884
      %v3908 = vadd.f32 %v3812, %v3885
      %v3909 = vadd.f32 %v3813, %v3877
      %3910 = vset.pattern.permute.xlu0 2
      %3911 = vperm.xlu0 %3910, %v3481
      %v3912 = vpop.permute.xlu0 %3911
      %3914 = vset.pattern.permute.xlu0 2
      %3915 = vperm.xlu0 %3914, %v3482
      %v3916 = vpop.permute.xlu0 %3915
      %3918 = vset.pattern.permute.xlu0 2
      %3919 = vperm.xlu0 %3918, %v3483
      %v3920 = vpop.permute.xlu0 %3919
      %3922 = vset.pattern.permute.xlu0 2
      %3923 = vperm.xlu0 %3922, %v3484
      %v3924 = vpop.permute.xlu0 %3923
      %v3926 = vmul.f32 %v3521, %v3912
      %v3927 = vmul.f32 %v3522, %v3912
      %v3928 = vmul.f32 %v3523, %v3912
      %v3929 = vmul.f32 %v3524, %v3916
      %v3930 = vmul.f32 %v3525, %v3916
      %v3931 = vmul.f32 %v3526, %v3916
      %v3932 = vmul.f32 %v3527, %v3920
      %v3933 = vmul.f32 %v3528, %v3920
      %v3934 = vmul.f32 %v3529, %v3920
      %v3935 = vmul.f32 %v3530, %v3924
      %v3936 = vmul.f32 %v3531, %v3924
      %v3937 = vmul.f32 %v3532, %v3924
      %3938 = vset.pattern.permute.xlu0 5
      %3939 = vperm.xlu0 %3938, %v3481
      %v3940 = vpop.permute.xlu0 %3939
      %3942 = vset.pattern.permute.xlu0 5
      %3943 = vperm.xlu0 %3942, %v3482
      %v3944 = vpop.permute.xlu0 %3943
      %3946 = vset.pattern.permute.xlu0 5
      %3947 = vperm.xlu0 %3946, %v3483
      %v3948 = vpop.permute.xlu0 %3947
      %3950 = vset.pattern.permute.xlu0 5
      %3951 = vperm.xlu0 %3950, %v3484
      %v3952 = vpop.permute.xlu0 %3951
      %v3954 = vmul.f32 %v3521, %v3940
      %v3955 = vmul.f32 %v3522, %v3940
      %v3956 = vmul.f32 %v3523, %v3940
      %v3957 = vmul.f32 %v3524, %v3944
      %v3958 = vmul.f32 %v3525, %v3944
      %v3959 = vmul.f32 %v3526, %v3944
      %v3960 = vmul.f32 %v3527, %v3948
      %v3961 = vmul.f32 %v3528, %v3948
      %v3962 = vmul.f32 %v3529, %v3948
      %v3963 = vmul.f32 %v3530, %v3952
      %v3964 = vmul.f32 %v3531, %v3952
      %v3965 = vmul.f32 %v3532, %v3952
      %3978 = vrot.lane.b32.xlu0 %v3954, 112
      %v3979 = vpop.permute.xlu0 %3978
      %3980 = vrot.lane.b32.xlu0 %v3955, 112
      %v3981 = vpop.permute.xlu0 %3980
      %3982 = vrot.lane.b32.xlu0 %v3956, 112
      %v3983 = vpop.permute.xlu0 %3982
      %3984 = vrot.lane.b32.xlu0 %v3957, 112
      %v3985 = vpop.permute.xlu0 %3984
      %3986 = vrot.lane.b32.xlu0 %v3958, 112
      %v3987 = vpop.permute.xlu0 %3986
      %3988 = vrot.lane.b32.xlu0 %v3959, 112
      %v3989 = vpop.permute.xlu0 %3988
      %3990 = vrot.lane.b32.xlu0 %v3960, 112
      %v3991 = vpop.permute.xlu0 %3990
      %3992 = vrot.lane.b32.xlu0 %v3961, 112
      %v3993 = vpop.permute.xlu0 %3992
      %3994 = vrot.lane.b32.xlu0 %v3962, 112
      %v3995 = vpop.permute.xlu0 %3994
      %3996 = vrot.lane.b32.xlu0 %v3963, 112
      %v3997 = vpop.permute.xlu0 %3996
      %3998 = vrot.lane.b32.xlu0 %v3964, 112
      %v3999 = vpop.permute.xlu0 %3998
      %4000 = vrot.lane.b32.xlu0 %v3965, 112
      %v4001 = vpop.permute.xlu0 %4000
      %v4002 = vsel %vm3597, %v3979, %v3981
      %v4003 = vsel %vm3597, %v3981, %v3983
      %v4004 = vsel %vm3597, %v3985, %v3987
      %v4005 = vsel %vm3597, %v3987, %v3989
      %v4006 = vsel %vm3597, %v3991, %v3993
      %v4007 = vsel %vm3597, %v3993, %v3995
      %v4008 = vsel %vm3597, %v3997, %v3999
      %v4009 = vsel %vm3597, %v3999, %v4001
      %v4022 = vadd.f32 %v3926, %v4002
      %v4023 = vadd.f32 %v3927, %v4003
      %v4024 = vadd.f32 %v3928, %v3983
      %v4025 = vadd.f32 %v3929, %v4004
      %v4026 = vadd.f32 %v3930, %v4005
      %v4027 = vadd.f32 %v3931, %v3989
      %v4028 = vadd.f32 %v3932, %v4006
      %v4029 = vadd.f32 %v3933, %v4007
      %v4030 = vadd.f32 %v3934, %v3995
      %v4031 = vadd.f32 %v3935, %v4008
      %v4032 = vadd.f32 %v3936, %v4009
      %v4033 = vadd.f32 %v3937, %v4001
      %4034 = vset.pattern.permute.xlu0 8
      %4035 = vperm.xlu0 %4034, %v3481
      %v4036 = vpop.permute.xlu0 %4035
      %4038 = vset.pattern.permute.xlu0 8
      %4039 = vperm.xlu0 %4038, %v3482
      %v4040 = vpop.permute.xlu0 %4039
      %4042 = vset.pattern.permute.xlu0 8
      %4043 = vperm.xlu0 %4042, %v3483
      %v4044 = vpop.permute.xlu0 %4043
      %4046 = vset.pattern.permute.xlu0 8
      %4047 = vperm.xlu0 %4046, %v3484
      %v4048 = vpop.permute.xlu0 %4047
      %v4050 = vmul.f32 %v3521, %v4036
      %v4051 = vmul.f32 %v3522, %v4036
      %v4052 = vmul.f32 %v3523, %v4036
      %v4053 = vmul.f32 %v3524, %v4040
      %v4054 = vmul.f32 %v3525, %v4040
      %v4055 = vmul.f32 %v3526, %v4040
      %v4056 = vmul.f32 %v3527, %v4044
      %v4057 = vmul.f32 %v3528, %v4044
      %v4058 = vmul.f32 %v3529, %v4044
      %v4059 = vmul.f32 %v3530, %v4048
      %v4060 = vmul.f32 %v3531, %v4048
      %v4061 = vmul.f32 %v3532, %v4048
      %4074 = vrot.lane.b32.xlu0 %v4050, 96
      %v4075 = vpop.permute.xlu0 %4074
      %4076 = vrot.lane.b32.xlu0 %v4051, 96
      %v4077 = vpop.permute.xlu0 %4076
      %4078 = vrot.lane.b32.xlu0 %v4052, 96
      %v4079 = vpop.permute.xlu0 %4078
      %4080 = vrot.lane.b32.xlu0 %v4053, 96
      %v4081 = vpop.permute.xlu0 %4080
      %4082 = vrot.lane.b32.xlu0 %v4054, 96
      %v4083 = vpop.permute.xlu0 %4082
      %4084 = vrot.lane.b32.xlu0 %v4055, 96
      %v4085 = vpop.permute.xlu0 %4084
      %4086 = vrot.lane.b32.xlu0 %v4056, 96
      %v4087 = vpop.permute.xlu0 %4086
      %4088 = vrot.lane.b32.xlu0 %v4057, 96
      %v4089 = vpop.permute.xlu0 %4088
      %4090 = vrot.lane.b32.xlu0 %v4058, 96
      %v4091 = vpop.permute.xlu0 %4090
      %4092 = vrot.lane.b32.xlu0 %v4059, 96
      %v4093 = vpop.permute.xlu0 %4092
      %4094 = vrot.lane.b32.xlu0 %v4060, 96
      %v4095 = vpop.permute.xlu0 %4094
      %4096 = vrot.lane.b32.xlu0 %v4061, 96
      %v4097 = vpop.permute.xlu0 %4096
      %v4098 = vsel %vm1274, %v4075, %v4077
      %v4099 = vsel %vm1274, %v4077, %v4079
      %v4100 = vsel %vm1274, %v4081, %v4083
      %v4101 = vsel %vm1274, %v4083, %v4085
      %v4102 = vsel %vm1274, %v4087, %v4089
      %v4103 = vsel %vm1274, %v4089, %v4091
      %v4104 = vsel %vm1274, %v4093, %v4095
      %v4105 = vsel %vm1274, %v4095, %v4097
      %v4118 = vadd.f32 %v4022, %v4098
      %v4119 = vadd.f32 %v4023, %v4099
      %v4120 = vadd.f32 %v4024, %v4079
      %v4121 = vadd.f32 %v4025, %v4100
      %v4122 = vadd.f32 %v4026, %v4101
      %v4123 = vadd.f32 %v4027, %v4085
      %v4124 = vadd.f32 %v4028, %v4102
      %v4125 = vadd.f32 %v4029, %v4103
      %v4126 = vadd.f32 %v4030, %v4091
      %v4127 = vadd.f32 %v4031, %v4104
      %v4128 = vadd.f32 %v4032, %v4105
      %v4129 = vadd.f32 %v4033, %v4097
      %v4130 = vmul.f32 %v3702, %v3410
      %v4131 = vmul.f32 %v3703, %v3411
      %v4132 = vmul.f32 %v3704, %v3410
      %v4133 = vmul.f32 %v3705, %v3411
      %v4134 = vmul.f32 %v3706, %v3410
      %v4135 = vmul.f32 %v3707, %v3411
      %v4136 = vmul.f32 %v3708, %v3410
      %v4137 = vmul.f32 %v3709, %v3411
      %4150 = vrot.lane.b32.xlu0 %v3898, 127
      %v4151 = vpop.permute.xlu0 %4150
      %4152 = vrot.lane.b32.xlu0 %v3899, 127
      %v4153 = vpop.permute.xlu0 %4152
      %4154 = vrot.lane.b32.xlu0 %v3900, 127
      %v4155 = vpop.permute.xlu0 %4154
      %4156 = vrot.lane.b32.xlu0 %v3901, 127
      %v4157 = vpop.permute.xlu0 %4156
      %4158 = vrot.lane.b32.xlu0 %v3902, 127
      %v4159 = vpop.permute.xlu0 %4158
      %4160 = vrot.lane.b32.xlu0 %v3903, 127
      %v4161 = vpop.permute.xlu0 %4160
      %4162 = vrot.lane.b32.xlu0 %v3904, 127
      %v4163 = vpop.permute.xlu0 %4162
      %4164 = vrot.lane.b32.xlu0 %v3905, 127
      %v4165 = vpop.permute.xlu0 %4164
      %4166 = vrot.lane.b32.xlu0 %v3906, 127
      %v4167 = vpop.permute.xlu0 %4166
      %4168 = vrot.lane.b32.xlu0 %v3907, 127
      %v4169 = vpop.permute.xlu0 %4168
      %4170 = vrot.lane.b32.xlu0 %v3908, 127
      %v4171 = vpop.permute.xlu0 %4170
      %4172 = vrot.lane.b32.xlu0 %v3909, 127
      %v4173 = vpop.permute.xlu0 %4172
      %vm4174 = vcmask 1039360
      %v4175 = vsel %vm4174, %v4151, %v4153
      %v4176 = vsel %vm4174, %v4153, %v4155
      %v4177 = vsel %vm4174, %v4157, %v4159
      %v4178 = vsel %vm4174, %v4159, %v4161
      %v4179 = vsel %vm4174, %v4163, %v4165
      %v4180 = vsel %vm4174, %v4165, %v4167
      %v4181 = vsel %vm4174, %v4169, %v4171
      %v4182 = vsel %vm4174, %v4171, %v4173
      %v4191 = vadd.f32 %v4130, %v4175
      %v4192 = vadd.f32 %v4131, %v4176
      %v4193 = vadd.f32 %v4132, %v4177
      %v4194 = vadd.f32 %v4133, %v4178
      %v4195 = vadd.f32 %v4134, %v4179
      %v4196 = vadd.f32 %v4135, %v4180
      %v4197 = vadd.f32 %v4136, %v4181
      %v4198 = vadd.f32 %v4137, %v4182
      %4201 = vrot.lane.b32.xlu0 %v3416, 2
      %v4202 = vpop.permute.xlu0 %4201
      %4203 = vrot.lane.b32.xlu0 %v3417, 2
      %v4204 = vpop.permute.xlu0 %4203
      %vm4205 = vcmask 15360
      %v4206 = vsel %vm4205, %v4202, %v4204
      %v4210 = vmul.f32 %v4118, %v4202
      %v4211 = vmul.f32 %v4119, %v4206
      %v4212 = vmul.f32 %v4120, %v4204
      %v4213 = vmul.f32 %v4121, %v4202
      %v4214 = vmul.f32 %v4122, %v4206
      %v4215 = vmul.f32 %v4123, %v4204
      %v4216 = vmul.f32 %v4124, %v4202
      %v4217 = vmul.f32 %v4125, %v4206
      %v4218 = vmul.f32 %v4126, %v4204
      %v4219 = vmul.f32 %v4127, %v4202
      %v4220 = vmul.f32 %v4128, %v4206
      %v4221 = vmul.f32 %v4129, %v4204
      %4234 = vrot.lane.b32.xlu0 %v4210, 126
      %v4235 = vpop.permute.xlu0 %4234
      %4236 = vrot.lane.b32.xlu0 %v4211, 126
      %v4237 = vpop.permute.xlu0 %4236
      %4238 = vrot.lane.b32.xlu0 %v4212, 126
      %v4239 = vpop.permute.xlu0 %4238
      %4240 = vrot.lane.b32.xlu0 %v4213, 126
      %v4241 = vpop.permute.xlu0 %4240
      %4242 = vrot.lane.b32.xlu0 %v4214, 126
      %v4243 = vpop.permute.xlu0 %4242
      %4244 = vrot.lane.b32.xlu0 %v4215, 126
      %v4245 = vpop.permute.xlu0 %4244
      %4246 = vrot.lane.b32.xlu0 %v4216, 126
      %v4247 = vpop.permute.xlu0 %4246
      %4248 = vrot.lane.b32.xlu0 %v4217, 126
      %v4249 = vpop.permute.xlu0 %4248
      %4250 = vrot.lane.b32.xlu0 %v4218, 126
      %v4251 = vpop.permute.xlu0 %4250
      %4252 = vrot.lane.b32.xlu0 %v4219, 126
      %v4253 = vpop.permute.xlu0 %4252
      %4254 = vrot.lane.b32.xlu0 %v4220, 126
      %v4255 = vpop.permute.xlu0 %4254
      %4256 = vrot.lane.b32.xlu0 %v4221, 126
      %v4257 = vpop.permute.xlu0 %4256
      %vm4258 = vcmask 1031168
      %v4259 = vsel %vm4258, %v4235, %v4237
      %v4260 = vsel %vm4258, %v4237, %v4239
      %v4261 = vsel %vm4258, %v4241, %v4243
      %v4262 = vsel %vm4258, %v4243, %v4245
      %v4263 = vsel %vm4258, %v4247, %v4249
      %v4264 = vsel %vm4258, %v4249, %v4251
      %v4265 = vsel %vm4258, %v4253, %v4255
      %v4266 = vsel %vm4258, %v4255, %v4257
      %v4275 = vadd.f32 %v4191, %v4259
      %v4276 = vadd.f32 %v4192, %v4260
      %v4277 = vadd.f32 %v4193, %v4261
      %v4278 = vadd.f32 %v4194, %v4262
      %v4279 = vadd.f32 %v4195, %v4263
      %v4280 = vadd.f32 %v4196, %v4264
      %v4281 = vadd.f32 %v4197, %v4265
      %v4282 = vadd.f32 %v4198, %v4266
      %v4283 = vld [vmem:[%s8] sm:$0xff]
      %v4284 = vld [vmem:[%s8 + $0x8] sm:$0xff]
      %v4285 = vld [vmem:[%s8 + $0x10] sm:$0xff]
      %v4286 = vld [vmem:[%s8 + $0x18] sm:$0xff]
      %4288 = vset.pattern.permute.xlu0 0
      %4289 = vperm.xlu0 %4288, %v4283
      %v4290 = vpop.permute.xlu0 %4289
      %4293 = vset.pattern.permute.xlu0 0
      %4294 = vperm.xlu0 %4293, %v4284
      %v4295 = vpop.permute.xlu0 %4294
      %4298 = vset.pattern.permute.xlu0 0
      %4299 = vperm.xlu0 %4298, %v4285
      %v4300 = vpop.permute.xlu0 %4299
      %4303 = vset.pattern.permute.xlu0 0
      %4304 = vperm.xlu0 %4303, %v4286
      %v4305 = vpop.permute.xlu0 %4304
      %v4307 = vadd.f32 %v4275, %v4290
      %v4308 = vadd.f32 %v4276, %v4290
      %v4309 = vadd.f32 %v4277, %v4295
      %v4310 = vadd.f32 %v4278, %v4295
      %v4311 = vadd.f32 %v4279, %v4300
      %v4312 = vadd.f32 %v4280, %v4300
      %v4313 = vadd.f32 %v4281, %v4305
      %v4314 = vadd.f32 %v4282, %v4305
      %v4315 = vmax.f32 %v4307, 0.0
      %v4316 = vmax.f32 %v4308, 0.0
      %v4317 = vmax.f32 %v4309, 0.0
      %v4318 = vmax.f32 %v4310, 0.0
      %v4319 = vmax.f32 %v4311, 0.0
      %v4320 = vmax.f32 %v4312, 0.0
      %v4321 = vmax.f32 %v4313, 0.0
      %v4322 = vmax.f32 %v4314, 0.0
      %4331 = vrot.lane.b32.xlu0 %v4315, 17
      %v4332 = vpop.permute.xlu0 %4331
      %4333 = vrot.lane.b32.xlu0 %v4316, 17
      %v4334 = vpop.permute.xlu0 %4333
      %4335 = vrot.lane.b32.xlu0 %v4317, 17
      %v4336 = vpop.permute.xlu0 %4335
      %4337 = vrot.lane.b32.xlu0 %v4318, 17
      %v4338 = vpop.permute.xlu0 %4337
      %4339 = vrot.lane.b32.xlu0 %v4319, 17
      %v4340 = vpop.permute.xlu0 %4339
      %4341 = vrot.lane.b32.xlu0 %v4320, 17
      %v4342 = vpop.permute.xlu0 %4341
      %4343 = vrot.lane.b32.xlu0 %v4321, 17
      %v4344 = vpop.permute.xlu0 %4343
      %4345 = vrot.lane.b32.xlu0 %v4322, 17
      %v4346 = vpop.permute.xlu0 %4345
      %v4347 = vsel %vm3418, %v4332, %v4334
      %v4348 = vsel %vm3418, %v4336, %v4338
      %v4349 = vsel %vm3418, %v4340, %v4342
      %v4350 = vsel %vm3418, %v4344, %v4346
      %4363 = vst.msk [vmem:[#allocation2] sm:$0xff] %vm3468, %v4332
      %4364 = vst [vmem:[#allocation2 + $0x8] sm:$0xff] %v4347
      %4365 = vst.msk [vmem:[#allocation2 + $0x10] sm:$0xff] %vm3418, %v4334
      %4366 = vst.msk [vmem:[#allocation2 + $0x18] sm:$0xff] %vm3468, %v4336
      %4367 = vst [vmem:[#allocation2 + $0x20] sm:$0xff] %v4348
      %4368 = vst.msk [vmem:[#allocation2 + $0x28] sm:$0xff] %vm3418, %v4338
      %4369 = vst.msk [vmem:[#allocation2 + $0x30] sm:$0xff] %vm3468, %v4340
      %4370 = vst [vmem:[#allocation2 + $0x38] sm:$0xff] %v4349
      %4371 = vst.msk [vmem:[#allocation2 + $0x40] sm:$0xff] %vm3418, %v4342
      %4372 = vst.msk [vmem:[#allocation2 + $0x48] sm:$0xff] %vm3468, %v4344
      %4373 = vst [vmem:[#allocation2 + $0x50] sm:$0xff] %v4350
      %4374 = vst.msk [vmem:[#allocation2 + $0x58] sm:$0xff] %vm3418, %v4346
      %v4375 = vld [vmem:[%s9] sm:$0xff]
      %v4376 = vld [vmem:[%s9 + $0x8] sm:$0xff]
      %v4377 = vld [vmem:[%s9 + $0x10] sm:$0xff]
      %v4378 = vld [vmem:[%s9 + $0x18] sm:$0xff]
      %v4379 = vld [vmem:[#allocation2] sm:$0xff]
      %v4380 = vld [vmem:[#allocation2 + $0x8] sm:$0xff]
      %v4381 = vld [vmem:[#allocation2 + $0x18] sm:$0xff]
      %v4382 = vld [vmem:[#allocation2 + $0x20] sm:$0xff]
      %v4383 = vld [vmem:[#allocation2 + $0x30] sm:$0xff]
      %v4384 = vld [vmem:[#allocation2 + $0x38] sm:$0xff]
      %v4385 = vld [vmem:[#allocation2 + $0x48] sm:$0xff]
      %v4386 = vld [vmem:[#allocation2 + $0x50] sm:$0xff]
      %4388 = vset.pattern.permute.xlu0 0
      %4389 = vperm.xlu0 %4388, %v4375
      %v4390 = vpop.permute.xlu0 %4389
      %4393 = vset.pattern.permute.xlu0 0
      %4394 = vperm.xlu0 %4393, %v4376
      %v4395 = vpop.permute.xlu0 %4394
      %4398 = vset.pattern.permute.xlu0 0
      %4399 = vperm.xlu0 %4398, %v4377
      %v4400 = vpop.permute.xlu0 %4399
      %4403 = vset.pattern.permute.xlu0 0
      %4404 = vperm.xlu0 %4403, %v4378
      %v4405 = vpop.permute.xlu0 %4404
      %v4407 = vmul.f32 %v4379, %v4390
      %v4408 = vmul.f32 %v4380, %v4390
      %v4409 = vmul.f32 %v4381, %v4395
      %v4410 = vmul.f32 %v4382, %v4395
      %v4411 = vmul.f32 %v4383, %v4400
      %v4412 = vmul.f32 %v4384, %v4400
      %v4413 = vmul.f32 %v4385, %v4405
      %v4414 = vmul.f32 %v4386, %v4405
      %v4415 = vld [vmem:[#allocation2] sm:$0xff]
      %v4416 = vld [vmem:[#allocation2 + $0x8] sm:$0xff]
      %v4417 = vld [vmem:[#allocation2 + $0x10] sm:$0xff]
      %v4418 = vld [vmem:[#allocation2 + $0x18] sm:$0xff]
      %v4419 = vld [vmem:[#allocation2 + $0x20] sm:$0xff]
      %v4420 = vld [vmem:[#allocation2 + $0x28] sm:$0xff]
      %v4421 = vld [vmem:[#allocation2 + $0x30] sm:$0xff]
      %v4422 = vld [vmem:[#allocation2 + $0x38] sm:$0xff]
      %v4423 = vld [vmem:[#allocation2 + $0x40] sm:$0xff]
      %v4424 = vld [vmem:[#allocation2 + $0x48] sm:$0xff]
      %v4425 = vld [vmem:[#allocation2 + $0x50] sm:$0xff]
      %v4426 = vld [vmem:[#allocation2 + $0x58] sm:$0xff]
      %4427 = vset.pattern.permute.xlu0 3
      %4428 = vperm.xlu0 %4427, %v4375
      %v4429 = vpop.permute.xlu0 %4428
      %4431 = vset.pattern.permute.xlu0 3
      %4432 = vperm.xlu0 %4431, %v4376
      %v4433 = vpop.permute.xlu0 %4432
      %4435 = vset.pattern.permute.xlu0 3
      %4436 = vperm.xlu0 %4435, %v4377
      %v4437 = vpop.permute.xlu0 %4436
      %4439 = vset.pattern.permute.xlu0 3
      %4440 = vperm.xlu0 %4439, %v4378
      %v4441 = vpop.permute.xlu0 %4440
      %v4443 = vmul.f32 %v4415, %v4429
      %v4444 = vmul.f32 %v4416, %v4429
      %v4445 = vmul.f32 %v4417, %v4429
      %v4446 = vmul.f32 %v4418, %v4433
      %v4447 = vmul.f32 %v4419, %v4433
      %v4448 = vmul.f32 %v4420, %v4433
      %v4449 = vmul.f32 %v4421, %v4437
      %v4450 = vmul.f32 %v4422, %v4437
      %v4451 = vmul.f32 %v4423, %v4437
      %v4452 = vmul.f32 %v4424, %v4441
      %v4453 = vmul.f32 %v4425, %v4441
      %v4454 = vmul.f32 %v4426, %v4441
      %4467 = vrot.lane.b32.xlu0 %v4443, 112
      %v4468 = vpop.permute.xlu0 %4467
      %4469 = vrot.lane.b32.xlu0 %v4444, 112
      %v4470 = vpop.permute.xlu0 %4469
      %4471 = vrot.lane.b32.xlu0 %v4445, 112
      %v4472 = vpop.permute.xlu0 %4471
      %4473 = vrot.lane.b32.xlu0 %v4446, 112
      %v4474 = vpop.permute.xlu0 %4473
      %4475 = vrot.lane.b32.xlu0 %v4447, 112
      %v4476 = vpop.permute.xlu0 %4475
      %4477 = vrot.lane.b32.xlu0 %v4448, 112
      %v4478 = vpop.permute.xlu0 %4477
      %4479 = vrot.lane.b32.xlu0 %v4449, 112
      %v4480 = vpop.permute.xlu0 %4479
      %4481 = vrot.lane.b32.xlu0 %v4450, 112
      %v4482 = vpop.permute.xlu0 %4481
      %4483 = vrot.lane.b32.xlu0 %v4451, 112
      %v4484 = vpop.permute.xlu0 %4483
      %4485 = vrot.lane.b32.xlu0 %v4452, 112
      %v4486 = vpop.permute.xlu0 %4485
      %4487 = vrot.lane.b32.xlu0 %v4453, 112
      %v4488 = vpop.permute.xlu0 %4487
      %4489 = vrot.lane.b32.xlu0 %v4454, 112
      %v4490 = vpop.permute.xlu0 %4489
      %v4491 = vsel %vm3597, %v4468, %v4470
      %v4492 = vsel %vm3597, %v4470, %v4472
      %v4493 = vsel %vm3597, %v4474, %v4476
      %v4494 = vsel %vm3597, %v4476, %v4478
      %v4495 = vsel %vm3597, %v4480, %v4482
      %v4496 = vsel %vm3597, %v4482, %v4484
      %v4497 = vsel %vm3597, %v4486, %v4488
      %v4498 = vsel %vm3597, %v4488, %v4490
      %v4507 = vadd.f32 %v4407, %v4491
      %v4508 = vadd.f32 %v4408, %v4492
      %v4509 = vadd.f32 %v4409, %v4493
      %v4510 = vadd.f32 %v4410, %v4494
      %v4511 = vadd.f32 %v4411, %v4495
      %v4512 = vadd.f32 %v4412, %v4496
      %v4513 = vadd.f32 %v4413, %v4497
      %v4514 = vadd.f32 %v4414, %v4498
      %4515 = vset.pattern.permute.xlu0 6
      %4516 = vperm.xlu0 %4515, %v4375
      %v4517 = vpop.permute.xlu0 %4516
      %4519 = vset.pattern.permute.xlu0 6
      %4520 = vperm.xlu0 %4519, %v4376
      %v4521 = vpop.permute.xlu0 %4520
      %4523 = vset.pattern.permute.xlu0 6
      %4524 = vperm.xlu0 %4523, %v4377
      %v4525 = vpop.permute.xlu0 %4524
      %4527 = vset.pattern.permute.xlu0 6
      %4528 = vperm.xlu0 %4527, %v4378
      %v4529 = vpop.permute.xlu0 %4528
      %v4531 = vmul.f32 %v4415, %v4517
      %v4532 = vmul.f32 %v4416, %v4517
      %v4533 = vmul.f32 %v4417, %v4517
      %v4534 = vmul.f32 %v4418, %v4521
      %v4535 = vmul.f32 %v4419, %v4521
      %v4536 = vmul.f32 %v4420, %v4521
      %v4537 = vmul.f32 %v4421, %v4525
      %v4538 = vmul.f32 %v4422, %v4525
      %v4539 = vmul.f32 %v4423, %v4525
      %v4540 = vmul.f32 %v4424, %v4529
      %v4541 = vmul.f32 %v4425, %v4529
      %v4542 = vmul.f32 %v4426, %v4529
      %4555 = vrot.lane.b32.xlu0 %v4531, 96
      %v4556 = vpop.permute.xlu0 %4555
      %4557 = vrot.lane.b32.xlu0 %v4532, 96
      %v4558 = vpop.permute.xlu0 %4557
      %4559 = vrot.lane.b32.xlu0 %v4533, 96
      %v4560 = vpop.permute.xlu0 %4559
      %4561 = vrot.lane.b32.xlu0 %v4534, 96
      %v4562 = vpop.permute.xlu0 %4561
      %4563 = vrot.lane.b32.xlu0 %v4535, 96
      %v4564 = vpop.permute.xlu0 %4563
      %4565 = vrot.lane.b32.xlu0 %v4536, 96
      %v4566 = vpop.permute.xlu0 %4565
      %4567 = vrot.lane.b32.xlu0 %v4537, 96
      %v4568 = vpop.permute.xlu0 %4567
      %4569 = vrot.lane.b32.xlu0 %v4538, 96
      %v4570 = vpop.permute.xlu0 %4569
      %4571 = vrot.lane.b32.xlu0 %v4539, 96
      %v4572 = vpop.permute.xlu0 %4571
      %4573 = vrot.lane.b32.xlu0 %v4540, 96
      %v4574 = vpop.permute.xlu0 %4573
      %4575 = vrot.lane.b32.xlu0 %v4541, 96
      %v4576 = vpop.permute.xlu0 %4575
      %4577 = vrot.lane.b32.xlu0 %v4542, 96
      %v4578 = vpop.permute.xlu0 %4577
      %v4579 = vsel %vm1274, %v4556, %v4558
      %v4580 = vsel %vm1274, %v4558, %v4560
      %v4581 = vsel %vm1274, %v4562, %v4564
      %v4582 = vsel %vm1274, %v4564, %v4566
      %v4583 = vsel %vm1274, %v4568, %v4570
      %v4584 = vsel %vm1274, %v4570, %v4572
      %v4585 = vsel %vm1274, %v4574, %v4576
      %v4586 = vsel %vm1274, %v4576, %v4578
      %v4595 = vadd.f32 %v4507, %v4579
      %v4596 = vadd.f32 %v4508, %v4580
      %v4597 = vadd.f32 %v4509, %v4581
      %v4598 = vadd.f32 %v4510, %v4582
      %v4599 = vadd.f32 %v4511, %v4583
      %v4600 = vadd.f32 %v4512, %v4584
      %v4601 = vadd.f32 %v4513, %v4585
      %v4602 = vadd.f32 %v4514, %v4586
      %4603 = vset.pattern.permute.xlu0 1
      %4604 = vperm.xlu0 %4603, %v4375
      %v4605 = vpop.permute.xlu0 %4604
      %4607 = vset.pattern.permute.xlu0 1
      %4608 = vperm.xlu0 %4607, %v4376
      %v4609 = vpop.permute.xlu0 %4608
      %4611 = vset.pattern.permute.xlu0 1
      %4612 = vperm.xlu0 %4611, %v4377
      %v4613 = vpop.permute.xlu0 %4612
      %4615 = vset.pattern.permute.xlu0 1
      %4616 = vperm.xlu0 %4615, %v4378
      %v4617 = vpop.permute.xlu0 %4616
      %v4619 = vmul.f32 %v4415, %v4605
      %v4620 = vmul.f32 %v4416, %v4605
      %v4621 = vmul.f32 %v4417, %v4605
      %v4622 = vmul.f32 %v4418, %v4609
      %v4623 = vmul.f32 %v4419, %v4609
      %v4624 = vmul.f32 %v4420, %v4609
      %v4625 = vmul.f32 %v4421, %v4613
      %v4626 = vmul.f32 %v4422, %v4613
      %v4627 = vmul.f32 %v4423, %v4613
      %v4628 = vmul.f32 %v4424, %v4617
      %v4629 = vmul.f32 %v4425, %v4617
      %v4630 = vmul.f32 %v4426, %v4617
      %4631 = vset.pattern.permute.xlu0 4
      %4632 = vperm.xlu0 %4631, %v4375
      %v4633 = vpop.permute.xlu0 %4632
      %4635 = vset.pattern.permute.xlu0 4
      %4636 = vperm.xlu0 %4635, %v4376
      %v4637 = vpop.permute.xlu0 %4636
      %4639 = vset.pattern.permute.xlu0 4
      %4640 = vperm.xlu0 %4639, %v4377
      %v4641 = vpop.permute.xlu0 %4640
      %4643 = vset.pattern.permute.xlu0 4
      %4644 = vperm.xlu0 %4643, %v4378
      %v4645 = vpop.permute.xlu0 %4644
      %v4647 = vmul.f32 %v4315, %v4633
      %v4648 = vmul.f32 %v4316, %v4633
      %v4649 = vmul.f32 %v4317, %v4637
      %v4650 = vmul.f32 %v4318, %v4637
      %v4651 = vmul.f32 %v4319, %v4641
      %v4652 = vmul.f32 %v4320, %v4641
      %v4653 = vmul.f32 %v4321, %v4645
      %v4654 = vmul.f32 %v4322, %v4645
      %4663 = vrot.lane.b32.xlu0 %v4647, 1
      %v4664 = vpop.permute.xlu0 %4663
      %4665 = vrot.lane.b32.xlu0 %v4648, 1
      %v4666 = vpop.permute.xlu0 %4665
      %4667 = vrot.lane.b32.xlu0 %v4649, 1
      %v4668 = vpop.permute.xlu0 %4667
      %4669 = vrot.lane.b32.xlu0 %v4650, 1
      %v4670 = vpop.permute.xlu0 %4669
      %4671 = vrot.lane.b32.xlu0 %v4651, 1
      %v4672 = vpop.permute.xlu0 %4671
      %4673 = vrot.lane.b32.xlu0 %v4652, 1
      %v4674 = vpop.permute.xlu0 %4673
      %4675 = vrot.lane.b32.xlu0 %v4653, 1
      %v4676 = vpop.permute.xlu0 %4675
      %4677 = vrot.lane.b32.xlu0 %v4654, 1
      %v4678 = vpop.permute.xlu0 %4677
      %v4679 = vsel %vm510, %v4664, %v4666
      %v4680 = vsel %vm510, %v4668, %v4670
      %v4681 = vsel %vm510, %v4672, %v4674
      %v4682 = vsel %vm510, %v4676, %v4678
      %v4695 = vadd.f32 %v4619, %v4664
      %v4696 = vadd.f32 %v4620, %v4679
      %v4697 = vadd.f32 %v4621, %v4666
      %v4698 = vadd.f32 %v4622, %v4668
      %v4699 = vadd.f32 %v4623, %v4680
      %v4700 = vadd.f32 %v4624, %v4670
      %v4701 = vadd.f32 %v4625, %v4672
      %v4702 = vadd.f32 %v4626, %v4681
      %v4703 = vadd.f32 %v4627, %v4674
      %v4704 = vadd.f32 %v4628, %v4676
      %v4705 = vadd.f32 %v4629, %v4682
      %v4706 = vadd.f32 %v4630, %v4678
      %4707 = vset.pattern.permute.xlu0 7
      %4708 = vperm.xlu0 %4707, %v4375
      %v4709 = vpop.permute.xlu0 %4708
      %4711 = vset.pattern.permute.xlu0 7
      %4712 = vperm.xlu0 %4711, %v4376
      %v4713 = vpop.permute.xlu0 %4712
      %4715 = vset.pattern.permute.xlu0 7
      %4716 = vperm.xlu0 %4715, %v4377
      %v4717 = vpop.permute.xlu0 %4716
      %4719 = vset.pattern.permute.xlu0 7
      %4720 = vperm.xlu0 %4719, %v4378
      %v4721 = vpop.permute.xlu0 %4720
      %v4723 = vmul.f32 %v4415, %v4709
      %v4724 = vmul.f32 %v4416, %v4709
      %v4725 = vmul.f32 %v4417, %v4709
      %v4726 = vmul.f32 %v4418, %v4713
      %v4727 = vmul.f32 %v4419, %v4713
      %v4728 = vmul.f32 %v4420, %v4713
      %v4729 = vmul.f32 %v4421, %v4717
      %v4730 = vmul.f32 %v4422, %v4717
      %v4731 = vmul.f32 %v4423, %v4717
      %v4732 = vmul.f32 %v4424, %v4721
      %v4733 = vmul.f32 %v4425, %v4721
      %v4734 = vmul.f32 %v4426, %v4721
      %4747 = vrot.lane.b32.xlu0 %v4723, 96
      %v4748 = vpop.permute.xlu0 %4747
      %4749 = vrot.lane.b32.xlu0 %v4724, 96
      %v4750 = vpop.permute.xlu0 %4749
      %4751 = vrot.lane.b32.xlu0 %v4725, 96
      %v4752 = vpop.permute.xlu0 %4751
      %4753 = vrot.lane.b32.xlu0 %v4726, 96
      %v4754 = vpop.permute.xlu0 %4753
      %4755 = vrot.lane.b32.xlu0 %v4727, 96
      %v4756 = vpop.permute.xlu0 %4755
      %4757 = vrot.lane.b32.xlu0 %v4728, 96
      %v4758 = vpop.permute.xlu0 %4757
      %4759 = vrot.lane.b32.xlu0 %v4729, 96
      %v4760 = vpop.permute.xlu0 %4759
      %4761 = vrot.lane.b32.xlu0 %v4730, 96
      %v4762 = vpop.permute.xlu0 %4761
      %4763 = vrot.lane.b32.xlu0 %v4731, 96
      %v4764 = vpop.permute.xlu0 %4763
      %4765 = vrot.lane.b32.xlu0 %v4732, 96
      %v4766 = vpop.permute.xlu0 %4765
      %4767 = vrot.lane.b32.xlu0 %v4733, 96
      %v4768 = vpop.permute.xlu0 %4767
      %4769 = vrot.lane.b32.xlu0 %v4734, 96
      %v4770 = vpop.permute.xlu0 %4769
      %v4771 = vsel %vm1274, %v4748, %v4750
      %v4772 = vsel %vm1274, %v4750, %v4752
      %v4773 = vsel %vm1274, %v4754, %v4756
      %v4774 = vsel %vm1274, %v4756, %v4758
      %v4775 = vsel %vm1274, %v4760, %v4762
      %v4776 = vsel %vm1274, %v4762, %v4764
      %v4777 = vsel %vm1274, %v4766, %v4768
      %v4778 = vsel %vm1274, %v4768, %v4770
      %v4791 = vadd.f32 %v4695, %v4771
      %v4792 = vadd.f32 %v4696, %v4772
      %v4793 = vadd.f32 %v4697, %v4752
      %v4794 = vadd.f32 %v4698, %v4773
      %v4795 = vadd.f32 %v4699, %v4774
      %v4796 = vadd.f32 %v4700, %v4758
      %v4797 = vadd.f32 %v4701, %v4775
      %v4798 = vadd.f32 %v4702, %v4776
      %v4799 = vadd.f32 %v4703, %v4764
      %v4800 = vadd.f32 %v4704, %v4777
      %v4801 = vadd.f32 %v4705, %v4778
      %v4802 = vadd.f32 %v4706, %v4770
      %4803 = vset.pattern.permute.xlu0 2
      %4804 = vperm.xlu0 %4803, %v4375
      %v4805 = vpop.permute.xlu0 %4804
      %4807 = vset.pattern.permute.xlu0 2
      %4808 = vperm.xlu0 %4807, %v4376
      %v4809 = vpop.permute.xlu0 %4808
      %4811 = vset.pattern.permute.xlu0 2
      %4812 = vperm.xlu0 %4811, %v4377
      %v4813 = vpop.permute.xlu0 %4812
      %4815 = vset.pattern.permute.xlu0 2
      %4816 = vperm.xlu0 %4815, %v4378
      %v4817 = vpop.permute.xlu0 %4816
      %v4819 = vmul.f32 %v4415, %v4805
      %v4820 = vmul.f32 %v4416, %v4805
      %v4821 = vmul.f32 %v4417, %v4805
      %v4822 = vmul.f32 %v4418, %v4809
      %v4823 = vmul.f32 %v4419, %v4809
      %v4824 = vmul.f32 %v4420, %v4809
      %v4825 = vmul.f32 %v4421, %v4813
      %v4826 = vmul.f32 %v4422, %v4813
      %v4827 = vmul.f32 %v4423, %v4813
      %v4828 = vmul.f32 %v4424, %v4817
      %v4829 = vmul.f32 %v4425, %v4817
      %v4830 = vmul.f32 %v4426, %v4817
      %4831 = vset.pattern.permute.xlu0 5
      %4832 = vperm.xlu0 %4831, %v4375
      %v4833 = vpop.permute.xlu0 %4832
      %4835 = vset.pattern.permute.xlu0 5
      %4836 = vperm.xlu0 %4835, %v4376
      %v4837 = vpop.permute.xlu0 %4836
      %4839 = vset.pattern.permute.xlu0 5
      %4840 = vperm.xlu0 %4839, %v4377
      %v4841 = vpop.permute.xlu0 %4840
      %4843 = vset.pattern.permute.xlu0 5
      %4844 = vperm.xlu0 %4843, %v4378
      %v4845 = vpop.permute.xlu0 %4844
      %v4847 = vmul.f32 %v4415, %v4833
      %v4848 = vmul.f32 %v4416, %v4833
      %v4849 = vmul.f32 %v4417, %v4833
      %v4850 = vmul.f32 %v4418, %v4837
      %v4851 = vmul.f32 %v4419, %v4837
      %v4852 = vmul.f32 %v4420, %v4837
      %v4853 = vmul.f32 %v4421, %v4841
      %v4854 = vmul.f32 %v4422, %v4841
      %v4855 = vmul.f32 %v4423, %v4841
      %v4856 = vmul.f32 %v4424, %v4845
      %v4857 = vmul.f32 %v4425, %v4845
      %v4858 = vmul.f32 %v4426, %v4845
      %4871 = vrot.lane.b32.xlu0 %v4847, 112
      %v4872 = vpop.permute.xlu0 %4871
      %4873 = vrot.lane.b32.xlu0 %v4848, 112
      %v4874 = vpop.permute.xlu0 %4873
      %4875 = vrot.lane.b32.xlu0 %v4849, 112
      %v4876 = vpop.permute.xlu0 %4875
      %4877 = vrot.lane.b32.xlu0 %v4850, 112
      %v4878 = vpop.permute.xlu0 %4877
      %4879 = vrot.lane.b32.xlu0 %v4851, 112
      %v4880 = vpop.permute.xlu0 %4879
      %4881 = vrot.lane.b32.xlu0 %v4852, 112
      %v4882 = vpop.permute.xlu0 %4881
      %4883 = vrot.lane.b32.xlu0 %v4853, 112
      %v4884 = vpop.permute.xlu0 %4883
      %4885 = vrot.lane.b32.xlu0 %v4854, 112
      %v4886 = vpop.permute.xlu0 %4885
      %4887 = vrot.lane.b32.xlu0 %v4855, 112
      %v4888 = vpop.permute.xlu0 %4887
      %4889 = vrot.lane.b32.xlu0 %v4856, 112
      %v4890 = vpop.permute.xlu0 %4889
      %4891 = vrot.lane.b32.xlu0 %v4857, 112
      %v4892 = vpop.permute.xlu0 %4891
      %4893 = vrot.lane.b32.xlu0 %v4858, 112
      %v4894 = vpop.permute.xlu0 %4893
      %v4895 = vsel %vm3597, %v4872, %v4874
      %v4896 = vsel %vm3597, %v4874, %v4876
      %v4897 = vsel %vm3597, %v4878, %v4880
      %v4898 = vsel %vm3597, %v4880, %v4882
      %v4899 = vsel %vm3597, %v4884, %v4886
      %v4900 = vsel %vm3597, %v4886, %v4888
      %v4901 = vsel %vm3597, %v4890, %v4892
      %v4902 = vsel %vm3597, %v4892, %v4894
      %v4915 = vadd.f32 %v4819, %v4895
      %v4916 = vadd.f32 %v4820, %v4896
      %v4917 = vadd.f32 %v4821, %v4876
      %v4918 = vadd.f32 %v4822, %v4897
      %v4919 = vadd.f32 %v4823, %v4898
      %v4920 = vadd.f32 %v4824, %v4882
      %v4921 = vadd.f32 %v4825, %v4899
      %v4922 = vadd.f32 %v4826, %v4900
      %v4923 = vadd.f32 %v4827, %v4888
      %v4924 = vadd.f32 %v4828, %v4901
      %v4925 = vadd.f32 %v4829, %v4902
      %v4926 = vadd.f32 %v4830, %v4894
      %4927 = vset.pattern.permute.xlu0 8
      %4928 = vperm.xlu0 %4927, %v4375
      %v4929 = vpop.permute.xlu0 %4928
      %4931 = vset.pattern.permute.xlu0 8
      %4932 = vperm.xlu0 %4931, %v4376
      %v4933 = vpop.permute.xlu0 %4932
      %4935 = vset.pattern.permute.xlu0 8
      %4936 = vperm.xlu0 %4935, %v4377
      %v4937 = vpop.permute.xlu0 %4936
      %4939 = vset.pattern.permute.xlu0 8
      %4940 = vperm.xlu0 %4939, %v4378
      %v4941 = vpop.permute.xlu0 %4940
      %v4943 = vmul.f32 %v4415, %v4929
      %v4944 = vmul.f32 %v4416, %v4929
      %v4945 = vmul.f32 %v4417, %v4929
      %v4946 = vmul.f32 %v4418, %v4933
      %v4947 = vmul.f32 %v4419, %v4933
      %v4948 = vmul.f32 %v4420, %v4933
      %v4949 = vmul.f32 %v4421, %v4937
      %v4950 = vmul.f32 %v4422, %v4937
      %v4951 = vmul.f32 %v4423, %v4937
      %v4952 = vmul.f32 %v4424, %v4941
      %v4953 = vmul.f32 %v4425, %v4941
      %v4954 = vmul.f32 %v4426, %v4941
      %4967 = vrot.lane.b32.xlu0 %v4943, 96
      %v4968 = vpop.permute.xlu0 %4967
      %4969 = vrot.lane.b32.xlu0 %v4944, 96
      %v4970 = vpop.permute.xlu0 %4969
      %4971 = vrot.lane.b32.xlu0 %v4945, 96
      %v4972 = vpop.permute.xlu0 %4971
      %4973 = vrot.lane.b32.xlu0 %v4946, 96
      %v4974 = vpop.permute.xlu0 %4973
      %4975 = vrot.lane.b32.xlu0 %v4947, 96
      %v4976 = vpop.permute.xlu0 %4975
      %4977 = vrot.lane.b32.xlu0 %v4948, 96
      %v4978 = vpop.permute.xlu0 %4977
      %4979 = vrot.lane.b32.xlu0 %v4949, 96
      %v4980 = vpop.permute.xlu0 %4979
      %4981 = vrot.lane.b32.xlu0 %v4950, 96
      %v4982 = vpop.permute.xlu0 %4981
      %4983 = vrot.lane.b32.xlu0 %v4951, 96
      %v4984 = vpop.permute.xlu0 %4983
      %4985 = vrot.lane.b32.xlu0 %v4952, 96
      %v4986 = vpop.permute.xlu0 %4985
      %4987 = vrot.lane.b32.xlu0 %v4953, 96
      %v4988 = vpop.permute.xlu0 %4987
      %4989 = vrot.lane.b32.xlu0 %v4954, 96
      %v4990 = vpop.permute.xlu0 %4989
      %v4991 = vsel %vm1274, %v4968, %v4970
      %v4992 = vsel %vm1274, %v4970, %v4972
      %v4993 = vsel %vm1274, %v4974, %v4976
      %v4994 = vsel %vm1274, %v4976, %v4978
      %v4995 = vsel %vm1274, %v4980, %v4982
      %v4996 = vsel %vm1274, %v4982, %v4984
      %v4997 = vsel %vm1274, %v4986, %v4988
      %v4998 = vsel %vm1274, %v4988, %v4990
      %v5011 = vadd.f32 %v4915, %v4991
      %v5012 = vadd.f32 %v4916, %v4992
      %v5013 = vadd.f32 %v4917, %v4972
      %v5014 = vadd.f32 %v4918, %v4993
      %v5015 = vadd.f32 %v4919, %v4994
      %v5016 = vadd.f32 %v4920, %v4978
      %v5017 = vadd.f32 %v4921, %v4995
      %v5018 = vadd.f32 %v4922, %v4996
      %v5019 = vadd.f32 %v4923, %v4984
      %v5020 = vadd.f32 %v4924, %v4997
      %v5021 = vadd.f32 %v4925, %v4998
      %v5022 = vadd.f32 %v4926, %v4990
      %v5023 = vmul.f32 %v4595, %v3410
      %v5024 = vmul.f32 %v4596, %v3411
      %v5025 = vmul.f32 %v4597, %v3410
      %v5026 = vmul.f32 %v4598, %v3411
      %v5027 = vmul.f32 %v4599, %v3410
      %v5028 = vmul.f32 %v4600, %v3411
      %v5029 = vmul.f32 %v4601, %v3410
      %v5030 = vmul.f32 %v4602, %v3411
      %5043 = vrot.lane.b32.xlu0 %v4791, 127
      %v5044 = vpop.permute.xlu0 %5043
      %5045 = vrot.lane.b32.xlu0 %v4792, 127
      %v5046 = vpop.permute.xlu0 %5045
      %5047 = vrot.lane.b32.xlu0 %v4793, 127
      %v5048 = vpop.permute.xlu0 %5047
      %5049 = vrot.lane.b32.xlu0 %v4794, 127
      %v5050 = vpop.permute.xlu0 %5049
      %5051 = vrot.lane.b32.xlu0 %v4795, 127
      %v5052 = vpop.permute.xlu0 %5051
      %5053 = vrot.lane.b32.xlu0 %v4796, 127
      %v5054 = vpop.permute.xlu0 %5053
      %5055 = vrot.lane.b32.xlu0 %v4797, 127
      %v5056 = vpop.permute.xlu0 %5055
      %5057 = vrot.lane.b32.xlu0 %v4798, 127
      %v5058 = vpop.permute.xlu0 %5057
      %5059 = vrot.lane.b32.xlu0 %v4799, 127
      %v5060 = vpop.permute.xlu0 %5059
      %5061 = vrot.lane.b32.xlu0 %v4800, 127
      %v5062 = vpop.permute.xlu0 %5061
      %5063 = vrot.lane.b32.xlu0 %v4801, 127
      %v5064 = vpop.permute.xlu0 %5063
      %5065 = vrot.lane.b32.xlu0 %v4802, 127
      %v5066 = vpop.permute.xlu0 %5065
      %v5067 = vsel %vm4174, %v5044, %v5046
      %v5068 = vsel %vm4174, %v5046, %v5048
      %v5069 = vsel %vm4174, %v5050, %v5052
      %v5070 = vsel %vm4174, %v5052, %v5054
      %v5071 = vsel %vm4174, %v5056, %v5058
      %v5072 = vsel %vm4174, %v5058, %v5060
      %v5073 = vsel %vm4174, %v5062, %v5064
      %v5074 = vsel %vm4174, %v5064, %v5066
      %v5083 = vadd.f32 %v5023, %v5067
      %v5084 = vadd.f32 %v5024, %v5068
      %v5085 = vadd.f32 %v5025, %v5069
      %v5086 = vadd.f32 %v5026, %v5070
      %v5087 = vadd.f32 %v5027, %v5071
      %v5088 = vadd.f32 %v5028, %v5072
      %v5089 = vadd.f32 %v5029, %v5073
      %v5090 = vadd.f32 %v5030, %v5074
      %v5091 = vmul.f32 %v5011, %v4202
      %v5092 = vmul.f32 %v5012, %v4206
      %v5093 = vmul.f32 %v5013, %v4204
      %v5094 = vmul.f32 %v5014, %v4202
      %v5095 = vmul.f32 %v5015, %v4206
      %v5096 = vmul.f32 %v5016, %v4204
      %v5097 = vmul.f32 %v5017, %v4202
      %v5098 = vmul.f32 %v5018, %v4206
      %v5099 = vmul.f32 %v5019, %v4204
      %v5100 = vmul.f32 %v5020, %v4202
      %v5101 = vmul.f32 %v5021, %v4206
      %v5102 = vmul.f32 %v5022, %v4204
      %5115 = vrot.lane.b32.xlu0 %v5091, 126
      %v5116 = vpop.permute.xlu0 %5115
      %5117 = vrot.lane.b32.xlu0 %v5092, 126
      %v5118 = vpop.permute.xlu0 %5117
      %5119 = vrot.lane.b32.xlu0 %v5093, 126
      %v5120 = vpop.permute.xlu0 %5119
      %5121 = vrot.lane.b32.xlu0 %v5094, 126
      %v5122 = vpop.permute.xlu0 %5121
      %5123 = vrot.lane.b32.xlu0 %v5095, 126
      %v5124 = vpop.permute.xlu0 %5123
      %5125 = vrot.lane.b32.xlu0 %v5096, 126
      %v5126 = vpop.permute.xlu0 %5125
      %5127 = vrot.lane.b32.xlu0 %v5097, 126
      %v5128 = vpop.permute.xlu0 %5127
      %5129 = vrot.lane.b32.xlu0 %v5098, 126
      %v5130 = vpop.permute.xlu0 %5129
      %5131 = vrot.lane.b32.xlu0 %v5099, 126
      %v5132 = vpop.permute.xlu0 %5131
      %5133 = vrot.lane.b32.xlu0 %v5100, 126
      %v5134 = vpop.permute.xlu0 %5133
      %5135 = vrot.lane.b32.xlu0 %v5101, 126
      %v5136 = vpop.permute.xlu0 %5135
      %5137 = vrot.lane.b32.xlu0 %v5102, 126
      %v5138 = vpop.permute.xlu0 %5137
      %v5139 = vsel %vm4258, %v5116, %v5118
      %v5140 = vsel %vm4258, %v5118, %v5120
      %v5141 = vsel %vm4258, %v5122, %v5124
      %v5142 = vsel %vm4258, %v5124, %v5126
      %v5143 = vsel %vm4258, %v5128, %v5130
      %v5144 = vsel %vm4258, %v5130, %v5132
      %v5145 = vsel %vm4258, %v5134, %v5136
      %v5146 = vsel %vm4258, %v5136, %v5138
      %v5155 = vadd.f32 %v5083, %v5139
      %v5156 = vadd.f32 %v5084, %v5140
      %v5157 = vadd.f32 %v5085, %v5141
      %v5158 = vadd.f32 %v5086, %v5142
      %v5159 = vadd.f32 %v5087, %v5143
      %v5160 = vadd.f32 %v5088, %v5144
      %v5161 = vadd.f32 %v5089, %v5145
      %v5162 = vadd.f32 %v5090, %v5146
      %v5163 = vld [vmem:[%s10] sm:$0xff]
      %v5164 = vld [vmem:[%s10 + $0x8] sm:$0xff]
      %v5165 = vld [vmem:[%s10 + $0x10] sm:$0xff]
      %v5166 = vld [vmem:[%s10 + $0x18] sm:$0xff]
      %5168 = vset.pattern.permute.xlu0 0
      %5169 = vperm.xlu0 %5168, %v5163
      %v5170 = vpop.permute.xlu0 %5169
      %5173 = vset.pattern.permute.xlu0 0
      %5174 = vperm.xlu0 %5173, %v5164
      %v5175 = vpop.permute.xlu0 %5174
      %5178 = vset.pattern.permute.xlu0 0
      %5179 = vperm.xlu0 %5178, %v5165
      %v5180 = vpop.permute.xlu0 %5179
      %5183 = vset.pattern.permute.xlu0 0
      %5184 = vperm.xlu0 %5183, %v5166
      %v5185 = vpop.permute.xlu0 %5184
      %v5187 = vadd.f32 %v5155, %v5170
      %v5188 = vadd.f32 %v5156, %v5170
      %v5189 = vadd.f32 %v5157, %v5175
      %v5190 = vadd.f32 %v5158, %v5175
      %v5191 = vadd.f32 %v5159, %v5180
      %v5192 = vadd.f32 %v5160, %v5180
      %v5193 = vadd.f32 %v5161, %v5185
      %v5194 = vadd.f32 %v5162, %v5185
      %v5195 = vmax.f32 %v5187, 0.0
      %v5196 = vmax.f32 %v5188, 0.0
      %v5197 = vmax.f32 %v5189, 0.0
      %v5198 = vmax.f32 %v5190, 0.0
      %v5199 = vmax.f32 %v5191, 0.0
      %v5200 = vmax.f32 %v5192, 0.0
      %v5201 = vmax.f32 %v5193, 0.0
      %v5202 = vmax.f32 %v5194, 0.0
      %5211 = vrot.lane.b32.xlu0 %v5195, 17
      %v5212 = vpop.permute.xlu0 %5211
      %5213 = vrot.lane.b32.xlu0 %v5196, 17
      %v5214 = vpop.permute.xlu0 %5213
      %5215 = vrot.lane.b32.xlu0 %v5197, 17
      %v5216 = vpop.permute.xlu0 %5215
      %5217 = vrot.lane.b32.xlu0 %v5198, 17
      %v5218 = vpop.permute.xlu0 %5217
      %5219 = vrot.lane.b32.xlu0 %v5199, 17
      %v5220 = vpop.permute.xlu0 %5219
      %5221 = vrot.lane.b32.xlu0 %v5200, 17
      %v5222 = vpop.permute.xlu0 %5221
      %5223 = vrot.lane.b32.xlu0 %v5201, 17
      %v5224 = vpop.permute.xlu0 %5223
      %5225 = vrot.lane.b32.xlu0 %v5202, 17
      %v5226 = vpop.permute.xlu0 %5225
      %v5227 = vsel %vm3418, %v5212, %v5214
      %v5228 = vsel %vm3418, %v5216, %v5218
      %v5229 = vsel %vm3418, %v5220, %v5222
      %v5230 = vsel %vm3418, %v5224, %v5226
      %5243 = vst.msk [vmem:[#allocation2] sm:$0xff] %vm3468, %v5212
      %5244 = vst [vmem:[#allocation2 + $0x8] sm:$0xff] %v5227
      %5245 = vst.msk [vmem:[#allocation2 + $0x10] sm:$0xff] %vm3418, %v5214
      %5246 = vst.msk [vmem:[#allocation2 + $0x18] sm:$0xff] %vm3468, %v5216
      %5247 = vst [vmem:[#allocation2 + $0x20] sm:$0xff] %v5228
      %5248 = vst.msk [vmem:[#allocation2 + $0x28] sm:$0xff] %vm3418, %v5218
      %5249 = vst.msk [vmem:[#allocation2 + $0x30] sm:$0xff] %vm3468, %v5220
      %5250 = vst [vmem:[#allocation2 + $0x38] sm:$0xff] %v5229
      %5251 = vst.msk [vmem:[#allocation2 + $0x40] sm:$0xff] %vm3418, %v5222
      %5252 = vst.msk [vmem:[#allocation2 + $0x48] sm:$0xff] %vm3468, %v5224
      %5253 = vst [vmem:[#allocation2 + $0x50] sm:$0xff] %v5230
      %5254 = vst.msk [vmem:[#allocation2 + $0x58] sm:$0xff] %vm3418, %v5226
      %v5255 = vld [vmem:[%s11] sm:$0xff]
      %v5256 = vld [vmem:[%s11 + $0x8] sm:$0xff]
      %v5257 = vld [vmem:[%s11 + $0x10] sm:$0xff]
      %v5258 = vld [vmem:[%s11 + $0x18] sm:$0xff]
      %v5259 = vld [vmem:[#allocation2] sm:$0xff]
      %v5260 = vld [vmem:[#allocation2 + $0x8] sm:$0xff]
      %v5261 = vld [vmem:[#allocation2 + $0x18] sm:$0xff]
      %v5262 = vld [vmem:[#allocation2 + $0x20] sm:$0xff]
      %v5263 = vld [vmem:[#allocation2 + $0x30] sm:$0xff]
      %v5264 = vld [vmem:[#allocation2 + $0x38] sm:$0xff]
      %v5265 = vld [vmem:[#allocation2 + $0x48] sm:$0xff]
      %v5266 = vld [vmem:[#allocation2 + $0x50] sm:$0xff]
      %5268 = vset.pattern.permute.xlu0 0
      %5269 = vperm.xlu0 %5268, %v5255
      %v5270 = vpop.permute.xlu0 %5269
      %5273 = vset.pattern.permute.xlu0 0
      %5274 = vperm.xlu0 %5273, %v5256
      %v5275 = vpop.permute.xlu0 %5274
      %5278 = vset.pattern.permute.xlu0 0
      %5279 = vperm.xlu0 %5278, %v5257
      %v5280 = vpop.permute.xlu0 %5279
      %5283 = vset.pattern.permute.xlu0 0
      %5284 = vperm.xlu0 %5283, %v5258
      %v5285 = vpop.permute.xlu0 %5284
      %v5287 = vmul.f32 %v5259, %v5270
      %v5288 = vmul.f32 %v5260, %v5270
      %v5289 = vmul.f32 %v5261, %v5275
      %v5290 = vmul.f32 %v5262, %v5275
      %v5291 = vmul.f32 %v5263, %v5280
      %v5292 = vmul.f32 %v5264, %v5280
      %v5293 = vmul.f32 %v5265, %v5285
      %v5294 = vmul.f32 %v5266, %v5285
      %v5295 = vld [vmem:[#allocation2] sm:$0xff]
      %v5296 = vld [vmem:[#allocation2 + $0x8] sm:$0xff]
      %v5297 = vld [vmem:[#allocation2 + $0x10] sm:$0xff]
      %v5298 = vld [vmem:[#allocation2 + $0x18] sm:$0xff]
      %v5299 = vld [vmem:[#allocation2 + $0x20] sm:$0xff]
      %v5300 = vld [vmem:[#allocation2 + $0x28] sm:$0xff]
      %v5301 = vld [vmem:[#allocation2 + $0x30] sm:$0xff]
      %v5302 = vld [vmem:[#allocation2 + $0x38] sm:$0xff]
      %v5303 = vld [vmem:[#allocation2 + $0x40] sm:$0xff]
      %v5304 = vld [vmem:[#allocation2 + $0x48] sm:$0xff]
      %v5305 = vld [vmem:[#allocation2 + $0x50] sm:$0xff]
      %v5306 = vld [vmem:[#allocation2 + $0x58] sm:$0xff]
      %5307 = vset.pattern.permute.xlu0 3
      %5308 = vperm.xlu0 %5307, %v5255
      %v5309 = vpop.permute.xlu0 %5308
      %5311 = vset.pattern.permute.xlu0 3
      %5312 = vperm.xlu0 %5311, %v5256
      %v5313 = vpop.permute.xlu0 %5312
      %5315 = vset.pattern.permute.xlu0 3
      %5316 = vperm.xlu0 %5315, %v5257
      %v5317 = vpop.permute.xlu0 %5316
      %5319 = vset.pattern.permute.xlu0 3
      %5320 = vperm.xlu0 %5319, %v5258
      %v5321 = vpop.permute.xlu0 %5320
      %v5323 = vmul.f32 %v5295, %v5309
      %v5324 = vmul.f32 %v5296, %v5309
      %v5325 = vmul.f32 %v5297, %v5309
      %v5326 = vmul.f32 %v5298, %v5313
      %v5327 = vmul.f32 %v5299, %v5313
      %v5328 = vmul.f32 %v5300, %v5313
      %v5329 = vmul.f32 %v5301, %v5317
      %v5330 = vmul.f32 %v5302, %v5317
      %v5331 = vmul.f32 %v5303, %v5317
      %v5332 = vmul.f32 %v5304, %v5321
      %v5333 = vmul.f32 %v5305, %v5321
      %v5334 = vmul.f32 %v5306, %v5321
      %5347 = vrot.lane.b32.xlu0 %v5323, 112
      %v5348 = vpop.permute.xlu0 %5347
      %5349 = vrot.lane.b32.xlu0 %v5324, 112
      %v5350 = vpop.permute.xlu0 %5349
      %5351 = vrot.lane.b32.xlu0 %v5325, 112
      %v5352 = vpop.permute.xlu0 %5351
      %5353 = vrot.lane.b32.xlu0 %v5326, 112
      %v5354 = vpop.permute.xlu0 %5353
      %5355 = vrot.lane.b32.xlu0 %v5327, 112
      %v5356 = vpop.permute.xlu0 %5355
      %5357 = vrot.lane.b32.xlu0 %v5328, 112
      %v5358 = vpop.permute.xlu0 %5357
      %5359 = vrot.lane.b32.xlu0 %v5329, 112
      %v5360 = vpop.permute.xlu0 %5359
      %5361 = vrot.lane.b32.xlu0 %v5330, 112
      %v5362 = vpop.permute.xlu0 %5361
      %5363 = vrot.lane.b32.xlu0 %v5331, 112
      %v5364 = vpop.permute.xlu0 %5363
      %5365 = vrot.lane.b32.xlu0 %v5332, 112
      %v5366 = vpop.permute.xlu0 %5365
      %5367 = vrot.lane.b32.xlu0 %v5333, 112
      %v5368 = vpop.permute.xlu0 %5367
      %5369 = vrot.lane.b32.xlu0 %v5334, 112
      %v5370 = vpop.permute.xlu0 %5369
      %v5371 = vsel %vm3597, %v5348, %v5350
      %v5372 = vsel %vm3597, %v5350, %v5352
      %v5373 = vsel %vm3597, %v5354, %v5356
      %v5374 = vsel %vm3597, %v5356, %v5358
      %v5375 = vsel %vm3597, %v5360, %v5362
      %v5376 = vsel %vm3597, %v5362, %v5364
      %v5377 = vsel %vm3597, %v5366, %v5368
      %v5378 = vsel %vm3597, %v5368, %v5370
      %v5387 = vadd.f32 %v5287, %v5371
      %v5388 = vadd.f32 %v5288, %v5372
      %v5389 = vadd.f32 %v5289, %v5373
      %v5390 = vadd.f32 %v5290, %v5374
      %v5391 = vadd.f32 %v5291, %v5375
      %v5392 = vadd.f32 %v5292, %v5376
      %v5393 = vadd.f32 %v5293, %v5377
      %v5394 = vadd.f32 %v5294, %v5378
      %5395 = vset.pattern.permute.xlu0 6
      %5396 = vperm.xlu0 %5395, %v5255
      %v5397 = vpop.permute.xlu0 %5396
      %5399 = vset.pattern.permute.xlu0 6
      %5400 = vperm.xlu0 %5399, %v5256
      %v5401 = vpop.permute.xlu0 %5400
      %5403 = vset.pattern.permute.xlu0 6
      %5404 = vperm.xlu0 %5403, %v5257
      %v5405 = vpop.permute.xlu0 %5404
      %5407 = vset.pattern.permute.xlu0 6
      %5408 = vperm.xlu0 %5407, %v5258
      %v5409 = vpop.permute.xlu0 %5408
      %v5411 = vmul.f32 %v5295, %v5397
      %v5412 = vmul.f32 %v5296, %v5397
      %v5413 = vmul.f32 %v5297, %v5397
      %v5414 = vmul.f32 %v5298, %v5401
      %v5415 = vmul.f32 %v5299, %v5401
      %v5416 = vmul.f32 %v5300, %v5401
      %v5417 = vmul.f32 %v5301, %v5405
      %v5418 = vmul.f32 %v5302, %v5405
      %v5419 = vmul.f32 %v5303, %v5405
      %v5420 = vmul.f32 %v5304, %v5409
      %v5421 = vmul.f32 %v5305, %v5409
      %v5422 = vmul.f32 %v5306, %v5409
      %5435 = vrot.lane.b32.xlu0 %v5411, 96
      %v5436 = vpop.permute.xlu0 %5435
      %5437 = vrot.lane.b32.xlu0 %v5412, 96
      %v5438 = vpop.permute.xlu0 %5437
      %5439 = vrot.lane.b32.xlu0 %v5413, 96
      %v5440 = vpop.permute.xlu0 %5439
      %5441 = vrot.lane.b32.xlu0 %v5414, 96
      %v5442 = vpop.permute.xlu0 %5441
      %5443 = vrot.lane.b32.xlu0 %v5415, 96
      %v5444 = vpop.permute.xlu0 %5443
      %5445 = vrot.lane.b32.xlu0 %v5416, 96
      %v5446 = vpop.permute.xlu0 %5445
      %5447 = vrot.lane.b32.xlu0 %v5417, 96
      %v5448 = vpop.permute.xlu0 %5447
      %5449 = vrot.lane.b32.xlu0 %v5418, 96
      %v5450 = vpop.permute.xlu0 %5449
      %5451 = vrot.lane.b32.xlu0 %v5419, 96
      %v5452 = vpop.permute.xlu0 %5451
      %5453 = vrot.lane.b32.xlu0 %v5420, 96
      %v5454 = vpop.permute.xlu0 %5453
      %5455 = vrot.lane.b32.xlu0 %v5421, 96
      %v5456 = vpop.permute.xlu0 %5455
      %5457 = vrot.lane.b32.xlu0 %v5422, 96
      %v5458 = vpop.permute.xlu0 %5457
      %v5459 = vsel %vm1274, %v5436, %v5438
      %v5460 = vsel %vm1274, %v5438, %v5440
      %v5461 = vsel %vm1274, %v5442, %v5444
      %v5462 = vsel %vm1274, %v5444, %v5446
      %v5463 = vsel %vm1274, %v5448, %v5450
      %v5464 = vsel %vm1274, %v5450, %v5452
      %v5465 = vsel %vm1274, %v5454, %v5456
      %v5466 = vsel %vm1274, %v5456, %v5458
      %v5475 = vadd.f32 %v5387, %v5459
      %v5476 = vadd.f32 %v5388, %v5460
      %v5477 = vadd.f32 %v5389, %v5461
      %v5478 = vadd.f32 %v5390, %v5462
      %v5479 = vadd.f32 %v5391, %v5463
      %v5480 = vadd.f32 %v5392, %v5464
      %v5481 = vadd.f32 %v5393, %v5465
      %v5482 = vadd.f32 %v5394, %v5466
      %5483 = vset.pattern.permute.xlu0 1
      %5484 = vperm.xlu0 %5483, %v5255
      %v5485 = vpop.permute.xlu0 %5484
      %5487 = vset.pattern.permute.xlu0 1
      %5488 = vperm.xlu0 %5487, %v5256
      %v5489 = vpop.permute.xlu0 %5488
      %5491 = vset.pattern.permute.xlu0 1
      %5492 = vperm.xlu0 %5491, %v5257
      %v5493 = vpop.permute.xlu0 %5492
      %5495 = vset.pattern.permute.xlu0 1
      %5496 = vperm.xlu0 %5495, %v5258
      %v5497 = vpop.permute.xlu0 %5496
      %v5499 = vmul.f32 %v5295, %v5485
      %v5500 = vmul.f32 %v5296, %v5485
      %v5501 = vmul.f32 %v5297, %v5485
      %v5502 = vmul.f32 %v5298, %v5489
      %v5503 = vmul.f32 %v5299, %v5489
      %v5504 = vmul.f32 %v5300, %v5489
      %v5505 = vmul.f32 %v5301, %v5493
      %v5506 = vmul.f32 %v5302, %v5493
      %v5507 = vmul.f32 %v5303, %v5493
      %v5508 = vmul.f32 %v5304, %v5497
      %v5509 = vmul.f32 %v5305, %v5497
      %v5510 = vmul.f32 %v5306, %v5497
      %5511 = vset.pattern.permute.xlu0 4
      %5512 = vperm.xlu0 %5511, %v5255
      %v5513 = vpop.permute.xlu0 %5512
      %5515 = vset.pattern.permute.xlu0 4
      %5516 = vperm.xlu0 %5515, %v5256
      %v5517 = vpop.permute.xlu0 %5516
      %5519 = vset.pattern.permute.xlu0 4
      %5520 = vperm.xlu0 %5519, %v5257
      %v5521 = vpop.permute.xlu0 %5520
      %5523 = vset.pattern.permute.xlu0 4
      %5524 = vperm.xlu0 %5523, %v5258
      %v5525 = vpop.permute.xlu0 %5524
      %v5527 = vmul.f32 %v5195, %v5513
      %v5528 = vmul.f32 %v5196, %v5513
      %v5529 = vmul.f32 %v5197, %v5517
      %v5530 = vmul.f32 %v5198, %v5517
      %v5531 = vmul.f32 %v5199, %v5521
      %v5532 = vmul.f32 %v5200, %v5521
      %v5533 = vmul.f32 %v5201, %v5525
      %v5534 = vmul.f32 %v5202, %v5525
      %5543 = vrot.lane.b32.xlu0 %v5527, 1
      %v5544 = vpop.permute.xlu0 %5543
      %5545 = vrot.lane.b32.xlu0 %v5528, 1
      %v5546 = vpop.permute.xlu0 %5545
      %5547 = vrot.lane.b32.xlu0 %v5529, 1
      %v5548 = vpop.permute.xlu0 %5547
      %5549 = vrot.lane.b32.xlu0 %v5530, 1
      %v5550 = vpop.permute.xlu0 %5549
      %5551 = vrot.lane.b32.xlu0 %v5531, 1
      %v5552 = vpop.permute.xlu0 %5551
      %5553 = vrot.lane.b32.xlu0 %v5532, 1
      %v5554 = vpop.permute.xlu0 %5553
      %5555 = vrot.lane.b32.xlu0 %v5533, 1
      %v5556 = vpop.permute.xlu0 %5555
      %5557 = vrot.lane.b32.xlu0 %v5534, 1
      %v5558 = vpop.permute.xlu0 %5557
      %v5559 = vsel %vm510, %v5544, %v5546
      %v5560 = vsel %vm510, %v5548, %v5550
      %v5561 = vsel %vm510, %v5552, %v5554
      %v5562 = vsel %vm510, %v5556, %v5558
      %v5575 = vadd.f32 %v5499, %v5544
      %v5576 = vadd.f32 %v5500, %v5559
      %v5577 = vadd.f32 %v5501, %v5546
      %v5578 = vadd.f32 %v5502, %v5548
      %v5579 = vadd.f32 %v5503, %v5560
      %v5580 = vadd.f32 %v5504, %v5550
      %v5581 = vadd.f32 %v5505, %v5552
      %v5582 = vadd.f32 %v5506, %v5561
      %v5583 = vadd.f32 %v5507, %v5554
      %v5584 = vadd.f32 %v5508, %v5556
      %v5585 = vadd.f32 %v5509, %v5562
      %v5586 = vadd.f32 %v5510, %v5558
      %5587 = vset.pattern.permute.xlu0 7
      %5588 = vperm.xlu0 %5587, %v5255
      %v5589 = vpop.permute.xlu0 %5588
      %5591 = vset.pattern.permute.xlu0 7
      %5592 = vperm.xlu0 %5591, %v5256
      %v5593 = vpop.permute.xlu0 %5592
      %5595 = vset.pattern.permute.xlu0 7
      %5596 = vperm.xlu0 %5595, %v5257
      %v5597 = vpop.permute.xlu0 %5596
      %5599 = vset.pattern.permute.xlu0 7
      %5600 = vperm.xlu0 %5599, %v5258
      %v5601 = vpop.permute.xlu0 %5600
      %v5603 = vmul.f32 %v5295, %v5589
      %v5604 = vmul.f32 %v5296, %v5589
      %v5605 = vmul.f32 %v5297, %v5589
      %v5606 = vmul.f32 %v5298, %v5593
      %v5607 = vmul.f32 %v5299, %v5593
      %v5608 = vmul.f32 %v5300, %v5593
      %v5609 = vmul.f32 %v5301, %v5597
      %v5610 = vmul.f32 %v5302, %v5597
      %v5611 = vmul.f32 %v5303, %v5597
      %v5612 = vmul.f32 %v5304, %v5601
      %v5613 = vmul.f32 %v5305, %v5601
      %v5614 = vmul.f32 %v5306, %v5601
      %5627 = vrot.lane.b32.xlu0 %v5603, 96
      %v5628 = vpop.permute.xlu0 %5627
      %5629 = vrot.lane.b32.xlu0 %v5604, 96
      %v5630 = vpop.permute.xlu0 %5629
      %5631 = vrot.lane.b32.xlu0 %v5605, 96
      %v5632 = vpop.permute.xlu0 %5631
      %5633 = vrot.lane.b32.xlu0 %v5606, 96
      %v5634 = vpop.permute.xlu0 %5633
      %5635 = vrot.lane.b32.xlu0 %v5607, 96
      %v5636 = vpop.permute.xlu0 %5635
      %5637 = vrot.lane.b32.xlu0 %v5608, 96
      %v5638 = vpop.permute.xlu0 %5637
      %5639 = vrot.lane.b32.xlu0 %v5609, 96
      %v5640 = vpop.permute.xlu0 %5639
      %5641 = vrot.lane.b32.xlu0 %v5610, 96
      %v5642 = vpop.permute.xlu0 %5641
      %5643 = vrot.lane.b32.xlu0 %v5611, 96
      %v5644 = vpop.permute.xlu0 %5643
      %5645 = vrot.lane.b32.xlu0 %v5612, 96
      %v5646 = vpop.permute.xlu0 %5645
      %5647 = vrot.lane.b32.xlu0 %v5613, 96
      %v5648 = vpop.permute.xlu0 %5647
      %5649 = vrot.lane.b32.xlu0 %v5614, 96
      %v5650 = vpop.permute.xlu0 %5649
      %v5651 = vsel %vm1274, %v5628, %v5630
      %v5652 = vsel %vm1274, %v5630, %v5632
      %v5653 = vsel %vm1274, %v5634, %v5636
      %v5654 = vsel %vm1274, %v5636, %v5638
      %v5655 = vsel %vm1274, %v5640, %v5642
      %v5656 = vsel %vm1274, %v5642, %v5644
      %v5657 = vsel %vm1274, %v5646, %v5648
      %v5658 = vsel %vm1274, %v5648, %v5650
      %v5671 = vadd.f32 %v5575, %v5651
      %v5672 = vadd.f32 %v5576, %v5652
      %v5673 = vadd.f32 %v5577, %v5632
      %v5674 = vadd.f32 %v5578, %v5653
      %v5675 = vadd.f32 %v5579, %v5654
      %v5676 = vadd.f32 %v5580, %v5638
      %v5677 = vadd.f32 %v5581, %v5655
      %v5678 = vadd.f32 %v5582, %v5656
      %v5679 = vadd.f32 %v5583, %v5644
      %v5680 = vadd.f32 %v5584, %v5657
      %v5681 = vadd.f32 %v5585, %v5658
      %v5682 = vadd.f32 %v5586, %v5650
      %5683 = vset.pattern.permute.xlu0 2
      %5684 = vperm.xlu0 %5683, %v5255
      %v5685 = vpop.permute.xlu0 %5684
      %5687 = vset.pattern.permute.xlu0 2
      %5688 = vperm.xlu0 %5687, %v5256
      %v5689 = vpop.permute.xlu0 %5688
      %5691 = vset.pattern.permute.xlu0 2
      %5692 = vperm.xlu0 %5691, %v5257
      %v5693 = vpop.permute.xlu0 %5692
      %5695 = vset.pattern.permute.xlu0 2
      %5696 = vperm.xlu0 %5695, %v5258
      %v5697 = vpop.permute.xlu0 %5696
      %v5699 = vmul.f32 %v5295, %v5685
      %v5700 = vmul.f32 %v5296, %v5685
      %v5701 = vmul.f32 %v5297, %v5685
      %v5702 = vmul.f32 %v5298, %v5689
      %v5703 = vmul.f32 %v5299, %v5689
      %v5704 = vmul.f32 %v5300, %v5689
      %v5705 = vmul.f32 %v5301, %v5693
      %v5706 = vmul.f32 %v5302, %v5693
      %v5707 = vmul.f32 %v5303, %v5693
      %v5708 = vmul.f32 %v5304, %v5697
      %v5709 = vmul.f32 %v5305, %v5697
      %v5710 = vmul.f32 %v5306, %v5697
      %5711 = vset.pattern.permute.xlu0 5
      %5712 = vperm.xlu0 %5711, %v5255
      %v5713 = vpop.permute.xlu0 %5712
      %5715 = vset.pattern.permute.xlu0 5
      %5716 = vperm.xlu0 %5715, %v5256
      %v5717 = vpop.permute.xlu0 %5716
      %5719 = vset.pattern.permute.xlu0 5
      %5720 = vperm.xlu0 %5719, %v5257
      %v5721 = vpop.permute.xlu0 %5720
      %5723 = vset.pattern.permute.xlu0 5
      %5724 = vperm.xlu0 %5723, %v5258
      %v5725 = vpop.permute.xlu0 %5724
      %v5727 = vmul.f32 %v5295, %v5713
      %v5728 = vmul.f32 %v5296, %v5713
      %v5729 = vmul.f32 %v5297, %v5713
      %v5730 = vmul.f32 %v5298, %v5717
      %v5731 = vmul.f32 %v5299, %v5717
      %v5732 = vmul.f32 %v5300, %v5717
      %v5733 = vmul.f32 %v5301, %v5721
      %v5734 = vmul.f32 %v5302, %v5721
      %v5735 = vmul.f32 %v5303, %v5721
      %v5736 = vmul.f32 %v5304, %v5725
      %v5737 = vmul.f32 %v5305, %v5725
      %v5738 = vmul.f32 %v5306, %v5725
      %5751 = vrot.lane.b32.xlu0 %v5727, 112
      %v5752 = vpop.permute.xlu0 %5751
      %5753 = vrot.lane.b32.xlu0 %v5728, 112
      %v5754 = vpop.permute.xlu0 %5753
      %5755 = vrot.lane.b32.xlu0 %v5729, 112
      %v5756 = vpop.permute.xlu0 %5755
      %5757 = vrot.lane.b32.xlu0 %v5730, 112
      %v5758 = vpop.permute.xlu0 %5757
      %5759 = vrot.lane.b32.xlu0 %v5731, 112
      %v5760 = vpop.permute.xlu0 %5759
      %5761 = vrot.lane.b32.xlu0 %v5732, 112
      %v5762 = vpop.permute.xlu0 %5761
      %5763 = vrot.lane.b32.xlu0 %v5733, 112
      %v5764 = vpop.permute.xlu0 %5763
      %5765 = vrot.lane.b32.xlu0 %v5734, 112
      %v5766 = vpop.permute.xlu0 %5765
      %5767 = vrot.lane.b32.xlu0 %v5735, 112
      %v5768 = vpop.permute.xlu0 %5767
      %5769 = vrot.lane.b32.xlu0 %v5736, 112
      %v5770 = vpop.permute.xlu0 %5769
      %5771 = vrot.lane.b32.xlu0 %v5737, 112
      %v5772 = vpop.permute.xlu0 %5771
      %5773 = vrot.lane.b32.xlu0 %v5738, 112
      %v5774 = vpop.permute.xlu0 %5773
      %v5775 = vsel %vm3597, %v5752, %v5754
      %v5776 = vsel %vm3597, %v5754, %v5756
      %v5777 = vsel %vm3597, %v5758, %v5760
      %v5778 = vsel %vm3597, %v5760, %v5762
      %v5779 = vsel %vm3597, %v5764, %v5766
      %v5780 = vsel %vm3597, %v5766, %v5768
      %v5781 = vsel %vm3597, %v5770, %v5772
      %v5782 = vsel %vm3597, %v5772, %v5774
      %v5795 = vadd.f32 %v5699, %v5775
      %v5796 = vadd.f32 %v5700, %v5776
      %v5797 = vadd.f32 %v5701, %v5756
      %v5798 = vadd.f32 %v5702, %v5777
      %v5799 = vadd.f32 %v5703, %v5778
      %v5800 = vadd.f32 %v5704, %v5762
      %v5801 = vadd.f32 %v5705, %v5779
      %v5802 = vadd.f32 %v5706, %v5780
      %v5803 = vadd.f32 %v5707, %v5768
      %v5804 = vadd.f32 %v5708, %v5781
      %v5805 = vadd.f32 %v5709, %v5782
      %v5806 = vadd.f32 %v5710, %v5774
      %5807 = vset.pattern.permute.xlu0 8
      %5808 = vperm.xlu0 %5807, %v5255
      %v5809 = vpop.permute.xlu0 %5808
      %5811 = vset.pattern.permute.xlu0 8
      %5812 = vperm.xlu0 %5811, %v5256
      %v5813 = vpop.permute.xlu0 %5812
      %5815 = vset.pattern.permute.xlu0 8
      %5816 = vperm.xlu0 %5815, %v5257
      %v5817 = vpop.permute.xlu0 %5816
      %5819 = vset.pattern.permute.xlu0 8
      %5820 = vperm.xlu0 %5819, %v5258
      %v5821 = vpop.permute.xlu0 %5820
      %v5823 = vmul.f32 %v5295, %v5809
      %v5824 = vmul.f32 %v5296, %v5809
      %v5825 = vmul.f32 %v5297, %v5809
      %v5826 = vmul.f32 %v5298, %v5813
      %v5827 = vmul.f32 %v5299, %v5813
      %v5828 = vmul.f32 %v5300, %v5813
      %v5829 = vmul.f32 %v5301, %v5817
      %v5830 = vmul.f32 %v5302, %v5817
      %v5831 = vmul.f32 %v5303, %v5817
      %v5832 = vmul.f32 %v5304, %v5821
      %v5833 = vmul.f32 %v5305, %v5821
      %v5834 = vmul.f32 %v5306, %v5821
      %5847 = vrot.lane.b32.xlu0 %v5823, 96
      %v5848 = vpop.permute.xlu0 %5847
      %5849 = vrot.lane.b32.xlu0 %v5824, 96
      %v5850 = vpop.permute.xlu0 %5849
      %5851 = vrot.lane.b32.xlu0 %v5825, 96
      %v5852 = vpop.permute.xlu0 %5851
      %5853 = vrot.lane.b32.xlu0 %v5826, 96
      %v5854 = vpop.permute.xlu0 %5853
      %5855 = vrot.lane.b32.xlu0 %v5827, 96
      %v5856 = vpop.permute.xlu0 %5855
      %5857 = vrot.lane.b32.xlu0 %v5828, 96
      %v5858 = vpop.permute.xlu0 %5857
      %5859 = vrot.lane.b32.xlu0 %v5829, 96
      %v5860 = vpop.permute.xlu0 %5859
      %5861 = vrot.lane.b32.xlu0 %v5830, 96
      %v5862 = vpop.permute.xlu0 %5861
      %5863 = vrot.lane.b32.xlu0 %v5831, 96
      %v5864 = vpop.permute.xlu0 %5863
      %5865 = vrot.lane.b32.xlu0 %v5832, 96
      %v5866 = vpop.permute.xlu0 %5865
      %5867 = vrot.lane.b32.xlu0 %v5833, 96
      %v5868 = vpop.permute.xlu0 %5867
      %5869 = vrot.lane.b32.xlu0 %v5834, 96
      %v5870 = vpop.permute.xlu0 %5869
      %v5871 = vsel %vm1274, %v5848, %v5850
      %v5872 = vsel %vm1274, %v5850, %v5852
      %v5873 = vsel %vm1274, %v5854, %v5856
      %v5874 = vsel %vm1274, %v5856, %v5858
      %v5875 = vsel %vm1274, %v5860, %v5862
      %v5876 = vsel %vm1274, %v5862, %v5864
      %v5877 = vsel %vm1274, %v5866, %v5868
      %v5878 = vsel %vm1274, %v5868, %v5870
      %v5891 = vadd.f32 %v5795, %v5871
      %v5892 = vadd.f32 %v5796, %v5872
      %v5893 = vadd.f32 %v5797, %v5852
      %v5894 = vadd.f32 %v5798, %v5873
      %v5895 = vadd.f32 %v5799, %v5874
      %v5896 = vadd.f32 %v5800, %v5858
      %v5897 = vadd.f32 %v5801, %v5875
      %v5898 = vadd.f32 %v5802, %v5876
      %v5899 = vadd.f32 %v5803, %v5864
      %v5900 = vadd.f32 %v5804, %v5877
      %v5901 = vadd.f32 %v5805, %v5878
      %v5902 = vadd.f32 %v5806, %v5870
      %v5903 = vmul.f32 %v5475, %v3410
      %v5904 = vmul.f32 %v5476, %v3411
      %v5905 = vmul.f32 %v5477, %v3410
      %v5906 = vmul.f32 %v5478, %v3411
      %v5907 = vmul.f32 %v5479, %v3410
      %v5908 = vmul.f32 %v5480, %v3411
      %v5909 = vmul.f32 %v5481, %v3410
      %v5910 = vmul.f32 %v5482, %v3411
      %5923 = vrot.lane.b32.xlu0 %v5671, 127
      %v5924 = vpop.permute.xlu0 %5923
      %5925 = vrot.lane.b32.xlu0 %v5672, 127
      %v5926 = vpop.permute.xlu0 %5925
      %5927 = vrot.lane.b32.xlu0 %v5673, 127
      %v5928 = vpop.permute.xlu0 %5927
      %5929 = vrot.lane.b32.xlu0 %v5674, 127
      %v5930 = vpop.permute.xlu0 %5929
      %5931 = vrot.lane.b32.xlu0 %v5675, 127
      %v5932 = vpop.permute.xlu0 %5931
      %5933 = vrot.lane.b32.xlu0 %v5676, 127
      %v5934 = vpop.permute.xlu0 %5933
      %5935 = vrot.lane.b32.xlu0 %v5677, 127
      %v5936 = vpop.permute.xlu0 %5935
      %5937 = vrot.lane.b32.xlu0 %v5678, 127
      %v5938 = vpop.permute.xlu0 %5937
      %5939 = vrot.lane.b32.xlu0 %v5679, 127
      %v5940 = vpop.permute.xlu0 %5939
      %5941 = vrot.lane.b32.xlu0 %v5680, 127
      %v5942 = vpop.permute.xlu0 %5941
      %5943 = vrot.lane.b32.xlu0 %v5681, 127
      %v5944 = vpop.permute.xlu0 %5943
      %5945 = vrot.lane.b32.xlu0 %v5682, 127
      %v5946 = vpop.permute.xlu0 %5945
      %v5947 = vsel %vm4174, %v5924, %v5926
      %v5948 = vsel %vm4174, %v5926, %v5928
      %v5949 = vsel %vm4174, %v5930, %v5932
      %v5950 = vsel %vm4174, %v5932, %v5934
      %v5951 = vsel %vm4174, %v5936, %v5938
      %v5952 = vsel %vm4174, %v5938, %v5940
      %v5953 = vsel %vm4174, %v5942, %v5944
      %v5954 = vsel %vm4174, %v5944, %v5946
      %v5963 = vadd.f32 %v5903, %v5947
      %v5964 = vadd.f32 %v5904, %v5948
      %v5965 = vadd.f32 %v5905, %v5949
      %v5966 = vadd.f32 %v5906, %v5950
      %v5967 = vadd.f32 %v5907, %v5951
      %v5968 = vadd.f32 %v5908, %v5952
      %v5969 = vadd.f32 %v5909, %v5953
      %v5970 = vadd.f32 %v5910, %v5954
      %v5971 = vmul.f32 %v5891, %v4202
      %v5972 = vmul.f32 %v5892, %v4206
      %v5973 = vmul.f32 %v5893, %v4204
      %v5974 = vmul.f32 %v5894, %v4202
      %v5975 = vmul.f32 %v5895, %v4206
      %v5976 = vmul.f32 %v5896, %v4204
      %v5977 = vmul.f32 %v5897, %v4202
      %v5978 = vmul.f32 %v5898, %v4206
      %v5979 = vmul.f32 %v5899, %v4204
      %v5980 = vmul.f32 %v5900, %v4202
      %v5981 = vmul.f32 %v5901, %v4206
      %v5982 = vmul.f32 %v5902, %v4204
      %5995 = vrot.lane.b32.xlu0 %v5971, 126
      %v5996 = vpop.permute.xlu0 %5995
      %5997 = vrot.lane.b32.xlu0 %v5972, 126
      %v5998 = vpop.permute.xlu0 %5997
      %5999 = vrot.lane.b32.xlu0 %v5973, 126
      %v6000 = vpop.permute.xlu0 %5999
      %6001 = vrot.lane.b32.xlu0 %v5974, 126
      %v6002 = vpop.permute.xlu0 %6001
      %6003 = vrot.lane.b32.xlu0 %v5975, 126
      %v6004 = vpop.permute.xlu0 %6003
      %6005 = vrot.lane.b32.xlu0 %v5976, 126
      %v6006 = vpop.permute.xlu0 %6005
      %6007 = vrot.lane.b32.xlu0 %v5977, 126
      %v6008 = vpop.permute.xlu0 %6007
      %6009 = vrot.lane.b32.xlu0 %v5978, 126
      %v6010 = vpop.permute.xlu0 %6009
      %6011 = vrot.lane.b32.xlu0 %v5979, 126
      %v6012 = vpop.permute.xlu0 %6011
      %6013 = vrot.lane.b32.xlu0 %v5980, 126
      %v6014 = vpop.permute.xlu0 %6013
      %6015 = vrot.lane.b32.xlu0 %v5981, 126
      %v6016 = vpop.permute.xlu0 %6015
      %6017 = vrot.lane.b32.xlu0 %v5982, 126
      %v6018 = vpop.permute.xlu0 %6017
      %v6019 = vsel %vm4258, %v5996, %v5998
      %v6020 = vsel %vm4258, %v5998, %v6000
      %v6021 = vsel %vm4258, %v6002, %v6004
      %v6022 = vsel %vm4258, %v6004, %v6006
      %v6023 = vsel %vm4258, %v6008, %v6010
      %v6024 = vsel %vm4258, %v6010, %v6012
      %v6025 = vsel %vm4258, %v6014, %v6016
      %v6026 = vsel %vm4258, %v6016, %v6018
      %v6035 = vadd.f32 %v5963, %v6019
      %v6036 = vadd.f32 %v5964, %v6020
      %v6037 = vadd.f32 %v5965, %v6021
      %v6038 = vadd.f32 %v5966, %v6022
      %v6039 = vadd.f32 %v5967, %v6023
      %v6040 = vadd.f32 %v5968, %v6024
      %v6041 = vadd.f32 %v5969, %v6025
      %v6042 = vadd.f32 %v5970, %v6026
      %v6043 = vld [vmem:[%s12] sm:$0xff]
      %v6044 = vld [vmem:[%s12 + $0x8] sm:$0xff]
      %v6045 = vld [vmem:[%s12 + $0x10] sm:$0xff]
      %v6046 = vld [vmem:[%s12 + $0x18] sm:$0xff]
      %6048 = vset.pattern.permute.xlu0 0
      %6049 = vperm.xlu0 %6048, %v6043
      %v6050 = vpop.permute.xlu0 %6049
      %6053 = vset.pattern.permute.xlu0 0
      %6054 = vperm.xlu0 %6053, %v6044
      %v6055 = vpop.permute.xlu0 %6054
      %6058 = vset.pattern.permute.xlu0 0
      %6059 = vperm.xlu0 %6058, %v6045
      %v6060 = vpop.permute.xlu0 %6059
      %6063 = vset.pattern.permute.xlu0 0
      %6064 = vperm.xlu0 %6063, %v6046
      %v6065 = vpop.permute.xlu0 %6064
      %v6067 = vadd.f32 %v6035, %v6050
      %v6068 = vadd.f32 %v6036, %v6050
      %v6069 = vadd.f32 %v6037, %v6055
      %v6070 = vadd.f32 %v6038, %v6055
      %v6071 = vadd.f32 %v6039, %v6060
      %v6072 = vadd.f32 %v6040, %v6060
      %v6073 = vadd.f32 %v6041, %v6065
      %v6074 = vadd.f32 %v6042, %v6065
      %v6075 = vmax.f32 %v6067, 0.0
      %v6076 = vmax.f32 %v6068, 0.0
      %v6077 = vmax.f32 %v6069, 0.0
      %v6078 = vmax.f32 %v6070, 0.0
      %v6079 = vmax.f32 %v6071, 0.0
      %v6080 = vmax.f32 %v6072, 0.0
      %v6081 = vmax.f32 %v6073, 0.0
      %v6082 = vmax.f32 %v6074, 0.0
      %v6083 = vadd.f32 %v6075, %v3371
      %v6084 = vadd.f32 %v6076, %v3372
      %v6085 = vadd.f32 %v6077, %v3373
      %v6086 = vadd.f32 %v6078, %v3374
      %v6087 = vadd.f32 %v6079, %v3375
      %v6088 = vadd.f32 %v6080, %v3376
      %v6089 = vadd.f32 %v6081, %v3377
      %v6090 = vadd.f32 %v6082, %v3378
      %6091 = vst [vmem:[%s460] sm:$0xff] %v6083
      %6092 = vst [vmem:[%s460 + $0x8] sm:$0xff] %v6084
      %6093 = vst [vmem:[%s460 + $0x10] sm:$0xff] %v6085
      %6094 = vst [vmem:[%s460 + $0x18] sm:$0xff] %v6086
      %6095 = vst [vmem:[%s460 + $0x20] sm:$0xff] %v6087
      %6096 = vst [vmem:[%s460 + $0x28] sm:$0xff] %v6088
      %6097 = vst [vmem:[%s460 + $0x30] sm:$0xff] %v6089
      %6098 = vst [vmem:[%s460 + $0x38] sm:$0xff] %v6090
      %p6099 = scmp.lt.s32.totalorder %s24, 1
      %s6100 = scalar_select %p6099, %s24, 1
      %s6101 = smul.addr %s6100, 8
      %s6102 = smul.addr %s6101, 8
      %s6103 = scalar_lea.vmem %s13, %s6102
      // Predicated region
      $region73: #{fcm_forward.1} parent=71 // pred_check
        %p6104 = pneg %p325
      $region74: #{fcm_forward.1} parent=71 // pred_check_branch
        %6106 = sbr.rel (%p6104) target = $region76
      $region75: #{fcm_forward.1} parent=71 // pred_region
        _
      $region76: #{fcm_forward.1} parent=71 // pred_fallthru
        _
    $region72: #{fcm_forward.1} parent=5 // pred_fallthru
      _
    %p6107 = scmp.le.s32.totalorder 2, %s19
    // Predicated region
    $region77: #{fcm_forward.1} parent=5 // pred_check
      %p6108 = pneg %p6107
    $region78: #{fcm_forward.1} parent=5 // pred_check_branch
      %6110 = sbr.rel (%p6108) target = $region80
    $region79: #{fcm_forward.1} parent=5 // pred_region
      %s6111 = ssub.s32 %s19, 2
      // Predicated region
      $region81: #{fcm_forward.1} parent=79 // pred_check
        %p6112 = pneg %p331
      $region82: #{fcm_forward.1} parent=79 // pred_check_branch
        %6114 = sbr.rel (%p6112) target = $region84
      $region83: #{fcm_forward.1} parent=79 // pred_region
        %p6115 = scmp.lt.s32.totalorder %s25, 1
        %s6116 = scalar_select %p6115, %s25, 1
        %s6117 = smul.addr %s6116, 8
        %s6118 = smul.addr %s6117, 8
        %s6119 = scalar_lea.vmem %s13, %s6118
      $region84: #{fcm_forward.1} parent=79 // pred_fallthru
        _
    $region80: #{fcm_forward.1} parent=5 // pred_fallthru
      _
  $region6: #{fcm_forward.1} parent=0 // loop_footer
    %s23 = sadd.s32 1, %s19
  $region7: #{fcm_forward.1} parent=0 // loop_footer_branch
    %18 = sbr.rel target = $region3
  $region8: #{fcm_forward.1} parent=0 // loop_exit
    _

</llo_original>
